<compile_context>
chip_gen: v6e
topology: v6e:2x2x1
jax: 0.10.0
libtpu: 0.0.40
codegen_flags: <defaults>
</compile_context>

<pallas_src>
import functools

import jax
import jax.numpy as jnp
import numpy as np
from jax.experimental import pallas as pl
from jax.experimental.pallas import tpu as pltpu

EPS = 1e-5  # BatchNorm2d default eps
HP = jax.lax.Precision.HIGHEST


def _sigmoid(x):
    return 1.0 / (1.0 + jnp.exp(-x))


# ---------------------------------------------------------------------------
# Stage A: CBAM (channel + spatial gate) -> conv1 (3x3, folded taps, bf16 MXU)
#          -> per-sample BN1 partial stats.  One program per batch sample.
# ---------------------------------------------------------------------------
def cbam_conv1_kernel(x_ref, negb_ref, w1_ref, b1_ref, w2_ref, b2_ref,
                      wsp_ref, bsp_ref, wc_ref, vl_ref,
                      y_ref, psum_ref, psq_ref,
                      pool_ref, xg_ref, xk_ref, *, H, W, Wp, L, Cin):
    xs = x_ref[0]                                   # (Cin, P) padded-flat, exact zeros on border
    Pp = xg_ref.shape[1]
    inv_hw = 1.0 / float(H * W)

    # ---- channel attention: avg/max pool -> shared MLP (one matmul per layer) -> sigmoid ----
    pool_ref[:, 0:1] = jnp.sum(xs, axis=1, keepdims=True) * inv_hw              # avg pool
    pool_ref[:, 1:2] = jnp.max(xs + negb_ref[...], axis=1, keepdims=True)       # masked max pool
    hid = jnp.maximum(
        jnp.dot(w1_ref[...], pool_ref[...], precision=HP,
                preferred_element_type=jnp.float32) + b1_ref[...], 0.0)         # (Cr, 2)
    mo = jnp.dot(w2_ref[...], hid, precision=HP,
                 preferred_element_type=jnp.float32) + b2_ref[...]              # (Cin, 2)
    catt = _sigmoid(mo[:, 0:1] + mo[:, 1:2])                                    # (Cin, 1)
    x1 = xs * catt                                                              # border stays 0

    # ---- spatial attention: channel mean/max -> 3x3 conv (zero pad) -> sigmoid ----
    ac = jnp.mean(x1, axis=0, keepdims=True)        # (1, P), 0 at border (== zero padding)
    mc = jnp.max(x1, axis=0, keepdims=True)         # (1, P), 0 at border
    s = jnp.zeros((1, L), jnp.float32)
    for t in range(9):
        off = (t // 3) * Wp + (t % 3)
        s = s + wsp_ref[t] * ac[:, off:off + L] + wsp_ref[9 + t] * mc[:, off:off + L]
    satt = _sigmoid(s + bsp_ref[0])                 # (1, L)

    # ---- gated activation assembled as a zero-bordered padded slab in VMEM (never hits HBM) ----
    xg_ref[:, 0:Wp + 1] = jnp.zeros((Cin, Wp + 1), jnp.float32)
    xg_ref[:, Wp + 1 + L:Pp] = jnp.zeros((Cin, Wp + 1), jnp.float32)
    xg_ref[:, Wp + 1:Wp + 1 + L] = x1[:, Wp + 1:Wp + 1 + L] * satt

    # ---- conv1: fold the 9 taps into the contraction dim, single bf16 MXU matmul ----
    for t in range(9):
        off = (t // 3) * Wp + (t % 3)
        xk_ref[t * Cin:(t + 1) * Cin, :] = xg_ref[:, off:off + L].astype(jnp.bfloat16)
    acc = jnp.dot(wc_ref[...], xk_ref[...], preferred_element_type=jnp.float32)  # (Cout, L)
    y_ref[0] = acc

    av = acc * vl_ref[...]                          # zero junk columns before the stats
    psum_ref[0] = jnp.sum(av, axis=1, keepdims=True)
    psq_ref[0] = jnp.sum(av * av, axis=1, keepdims=True)


# ---------------------------------------------------------------------------
# Stage B: BN1-apply + ReLU -> conv2 (3x3, folded taps, bf16 MXU) -> BN2 partial stats.
# ---------------------------------------------------------------------------
def bn1_conv2_kernel(y1_ref, ps1_ref, sq1_ref, g1_ref, bb1_ref, wc_ref, vl_ref,
                     y2_ref, psum_ref, psq_ref,
                     zpad_ref, xk_ref, *, cnt, Wp, L, Cmid):
    inv_cnt = 1.0 / float(cnt)
    # reduce the per-sample partial stats (tiny) and build the affine BN transform
    mean = jnp.sum(ps1_ref[...], axis=0) * inv_cnt                   # (Cmid, 1)
    var = jnp.sum(sq1_ref[...], axis=0) * inv_cnt - mean * mean      # biased variance
    inv = jax.lax.rsqrt(var + EPS)
    scale = inv * g1_ref[...]
    shift = bb1_ref[...] - mean * scale
    z = jnp.maximum(y1_ref[0] * scale + shift, 0.0) * vl_ref[...]    # (Cmid, L); junk cols -> 0

    Pp = zpad_ref.shape[1]
    zpad_ref[:, 0:Wp + 1] = jnp.zeros((Cmid, Wp + 1), jnp.float32)
    zpad_ref[:, Wp + 1 + L:Pp] = jnp.zeros((Cmid, Wp + 1), jnp.float32)
    zpad_ref[:, Wp + 1:Wp + 1 + L] = z

    for t in range(9):
        off = (t // 3) * Wp + (t % 3)
        xk_ref[t * Cmid:(t + 1) * Cmid, :] = zpad_ref[:, off:off + L].astype(jnp.bfloat16)
    acc = jnp.dot(wc_ref[...], xk_ref[...], preferred_element_type=jnp.float32)  # (Cout, L)
    y2_ref[0] = acc

    av = acc * vl_ref[...]
    psum_ref[0] = jnp.sum(av, axis=1, keepdims=True)
    psq_ref[0] = jnp.sum(av * av, axis=1, keepdims=True)


# ---------------------------------------------------------------------------
# Stage C: BN2-apply + ReLU, writing the HxW interior directly (lane-dense output).
# ---------------------------------------------------------------------------
def bn2_out_kernel(y2_ref, ps2_ref, sq2_ref, g2_ref, bb2_ref, o_ref, *, cnt, H, W, Wp):
    inv_cnt = 1.0 / float(cnt)
    # NOTE: single-pass E[x^2]-E[x]^2 variance; fine at demo scale (see review concern).
    mean = jnp.sum(ps2_ref[...], axis=0) * inv_cnt
    var = jnp.sum(sq2_ref[...], axis=0) * inv_cnt - mean * mean
    inv = jax.lax.rsqrt(var + EPS)
    scale = inv * g2_ref[...]
    shift = bb2_ref[...] - mean * scale
    z = jnp.maximum(y2_ref[0] * scale + shift, 0.0)                  # (Cout, L)
    # compact out the 2 junk columns per image row -> lane-dense (Cout, H*W) block
    for i in range(H):
        o_ref[0, :, i * W:(i + 1) * W] = z[:, i * Wp:i * Wp + W]


# ---------------------------------------------------------------------------
# Wrapper
# ---------------------------------------------------------------------------
def conv_block_forward(x, p):
    N, C, H, W = x.shape
    Hp, Wp = H + 2, W + 2
    P = Hp * Wp
    L = H * Wp - 2                       # width of the flat conv-output window
    HW = H * W
    Cr = p["fc1_w"].shape[0]
    Co = p["conv1_w"].shape[0]
    f32, bf16 = jnp.float32, jnp.bfloat16

    # padded-flat input (zeros on the 1-px border), lane-dense last dim (built once)
    xpf = jnp.pad(x, ((0, 0), (0, 0), (1, 1), (1, 1))).reshape(N, C, P).astype(f32)

    cols = np.arange(P)
    interior = (((cols // Wp) >= 1) & ((cols // Wp) <= H)
                & ((cols % Wp) >= 1) & ((cols % Wp) <= W))
    # additive mask for the channel max-pool (border -> -BIG), built once in the wrapper
    negb = jnp.asarray(np.where(interior, 0.0, -3.0e38).astype(np.float32)[None, :])      # (1, P)
    validL = jnp.asarray(((np.arange(L) % Wp) < W).astype(np.float32)[None, :])           # (1, L)

    # fold the 9 taps of each conv into the contraction dim; bf16 operands for the native MXU path
    w1f = jnp.transpose(p["conv1_w"], (0, 2, 3, 1)).reshape(Co, 9 * C).astype(bf16)
    w2f = jnp.transpose(p["conv2_w"], (0, 2, 3, 1)).reshape(Co, 9 * Co).astype(bf16)

    par = pltpu.CompilerParams(dimension_semantics=("parallel",))

    # ---------------- Stage A: CBAM + conv1 + BN1 partial stats ----------------
    y1, ps1, sq1 = pl.pallas_call(
        functools.partial(cbam_conv1_kernel, H=H, W=W, Wp=Wp, L=L, Cin=C),
        out_shape=(jax.ShapeDtypeStruct((N, Co, L), f32),
                   jax.ShapeDtypeStruct((N, Co, 1), f32),
                   jax.ShapeDtypeStruct((N, Co, 1), f32)),
        grid=(N,),
        in_specs=[
            pl.BlockSpec((1, C, P), lambda n: (n, 0, 0)),
            pl.BlockSpec((1, P), lambda n: (0, 0)),
            pl.BlockSpec((Cr, C), lambda n: (0, 0)),
            pl.BlockSpec((Cr, 1), lambda n: (0, 0)),
            pl.BlockSpec((C, Cr), lambda n: (0, 0)),
            pl.BlockSpec((C, 1), lambda n: (0, 0)),
            pl.BlockSpec(memory_space=pltpu.MemorySpace.SMEM),
            pl.BlockSpec(memory_space=pltpu.MemorySpace.SMEM),
            pl.BlockSpec((Co, 9 * C), lambda n: (0, 0)),
            pl.BlockSpec((1, L), lambda n: (0, 0)),
        ],
        out_specs=(pl.BlockSpec((1, Co, L), lambda n: (n, 0, 0)),
                   pl.BlockSpec((1, Co, 1), lambda n: (n, 0, 0)),
                   pl.BlockSpec((1, Co, 1), lambda n: (n, 0, 0))),
        scratch_shapes=[pltpu.VMEM((C, 2), f32),
                        pltpu.VMEM((C, P), f32),
                        pltpu.VMEM((9 * C, L), bf16)],
        compiler_params=par,
    )(xpf, negb,
      p["fc1_w"], p["fc1_b"].reshape(Cr, 1), p["fc2_w"], p["fc2_b"].reshape(C, 1),
      p["sp_w"].reshape(-1), p["sp_b"],
      w1f, validL)

    # ---------------- Stage B: BN1 apply + ReLU + conv2 + BN2 partial stats ----------------
    y2, ps2, sq2 = pl.pallas_call(
        functools.partial(bn1_conv2_kernel, cnt=N * H * W, Wp=Wp, L=L, Cmid=Co),
        out_shape=(jax.ShapeDtypeStruct((N, Co, L), f32),
                   jax.ShapeDtypeStruct((N, Co, 1), f32),
                   jax.ShapeDtypeStruct((N, Co, 1), f32)),
        grid=(N,),
        in_specs=[
            pl.BlockSpec((1, Co, L), lambda n: (n, 0, 0)),
            pl.BlockSpec((N, Co, 1), lambda n: (0, 0, 0)),
            pl.BlockSpec((N, Co, 1), lambda n: (0, 0, 0)),
            pl.BlockSpec((Co, 1), lambda n: (0, 0)),
            pl.BlockSpec((Co, 1), lambda n: (0, 0)),
            pl.BlockSpec((Co, 9 * Co), lambda n: (0, 0)),
            pl.BlockSpec((1, L), lambda n: (0, 0)),
        ],
        out_specs=(pl.BlockSpec((1, Co, L), lambda n: (n, 0, 0)),
                   pl.BlockSpec((1, Co, 1), lambda n: (n, 0, 0)),
                   pl.BlockSpec((1, Co, 1), lambda n: (n, 0, 0))),
        scratch_shapes=[pltpu.VMEM((Co, P), f32),
                        pltpu.VMEM((9 * Co, L), bf16)],
        compiler_params=par,
    )(y1, ps1, sq1, p["bn1_g"].reshape(Co, 1), p["bn1_b"].reshape(Co, 1), w2f, validL)

    # ---------------- Stage C: BN2 apply + ReLU, interior written directly ----------------
    out = pl.pallas_call(
        functools.partial(bn2_out_kernel, cnt=N * H * W, H=H, W=W, Wp=Wp),
        out_shape=jax.ShapeDtypeStruct((N, Co, HW), f32),
        grid=(N,),
        in_specs=[
            pl.BlockSpec((1, Co, L), lambda n: (n, 0, 0)),
            pl.BlockSpec((N, Co, 1), lambda n: (0, 0, 0)),
            pl.BlockSpec((N, Co, 1), lambda n: (0, 0, 0)),
            pl.BlockSpec((Co, 1), lambda n: (0, 0)),
            pl.BlockSpec((Co, 1), lambda n: (0, 0)),
        ],
        out_specs=pl.BlockSpec((1, Co, HW), lambda n: (n, 0, 0)),
        compiler_params=par,
    )(y2, ps2, sq2, p["bn2_g"].reshape(Co, 1), p["bn2_b"].reshape(Co, 1))

    return out.reshape(N, Co, H, W)      # free reshape, no crop


# ---------------------------------------------------------------------------
# Pure-JAX reference (mirrors the PyTorch forward in training mode)
# ---------------------------------------------------------------------------
def conv_block_ref(x, p):
    avg = jnp.mean(x, axis=(2, 3))
    mx = jnp.max(x, axis=(2, 3))

    def mlp(v):
        h = jnp.maximum(jnp.dot(v, p["fc1_w"].T, precision=HP) + p["fc1_b"], 0.0)
        return jnp.dot(h, p["fc2_w"].T, precision=HP) + p["fc2_b"]

    catt = jax.nn.sigmoid(mlp(avg) + mlp(mx))
    x1 = x * catt[:, :, None, None]

    ac = jnp.mean(x1, axis=1, keepdims=True)
    mc = jnp.max(x1, axis=1, keepdims=True)
    sp_in = jnp.concatenate([ac, mc], axis=1)
    s = jax.lax.conv_general_dilated(
        sp_in, p["sp_w"], (1, 1), ((1, 1), (1, 1)),
        dimension_numbers=("NCHW", "OIHW", "NCHW"),
        precision=HP) + p["sp_b"][None, :, None, None]
    xg = x1 * jax.nn.sigmoid(s)

    def conv_bn_relu(v, w, g, b):
        y = jax.lax.conv_general_dilated(
            v, w, (1, 1), ((1, 1), (1, 1)),
            dimension_numbers=("NCHW", "OIHW", "NCHW"),
            precision=HP)
        mean = jnp.mean(y, axis=(0, 2, 3), keepdims=True)
        var = jnp.mean((y - mean) ** 2, axis=(0, 2, 3), keepdims=True)
        yh = (y - mean) * jax.lax.rsqrt(var + EPS)
        yh = yh * g[None, :, None, None] + b[None, :, None, None]
        return jnp.maximum(yh, 0.0)

    z = conv_bn_relu(xg, p["conv1_w"], p["bn1_g"], p["bn1_b"])
    z = conv_bn_relu(z, p["conv2_w"], p["bn2_g"], p["bn2_b"])
    return z


if __name__ == "__main__":
    key = jax.random.PRNGKey(0)
    ks = jax.random.split(key, 14)

    # ConvBlock(in_channels=16, out_channels=32, reduction=4), N=2, 16x16 images
    N, Cin, Cout, H, W = 2, 16, 32, 16, 16
    reduction = 4
    Cr = Cin // reduction

    x = jax.random.normal(ks[0], (N, Cin, H, W), jnp.float32)

    def init(k, shape, fan_in):
        return jax.random.normal(k, shape, jnp.float32) / np.sqrt(fan_in)

    params = {
        "fc1_w": init(ks[1], (Cr, Cin), Cin),
        "fc1_b": 0.05 * jax.random.normal(ks[2], (Cr,), jnp.float32),
        "fc2_w": init(ks[3], (Cin, Cr), Cr),
        "fc2_b": 0.05 * jax.random.normal(ks[4], (Cin,), jnp.float32),
        "sp_w": init(ks[5], (1, 2, 3, 3), 2 * 9),
        "sp_b": 0.05 * jax.random.normal(ks[6], (1,), jnp.float32),
        "conv1_w": init(ks[7], (Cout, Cin, 3, 3), Cin * 9),
        "bn1_g": 1.0 + 0.1 * jax.random.normal(ks[8], (Cout,), jnp.float32),
        "bn1_b": 0.1 * jax.random.normal(ks[9], (Cout,), jnp.float32),
        "conv2_w": init(ks[10], (Cout, Cout, 3, 3), Cout * 9),
        "bn2_g": 1.0 + 0.1 * jax.random.normal(ks[11], (Cout,), jnp.float32),
        "bn2_b": 0.1 * jax.random.normal(ks[12], (Cout,), jnp.float32),
    }

    out = conv_block_forward(x, params)
    out = jax.block_until_ready(out)

    ref = conv_block_ref(x, params)
    # bf16 MXU operands (f32 accumulation) vs the f32-HIGHEST reference: loosen tolerance accordingly.
    np.testing.assert_allclose(np.asarray(out), np.asarray(ref), rtol=2e-2, atol=3e-2)
    print("KERNEL_OK")
</pallas_src>

<mosaic_0001>
module attributes {stable_mosaic.version = 11 : i64} {
  func.func @cbam_conv1_kernel(%arg0: i32, %arg1: memref<1x16x324xf32, #tpu.memory_space<vmem>>, %arg2: memref<1x324xf32, #tpu.memory_space<vmem>>, %arg3: memref<4x16xf32, #tpu.memory_space<vmem>>, %arg4: memref<4x1xf32, #tpu.memory_space<vmem>>, %arg5: memref<16x4xf32, #tpu.memory_space<vmem>>, %arg6: memref<16x1xf32, #tpu.memory_space<vmem>>, %arg7: memref<18xf32, #tpu.memory_space<smem>>, %arg8: memref<1xf32, #tpu.memory_space<smem>>, %arg9: memref<32x144xbf16, #tpu.memory_space<vmem>>, %arg10: memref<1x286xf32, #tpu.memory_space<vmem>>, %arg11: memref<1x32x286xf32, #tpu.memory_space<vmem>>, %arg12: memref<1x32x1xf32, #tpu.memory_space<vmem>>, %arg13: memref<1x32x1xf32, #tpu.memory_space<vmem>>, %arg14: memref<16x2xf32, #tpu.memory_space<vmem>>, %arg15: memref<16x324xf32, #tpu.memory_space<vmem>>, %arg16: memref<144x286xbf16, #tpu.memory_space<vmem>>) attributes {dimension_semantics = [#tpu.dimension_semantics<parallel>], iteration_bounds = array<i64: 2>, scalar_prefetch = 0 : i64, scratch_operands = 3 : i64, tpu.core_type = #tpu.core_type<tc>, window_params = [{transform_indices = @transform_0, window_bounds = array<i64: 1, 16, 324>}, {pipeline_mode = #tpu.pipeline_mode<synchronous>, transform_indices = @transform_1, window_bounds = array<i64: 1, 324>}, {pipeline_mode = #tpu.pipeline_mode<synchronous>, transform_indices = @transform_2, window_bounds = array<i64: 4, 16>}, {pipeline_mode = #tpu.pipeline_mode<synchronous>, transform_indices = @transform_3, window_bounds = array<i64: 4, 1>}, {pipeline_mode = #tpu.pipeline_mode<synchronous>, transform_indices = @transform_4, window_bounds = array<i64: 16, 4>}, {pipeline_mode = #tpu.pipeline_mode<synchronous>, transform_indices = @transform_5, window_bounds = array<i64: 16, 1>}, {transform_indices = @transform_6, window_bounds = array<i64: 18>}, {transform_indices = @transform_7, window_bounds = array<i64: 1>}, {pipeline_mode = #tpu.pipeline_mode<synchronous>, transform_indices = @transform_8, window_bounds = array<i64: 32, 144>}, {pipeline_mode = #tpu.pipeline_mode<synchronous>, transform_indices = @transform_9, window_bounds = array<i64: 1, 286>}, {transform_indices = @transform_10, window_bounds = array<i64: 1, 32, 286>}, {transform_indices = @transform_11, window_bounds = array<i64: 1, 32, 1>}, {transform_indices = @transform_12, window_bounds = array<i64: 1, 32, 1>}]} {
    %c0 = arith.constant 0 : index
    %c0_0 = arith.constant 0 : index
    %c0_1 = arith.constant 0 : index
    %0 = vector.load %arg1[%c0, %c0_0, %c0_1] : memref<1x16x324xf32, #tpu.memory_space<vmem>>, vector<1x16x324xf32>
    %1 = vector.shape_cast %0 : vector<1x16x324xf32> to vector<16x324xf32>
    %cst = arith.constant dense<0.000000e+00> : vector<16xf32>
    %2 = vector.multi_reduction <add>, %1, %cst [1] : vector<16x324xf32> to vector<16xf32>
    %3 = vector.shape_cast %2 : vector<16xf32> to vector<16x1xf32>
    %cst_2 = arith.constant 3.906250e-03 : f32
    %4 = vector.broadcast %cst_2 : f32 to vector<16x1xf32>
    %5 = arith.mulf %3, %4 : vector<16x1xf32>
    %c0_3 = arith.constant 0 : index
    %c0_4 = arith.constant 0 : index
    %6 = vector.load %arg14[%c0_3, %c0_4] : memref<16x2xf32, #tpu.memory_space<vmem>>, vector<16x1xf32>
    tpu.vector_store %arg14[%c0_3, %c0_4], %5 {strides = array<i32>} : memref<16x2xf32, #tpu.memory_space<vmem>>, vector<16x1xf32>,
    %c0_5 = arith.constant 0 : index
    %c0_6 = arith.constant 0 : index
    %7 = vector.load %arg2[%c0_5, %c0_6] : memref<1x324xf32, #tpu.memory_space<vmem>>, vector<1x324xf32>
    %8 = vector.broadcast %7 : vector<1x324xf32> to vector<16x324xf32>
    %9 = arith.addf %1, %8 : vector<16x324xf32>
    %cst_7 = arith.constant dense<0xFF800000> : vector<16xf32>
    %10 = vector.multi_reduction <maximumf>, %9, %cst_7 [1] : vector<16x324xf32> to vector<16xf32>
    %11 = vector.shape_cast %10 : vector<16xf32> to vector<16x1xf32>
    %c0_8 = arith.constant 0 : index
    %c1 = arith.constant 1 : index
    %12 = vector.load %arg14[%c0_8, %c1] : memref<16x2xf32, #tpu.memory_space<vmem>>, vector<16x1xf32>
    tpu.vector_store %arg14[%c0_8, %c1], %11 {strides = array<i32>} : memref<16x2xf32, #tpu.memory_space<vmem>>, vector<16x1xf32>,
    %c0_9 = arith.constant 0 : index
    %c0_10 = arith.constant 0 : index
    %13 = vector.load %arg3[%c0_9, %c0_10] : memref<4x16xf32, #tpu.memory_space<vmem>>, vector<4x16xf32>
    %c0_11 = arith.constant 0 : index
    %c0_12 = arith.constant 0 : index
    %14 = vector.load %arg14[%c0_11, %c0_12] : memref<16x2xf32, #tpu.memory_space<vmem>>, vector<16x2xf32>
    %cst_13 = arith.constant dense<0.000000e+00> : vector<4x2xf32>
    %15 = tpu.matmul %13, %14, %cst_13 {dimension_numbers = #tpu.dot_dimension_numbers<[1], [0], [0], [1], [0, 0, 1, 1], [], []>, precision = #tpu.contract_precision<fp32>} : vector<4x16xf32>, vector<16x2xf32>, vector<4x2xf32> -> vector<4x2xf32>
    %c0_14 = arith.constant 0 : index
    %c0_15 = arith.constant 0 : index
    %16 = vector.load %arg4[%c0_14, %c0_15] : memref<4x1xf32, #tpu.memory_space<vmem>>, vector<4x1xf32>
    %17 = vector.broadcast %16 : vector<4x1xf32> to vector<4x2xf32>
    %18 = arith.addf %15, %17 : vector<4x2xf32>
    %cst_16 = arith.constant 0.000000e+00 : f32
    %19 = vector.broadcast %cst_16 : f32 to vector<4x2xf32>
    %20 = arith.maximumf %18, %19 : vector<4x2xf32>
    %c0_17 = arith.constant 0 : index
    %c0_18 = arith.constant 0 : index
    %21 = vector.load %arg5[%c0_17, %c0_18] : memref<16x4xf32, #tpu.memory_space<vmem>>, vector<16x4xf32>
    %cst_19 = arith.constant dense<0.000000e+00> : vector<16x2xf32>
    %22 = tpu.matmul %21, %20, %cst_19 {dimension_numbers = #tpu.dot_dimension_numbers<[1], [0], [0], [1], [0, 0, 1, 1], [], []>, precision = #tpu.contract_precision<fp32>} : vector<16x4xf32>, vector<4x2xf32>, vector<16x2xf32> -> vector<16x2xf32>
    %c0_20 = arith.constant 0 : index
    %c0_21 = arith.constant 0 : index
    %23 = vector.load %arg6[%c0_20, %c0_21] : memref<16x1xf32, #tpu.memory_space<vmem>>, vector<16x1xf32>
    %24 = vector.broadcast %23 : vector<16x1xf32> to vector<16x2xf32>
    %25 = arith.addf %22, %24 : vector<16x2xf32>
    %26 = vector.extract_strided_slice %25 {offsets = [0, 0], sizes = [16, 1], strides = [1, 1]} : vector<16x2xf32> to vector<16x1xf32>
    %27 = vector.extract_strided_slice %25 {offsets = [0, 1], sizes = [16, 1], strides = [1, 1]} : vector<16x2xf32> to vector<16x1xf32>
    %28 = arith.addf %26, %27 : vector<16x1xf32>
    %cst_22 = arith.constant 0.000000e+00 : f32
    %29 = vector.broadcast %cst_22 : f32 to vector<16x1xf32>
    %30 = arith.subf %29, %28 : vector<16x1xf32>
    %31 = math.exp %30 : vector<16x1xf32>
    %cst_23 = arith.constant 1.000000e+00 : f32
    %32 = vector.broadcast %cst_23 : f32 to vector<16x1xf32>
    %33 = arith.addf %32, %31 : vector<16x1xf32>
    %cst_24 = arith.constant 1.000000e+00 : f32
    %34 = vector.broadcast %cst_24 : f32 to vector<16x1xf32>
    %35 = arith.divf %34, %33 : vector<16x1xf32>
    %36 = vector.broadcast %35 : vector<16x1xf32> to vector<16x324xf32>
    %37 = arith.mulf %1, %36 : vector<16x324xf32>
    %cst_25 = arith.constant dense<0.000000e+00> : vector<324xf32>
    %38 = vector.multi_reduction <add>, %37, %cst_25 [0] : vector<16x324xf32> to vector<324xf32>
    %39 = vector.shape_cast %38 : vector<324xf32> to vector<1x324xf32>
    %cst_26 = arith.constant 1.600000e+01 : f32
    %40 = vector.broadcast %cst_26 : f32 to vector<1x324xf32>
    %41 = arith.divf %39, %40 : vector<1x324xf32>
    %cst_27 = arith.constant dense<0xFF800000> : vector<324xf32>
    %42 = vector.multi_reduction <maximumf>, %37, %cst_27 [0] : vector<16x324xf32> to vector<324xf32>
    %43 = vector.shape_cast %42 : vector<324xf32> to vector<1x324xf32>
    %cst_28 = arith.constant 0.000000e+00 : f32
    %44 = vector.broadcast %cst_28 : f32 to vector<1x286xf32>
    %c0_29 = arith.constant 0 : index
    %45 = memref.load %arg7[%c0_29] : memref<18xf32, #tpu.memory_space<smem>>
    %46 = vector.extract_strided_slice %41 {offsets = [0, 0], sizes = [1, 286], strides = [1, 1]} : vector<1x324xf32> to vector<1x286xf32>
    %47 = vector.broadcast %45 : f32 to vector<1x286xf32>
    %48 = arith.mulf %47, %46 : vector<1x286xf32>
    %49 = arith.addf %44, %48 : vector<1x286xf32>
    %c9 = arith.constant 9 : index
    %50 = memref.load %arg7[%c9] : memref<18xf32, #tpu.memory_space<smem>>
    %51 = vector.extract_strided_slice %43 {offsets = [0, 0], sizes = [1, 286], strides = [1, 1]} : vector<1x324xf32> to vector<1x286xf32>
    %52 = vector.broadcast %50 : f32 to vector<1x286xf32>
    %53 = arith.mulf %52, %51 : vector<1x286xf32>
    %54 = arith.addf %49, %53 : vector<1x286xf32>
    %c1_30 = arith.constant 1 : index
    %55 = memref.load %arg7[%c1_30] : memref<18xf32, #tpu.memory_space<smem>>
    %56 = vector.extract_strided_slice %41 {offsets = [0, 1], sizes = [1, 286], strides = [1, 1]} : vector<1x324xf32> to vector<1x286xf32>
    %57 = vector.broadcast %55 : f32 to vector<1x286xf32>
    %58 = arith.mulf %57, %56 : vector<1x286xf32>
    %59 = arith.addf %54, %58 : vector<1x286xf32>
    %c10 = arith.constant 10 : index
    %60 = memref.load %arg7[%c10] : memref<18xf32, #tpu.memory_space<smem>>
    %61 = vector.extract_strided_slice %43 {offsets = [0, 1], sizes = [1, 286], strides = [1, 1]} : vector<1x324xf32> to vector<1x286xf32>
    %62 = vector.broadcast %60 : f32 to vector<1x286xf32>
    %63 = arith.mulf %62, %61 : vector<1x286xf32>
    %64 = arith.addf %59, %63 : vector<1x286xf32>
    %c2 = arith.constant 2 : index
    %65 = memref.load %arg7[%c2] : memref<18xf32, #tpu.memory_space<smem>>
    %66 = vector.extract_strided_slice %41 {offsets = [0, 2], sizes = [1, 286], strides = [1, 1]} : vector<1x324xf32> to vector<1x286xf32>
    %67 = vector.broadcast %65 : f32 to vector<1x286xf32>
    %68 = arith.mulf %67, %66 : vector<1x286xf32>
    %69 = arith.addf %64, %68 : vector<1x286xf32>
    %c11 = arith.constant 11 : index
    %70 = memref.load %arg7[%c11] : memref<18xf32, #tpu.memory_space<smem>>
    %71 = vector.extract_strided_slice %43 {offsets = [0, 2], sizes = [1, 286], strides = [1, 1]} : vector<1x324xf32> to vector<1x286xf32>
    %72 = vector.broadcast %70 : f32 to vector<1x286xf32>
    %73 = arith.mulf %72, %71 : vector<1x286xf32>
    %74 = arith.addf %69, %73 : vector<1x286xf32>
    %c3 = arith.constant 3 : index
    %75 = memref.load %arg7[%c3] : memref<18xf32, #tpu.memory_space<smem>>
    %76 = vector.extract_strided_slice %41 {offsets = [0, 18], sizes = [1, 286], strides = [1, 1]} : vector<1x324xf32> to vector<1x286xf32>
    %77 = vector.broadcast %75 : f32 to vector<1x286xf32>
    %78 = arith.mulf %77, %76 : vector<1x286xf32>
    %79 = arith.addf %74, %78 : vector<1x286xf32>
    %c12 = arith.constant 12 : index
    %80 = memref.load %arg7[%c12] : memref<18xf32, #tpu.memory_space<smem>>
    %81 = vector.extract_strided_slice %43 {offsets = [0, 18], sizes = [1, 286], strides = [1, 1]} : vector<1x324xf32> to vector<1x286xf32>
    %82 = vector.broadcast %80 : f32 to vector<1x286xf32>
    %83 = arith.mulf %82, %81 : vector<1x286xf32>
    %84 = arith.addf %79, %83 : vector<1x286xf32>
    %c4 = arith.constant 4 : index
    %85 = memref.load %arg7[%c4] : memref<18xf32, #tpu.memory_space<smem>>
    %86 = vector.extract_strided_slice %41 {offsets = [0, 19], sizes = [1, 286], strides = [1, 1]} : vector<1x324xf32> to vector<1x286xf32>
    %87 = vector.broadcast %85 : f32 to vector<1x286xf32>
    %88 = arith.mulf %87, %86 : vector<1x286xf32>
    %89 = arith.addf %84, %88 : vector<1x286xf32>
    %c13 = arith.constant 13 : index
    %90 = memref.load %arg7[%c13] : memref<18xf32, #tpu.memory_space<smem>>
    %91 = vector.extract_strided_slice %43 {offsets = [0, 19], sizes = [1, 286], strides = [1, 1]} : vector<1x324xf32> to vector<1x286xf32>
    %92 = vector.broadcast %90 : f32 to vector<1x286xf32>
    %93 = arith.mulf %92, %91 : vector<1x286xf32>
    %94 = arith.addf %89, %93 : vector<1x286xf32>
    %c5 = arith.constant 5 : index
    %95 = memref.load %arg7[%c5] : memref<18xf32, #tpu.memory_space<smem>>
    %96 = vector.extract_strided_slice %41 {offsets = [0, 20], sizes = [1, 286], strides = [1, 1]} : vector<1x324xf32> to vector<1x286xf32>
    %97 = vector.broadcast %95 : f32 to vector<1x286xf32>
    %98 = arith.mulf %97, %96 : vector<1x286xf32>
    %99 = arith.addf %94, %98 : vector<1x286xf32>
    %c14 = arith.constant 14 : index
    %100 = memref.load %arg7[%c14] : memref<18xf32, #tpu.memory_space<smem>>
    %101 = vector.extract_strided_slice %43 {offsets = [0, 20], sizes = [1, 286], strides = [1, 1]} : vector<1x324xf32> to vector<1x286xf32>
    %102 = vector.broadcast %100 : f32 to vector<1x286xf32>
    %103 = arith.mulf %102, %101 : vector<1x286xf32>
    %104 = arith.addf %99, %103 : vector<1x286xf32>
    %c6 = arith.constant 6 : index
    %105 = memref.load %arg7[%c6] : memref<18xf32, #tpu.memory_space<smem>>
    %106 = vector.extract_strided_slice %41 {offsets = [0, 36], sizes = [1, 286], strides = [1, 1]} : vector<1x324xf32> to vector<1x286xf32>
    %107 = vector.broadcast %105 : f32 to vector<1x286xf32>
    %108 = arith.mulf %107, %106 : vector<1x286xf32>
    %109 = arith.addf %104, %108 : vector<1x286xf32>
    %c15 = arith.constant 15 : index
    %110 = memref.load %arg7[%c15] : memref<18xf32, #tpu.memory_space<smem>>
    %111 = vector.extract_strided_slice %43 {offsets = [0, 36], sizes = [1, 286], strides = [1, 1]} : vector<1x324xf32> to vector<1x286xf32>
    %112 = vector.broadcast %110 : f32 to vector<1x286xf32>
    %113 = arith.mulf %112, %111 : vector<1x286xf32>
    %114 = arith.addf %109, %113 : vector<1x286xf32>
    %c7 = arith.constant 7 : index
    %115 = memref.load %arg7[%c7] : memref<18xf32, #tpu.memory_space<smem>>
    %116 = vector.extract_strided_slice %41 {offsets = [0, 37], sizes = [1, 286], strides = [1, 1]} : vector<1x324xf32> to vector<1x286xf32>
    %117 = vector.broadcast %115 : f32 to vector<1x286xf32>
    %118 = arith.mulf %117, %116 : vector<1x286xf32>
    %119 = arith.addf %114, %118 : vector<1x286xf32>
    %c16 = arith.constant 16 : index
    %120 = memref.load %arg7[%c16] : memref<18xf32, #tpu.memory_space<smem>>
    %121 = vector.extract_strided_slice %43 {offsets = [0, 37], sizes = [1, 286], strides = [1, 1]} : vector<1x324xf32> to vector<1x286xf32>
    %122 = vector.broadcast %120 : f32 to vector<1x286xf32>
    %123 = arith.mulf %122, %121 : vector<1x286xf32>
    %124 = arith.addf %119, %123 : vector<1x286xf32>
    %c8 = arith.constant 8 : index
    %125 = memref.load %arg7[%c8] : memref<18xf32, #tpu.memory_space<smem>>
    %126 = vector.extract_strided_slice %41 {offsets = [0, 38], sizes = [1, 286], strides = [1, 1]} : vector<1x324xf32> to vector<1x286xf32>
    %127 = vector.broadcast %125 : f32 to vector<1x286xf32>
    %128 = arith.mulf %127, %126 : vector<1x286xf32>
    %129 = arith.addf %124, %128 : vector<1x286xf32>
    %c17 = arith.constant 17 : index
    %130 = memref.load %arg7[%c17] : memref<18xf32, #tpu.memory_space<smem>>
    %131 = vector.extract_strided_slice %43 {offsets = [0, 38], sizes = [1, 286], strides = [1, 1]} : vector<1x324xf32> to vector<1x286xf32>
    %132 = vector.broadcast %130 : f32 to vector<1x286xf32>
    %133 = arith.mulf %132, %131 : vector<1x286xf32>
    %134 = arith.addf %129, %133 : vector<1x286xf32>
    %c0_31 = arith.constant 0 : index
    %135 = memref.load %arg8[%c0_31] : memref<1xf32, #tpu.memory_space<smem>>
    %136 = vector.broadcast %135 : f32 to vector<1x286xf32>
    %137 = arith.addf %134, %136 : vector<1x286xf32>
    %cst_32 = arith.constant 0.000000e+00 : f32
    %138 = vector.broadcast %cst_32 : f32 to vector<1x286xf32>
    %139 = arith.subf %138, %137 : vector<1x286xf32>
    %140 = math.exp %139 : vector<1x286xf32>
    %cst_33 = arith.constant 1.000000e+00 : f32
    %141 = vector.broadcast %cst_33 : f32 to vector<1x286xf32>
    %142 = arith.addf %141, %140 : vector<1x286xf32>
    %cst_34 = arith.constant 1.000000e+00 : f32
    %143 = vector.broadcast %cst_34 : f32 to vector<1x286xf32>
    %144 = arith.divf %143, %142 : vector<1x286xf32>
    %cst_35 = arith.constant 0.000000e+00 : f32
    %145 = vector.broadcast %cst_35 : f32 to vector<16x19xf32>
    %c0_36 = arith.constant 0 : index
    %c0_37 = arith.constant 0 : index
    %146 = vector.load %arg15[%c0_36, %c0_37] : memref<16x324xf32, #tpu.memory_space<vmem>>, vector<16x19xf32>
    tpu.vector_store %arg15[%c0_36, %c0_37], %145 {strides = array<i32>} : memref<16x324xf32, #tpu.memory_space<vmem>>, vector<16x19xf32>,
    %cst_38 = arith.constant 0.000000e+00 : f32
    %147 = vector.broadcast %cst_38 : f32 to vector<16x19xf32>
    %c0_39 = arith.constant 0 : index
    %c305 = arith.constant 305 : index
    %148 = vector.load %arg15[%c0_39, %c305] : memref<16x324xf32, #tpu.memory_space<vmem>>, vector<16x19xf32>
    tpu.vector_store %arg15[%c0_39, %c305], %147 {strides = array<i32>} : memref<16x324xf32, #tpu.memory_space<vmem>>, vector<16x19xf32>,
    %149 = vector.extract_strided_slice %37 {offsets = [0, 19], sizes = [16, 286], strides = [1, 1]} : vector<16x324xf32> to vector<16x286xf32>
    %150 = vector.broadcast %144 : vector<1x286xf32> to vector<16x286xf32>
    %151 = arith.mulf %149, %150 : vector<16x286xf32>
    %c0_40 = arith.constant 0 : index
    %c19 = arith.constant 19 : index
    %152 = vector.load %arg15[%c0_40, %c19] : memref<16x324xf32, #tpu.memory_space<vmem>>, vector<16x286xf32>
    tpu.vector_store %arg15[%c0_40, %c19], %151 {strides = array<i32>} : memref<16x324xf32, #tpu.memory_space<vmem>>, vector<16x286xf32>,
    %c0_41 = arith.constant 0 : index
    %c0_42 = arith.constant 0 : index
    %153 = vector.load %arg15[%c0_41, %c0_42] : memref<16x324xf32, #tpu.memory_space<vmem>>, vector<16x286xf32>
    %154 = arith.truncf %153 : vector<16x286xf32> to vector<16x286xbf16>
    %c0_43 = arith.constant 0 : index
    %c0_44 = arith.constant 0 : index
    %155 = vector.load %arg16[%c0_43, %c0_44] : memref<144x286xbf16, #tpu.memory_space<vmem>>, vector<16x286xbf16>
    tpu.vector_store %arg16[%c0_43, %c0_44], %154 {strides = array<i32>} : memref<144x286xbf16, #tpu.memory_space<vmem>>, vector<16x286xbf16>,
    %c0_45 = arith.constant 0 : index
    %c1_46 = arith.constant 1 : index
    %156 = vector.load %arg15[%c0_45, %c1_46] : memref<16x324xf32, #tpu.memory_space<vmem>>, vector<16x286xf32>
    %157 = arith.truncf %156 : vector<16x286xf32> to vector<16x286xbf16>
    %c16_47 = arith.constant 16 : index
    %c0_48 = arith.constant 0 : index
    %158 = vector.load %arg16[%c16_47, %c0_48] : memref<144x286xbf16, #tpu.memory_space<vmem>>, vector<16x286xbf16>
    tpu.vector_store %arg16[%c16_47, %c0_48], %157 {strides = array<i32>} : memref<144x286xbf16, #tpu.memory_space<vmem>>, vector<16x286xbf16>,
    %c0_49 = arith.constant 0 : index
    %c2_50 = arith.constant 2 : index
    %159 = vector.load %arg15[%c0_49, %c2_50] : memref<16x324xf32, #tpu.memory_space<vmem>>, vector<16x286xf32>
    %160 = arith.truncf %159 : vector<16x286xf32> to vector<16x286xbf16>
    %c32 = arith.constant 32 : index
    %c0_51 = arith.constant 0 : index
    %161 = vector.load %arg16[%c32, %c0_51] : memref<144x286xbf16, #tpu.memory_space<vmem>>, vector<16x286xbf16>
    tpu.vector_store %arg16[%c32, %c0_51], %160 {strides = array<i32>} : memref<144x286xbf16, #tpu.memory_space<vmem>>, vector<16x286xbf16>,
    %c0_52 = arith.constant 0 : index
    %c18 = arith.constant 18 : index
    %162 = vector.load %arg15[%c0_52, %c18] : memref<16x324xf32, #tpu.memory_space<vmem>>, vector<16x286xf32>
    %163 = arith.truncf %162 : vector<16x286xf32> to vector<16x286xbf16>
    %c48 = arith.constant 48 : index
    %c0_53 = arith.constant 0 : index
    %164 = vector.load %arg16[%c48, %c0_53] : memref<144x286xbf16, #tpu.memory_space<vmem>>, vector<16x286xbf16>
    tpu.vector_store %arg16[%c48, %c0_53], %163 {strides = array<i32>} : memref<144x286xbf16, #tpu.memory_space<vmem>>, vector<16x286xbf16>,
    %c0_54 = arith.constant 0 : index
    %c19_55 = arith.constant 19 : index
    %165 = vector.load %arg15[%c0_54, %c19_55] : memref<16x324xf32, #tpu.memory_space<vmem>>, vector<16x286xf32>
    %166 = arith.truncf %165 : vector<16x286xf32> to vector<16x286xbf16>
    %c64 = arith.constant 64 : index
    %c0_56 = arith.constant 0 : index
    %167 = vector.load %arg16[%c64, %c0_56] : memref<144x286xbf16, #tpu.memory_space<vmem>>, vector<16x286xbf16>
    tpu.vector_store %arg16[%c64, %c0_56], %166 {strides = array<i32>} : memref<144x286xbf16, #tpu.memory_space<vmem>>, vector<16x286xbf16>,
    %c0_57 = arith.constant 0 : index
    %c20 = arith.constant 20 : index
    %168 = vector.load %arg15[%c0_57, %c20] : memref<16x324xf32, #tpu.memory_space<vmem>>, vector<16x286xf32>
    %169 = arith.truncf %168 : vector<16x286xf32> to vector<16x286xbf16>
    %c80 = arith.constant 80 : index
    %c0_58 = arith.constant 0 : index
    %170 = vector.load %arg16[%c80, %c0_58] : memref<144x286xbf16, #tpu.memory_space<vmem>>, vector<16x286xbf16>
    tpu.vector_store %arg16[%c80, %c0_58], %169 {strides = array<i32>} : memref<144x286xbf16, #tpu.memory_space<vmem>>, vector<16x286xbf16>,
    %c0_59 = arith.constant 0 : index
    %c36 = arith.constant 36 : index
    %171 = vector.load %arg15[%c0_59, %c36] : memref<16x324xf32, #tpu.memory_space<vmem>>, vector<16x286xf32>
    %172 = arith.truncf %171 : vector<16x286xf32> to vector<16x286xbf16>
    %c96 = arith.constant 96 : index
    %c0_60 = arith.constant 0 : index
    %173 = vector.load %arg16[%c96, %c0_60] : memref<144x286xbf16, #tpu.memory_space<vmem>>, vector<16x286xbf16>
    tpu.vector_store %arg16[%c96, %c0_60], %172 {strides = array<i32>} : memref<144x286xbf16, #tpu.memory_space<vmem>>, vector<16x286xbf16>,
    %c0_61 = arith.constant 0 : index
    %c37 = arith.constant 37 : index
    %174 = vector.load %arg15[%c0_61, %c37] : memref<16x324xf32, #tpu.memory_space<vmem>>, vector<16x286xf32>
    %175 = arith.truncf %174 : vector<16x286xf32> to vector<16x286xbf16>
    %c112 = arith.constant 112 : index
    %c0_62 = arith.constant 0 : index
    %176 = vector.load %arg16[%c112, %c0_62] : memref<144x286xbf16, #tpu.memory_space<vmem>>, vector<16x286xbf16>
    tpu.vector_store %arg16[%c112, %c0_62], %175 {strides = array<i32>} : memref<144x286xbf16, #tpu.memory_space<vmem>>, vector<16x286xbf16>,
    %c0_63 = arith.constant 0 : index
    %c38 = arith.constant 38 : index
    %177 = vector.load %arg15[%c0_63, %c38] : memref<16x324xf32, #tpu.memory_space<vmem>>, vector<16x286xf32>
    %178 = arith.truncf %177 : vector<16x286xf32> to vector<16x286xbf16>
    %c128 = arith.constant 128 : index
    %c0_64 = arith.constant 0 : index
    %179 = vector.load %arg16[%c128, %c0_64] : memref<144x286xbf16, #tpu.memory_space<vmem>>, vector<16x286xbf16>
    tpu.vector_store %arg16[%c128, %c0_64], %178 {strides = array<i32>} : memref<144x286xbf16, #tpu.memory_space<vmem>>, vector<16x286xbf16>,
    %c0_65 = arith.constant 0 : index
    %c0_66 = arith.constant 0 : index
    %180 = vector.load %arg9[%c0_65, %c0_66] : memref<32x144xbf16, #tpu.memory_space<vmem>>, vector<32x144xbf16>
    %c0_67 = arith.constant 0 : index
    %c0_68 = arith.constant 0 : index
    %181 = vector.load %arg16[%c0_67, %c0_68] : memref<144x286xbf16, #tpu.memory_space<vmem>>, vector<144x286xbf16>
    %cst_69 = arith.constant dense<0.000000e+00> : vector<32x286xf32>
    %182 = tpu.matmul %180, %181, %cst_69 {dimension_numbers = #tpu.dot_dimension_numbers<[1], [0], [0], [1], [0, 0, 1, 1], [], []>} : vector<32x144xbf16>, vector<144x286xbf16>, vector<32x286xf32> -> vector<32x286xf32>
    %c0_70 = arith.constant 0 : index
    %c0_71 = arith.constant 0 : index
    %c0_72 = arith.constant 0 : index
    %183 = vector.load %arg11[%c0_70, %c0_71, %c0_72] : memref<1x32x286xf32, #tpu.memory_space<vmem>>, vector<1x32x286xf32>
    %184 = vector.shape_cast %183 : vector<1x32x286xf32> to vector<32x286xf32>
    %185 = vector.shape_cast %182 : vector<32x286xf32> to vector<1x32x286xf32>
    tpu.vector_store %arg11[%c0_70, %c0_71, %c0_72], %185 {strides = array<i32>} : memref<1x32x286xf32, #tpu.memory_space<vmem>>, vector<1x32x286xf32>,
    %c0_73 = arith.constant 0 : index
    %c0_74 = arith.constant 0 : index
    %186 = vector.load %arg10[%c0_73, %c0_74] : memref<1x286xf32, #tpu.memory_space<vmem>>, vector<1x286xf32>
    %187 = vector.broadcast %186 : vector<1x286xf32> to vector<32x286xf32>
    %188 = arith.mulf %182, %187 : vector<32x286xf32>
    %cst_75 = arith.constant dense<0.000000e+00> : vector<32xf32>
    %189 = vector.multi_reduction <add>, %188, %cst_75 [1] : vector<32x286xf32> to vector<32xf32>
    %190 = vector.shape_cast %189 : vector<32xf32> to vector<32x1xf32>
    %c0_76 = arith.constant 0 : index
    %c0_77 = arith.constant 0 : index
    %c0_78 = arith.constant 0 : index
    %191 = vector.load %arg12[%c0_76, %c0_77, %c0_78] : memref<1x32x1xf32, #tpu.memory_space<vmem>>, vector<1x32x1xf32>
    %192 = vector.shape_cast %191 : vector<1x32x1xf32> to vector<32x1xf32>
    %193 = vector.shape_cast %190 : vector<32x1xf32> to vector<1x32x1xf32>
    tpu.vector_store %arg12[%c0_76, %c0_77, %c0_78], %193 {strides = array<i32>} : memref<1x32x1xf32, #tpu.memory_space<vmem>>, vector<1x32x1xf32>,
    %194 = arith.mulf %188, %188 : vector<32x286xf32>
    %cst_79 = arith.constant dense<0.000000e+00> : vector<32xf32>
    %195 = vector.multi_reduction <add>, %194, %cst_79 [1] : vector<32x286xf32> to vector<32xf32>
    %196 = vector.shape_cast %195 : vector<32xf32> to vector<32x1xf32>
    %c0_80 = arith.constant 0 : index
    %c0_81 = arith.constant 0 : index
    %c0_82 = arith.constant 0 : index
    %197 = vector.load %arg13[%c0_80, %c0_81, %c0_82] : memref<1x32x1xf32, #tpu.memory_space<vmem>>, vector<1x32x1xf32>
    %198 = vector.shape_cast %197 : vector<1x32x1xf32> to vector<32x1xf32>
    %199 = vector.shape_cast %196 : vector<32x1xf32> to vector<1x32x1xf32>
    tpu.vector_store %arg13[%c0_80, %c0_81, %c0_82], %199 {strides = array<i32>} : memref<1x32x1xf32, #tpu.memory_space<vmem>>, vector<1x32x1xf32>,
    return
  }
  func.func @transform_0(%arg0: i32) -> (i32, i32, i32) {
    %c0_i32 = arith.constant 0 : i32
    %c0_i32_0 = arith.constant 0 : i32
    %c0_i32_1 = arith.constant 0 : i32
    return %arg0, %c0_i32, %c0_i32_0 : i32, i32, i32
  }
  func.func @transform_1(%arg0: i32) -> (i32, i32) {
    %c0_i32 = arith.constant 0 : i32
    %c0_i32_0 = arith.constant 0 : i32
    %c0_i32_1 = arith.constant 0 : i32
    return %c0_i32, %c0_i32_0 : i32, i32
  }
  func.func @transform_2(%arg0: i32) -> (i32, i32) {
    %c0_i32 = arith.constant 0 : i32
    %c0_i32_0 = arith.constant 0 : i32
    %c0_i32_1 = arith.constant 0 : i32
    return %c0_i32, %c0_i32_0 : i32, i32
  }
  func.func @transform_3(%arg0: i32) -> (i32, i32) {
    %c0_i32 = arith.constant 0 : i32
    %c0_i32_0 = arith.constant 0 : i32
    %c0_i32_1 = arith.constant 0 : i32
    return %c0_i32, %c0_i32_0 : i32, i32
  }
  func.func @transform_4(%arg0: i32) -> (i32, i32) {
    %c0_i32 = arith.constant 0 : i32
    %c0_i32_0 = arith.constant 0 : i32
    %c0_i32_1 = arith.constant 0 : i32
    return %c0_i32, %c0_i32_0 : i32, i32
  }
  func.func @transform_5(%arg0: i32) -> (i32, i32) {
    %c0_i32 = arith.constant 0 : i32
    %c0_i32_0 = arith.constant 0 : i32
    %c0_i32_1 = arith.constant 0 : i32
    return %c0_i32, %c0_i32_0 : i32, i32
  }
  func.func @transform_6(%arg0: i32) -> i32 {
    %c0_i32 = arith.constant 0 : i32
    %c0_i32_0 = arith.constant 0 : i32
    return %c0_i32 : i32
  }
  func.func @transform_7(%arg0: i32) -> i32 {
    %c0_i32 = arith.constant 0 : i32
    %c0_i32_0 = arith.constant 0 : i32
    return %c0_i32 : i32
  }
  func.func @transform_8(%arg0: i32) -> (i32, i32) {
    %c0_i32 = arith.constant 0 : i32
    %c0_i32_0 = arith.constant 0 : i32
    %c0_i32_1 = arith.constant 0 : i32
    return %c0_i32, %c0_i32_0 : i32, i32
  }
  func.func @transform_9(%arg0: i32) -> (i32, i32) {
    %c0_i32 = arith.constant 0 : i32
    %c0_i32_0 = arith.constant 0 : i32
    %c0_i32_1 = arith.constant 0 : i32
    return %c0_i32, %c0_i32_0 : i32, i32
  }
  func.func @transform_10(%arg0: i32) -> (i32, i32, i32) {
    %c0_i32 = arith.constant 0 : i32
    %c0_i32_0 = arith.constant 0 : i32
    %c0_i32_1 = arith.constant 0 : i32
    return %arg0, %c0_i32, %c0_i32_0 : i32, i32, i32
  }
  func.func @transform_11(%arg0: i32) -> (i32, i32, i32) {
    %c0_i32 = arith.constant 0 : i32
    %c0_i32_0 = arith.constant 0 : i32
    %c0_i32_1 = arith.constant 0 : i32
    return %arg0, %c0_i32, %c0_i32_0 : i32, i32, i32
  }
  func.func @transform_12(%arg0: i32) -> (i32, i32, i32) {
    %c0_i32 = arith.constant 0 : i32
    %c0_i32_0 = arith.constant 0 : i32
    %c0_i32_1 = arith.constant 0 : i32
    return %arg0, %c0_i32, %c0_i32_0 : i32, i32, i32
  }
}

</mosaic_0001>

<llo_original>
// kernel: tpu_custom_call.1
$region0: #{tpu_custom_call.1}
  #allocation0 [shape = 'u32[]', space=smem, size = 0x4, offset = 0x4, fixed_abs, tag = 'smem constant byte address 0x4 - core index']
  #allocation1 [shape = 'u32[144,128]{1,0:T(1,128)}', space=vmem, size = 0x12000, scoped, tag = 'internal scratch']
  #allocation2 [shape = 'f32[16,2]{1,0:T(8,128)}', space=vmem, size = 0x2000, scoped, tag = 'scratch operand']
  #allocation3 [shape = 'f32[16,324]{1,0:T(8,128)}', space=vmem, size = 0x6000, scoped, tag = 'scratch operand']
  #allocation4 [shape = 'bf16[144,286]{1,0:T(8,128)(2,1)}', space=vmem, size = 0x1b000, scoped, tag = 'scratch operand']
  #allocation5 [shape = 'f32[1]{0:T(128)S(6)}', space=smem, size = 0x200, scoped, tag = 'scoped memory for tpu_custom_call.1']
  %s0 = inlined_call_operand.hbm [shape: f32[2,16,324], index: 0, kind: input, shape index: {}]
  %s1 = inlined_call_operand.vmem [shape: f32[1,324], index: 1, kind: input, shape index: {}]
  %s2 = inlined_call_operand.vmem [shape: f32[4,16], index: 2, kind: input, shape index: {}]
  %s3 = inlined_call_operand.vmem [shape: f32[4,1], index: 3, kind: input, shape index: {}]
  %s4 = inlined_call_operand.vmem [shape: f32[16,4], index: 4, kind: input, shape index: {}]
  %s5 = inlined_call_operand.vmem [shape: f32[16,1], index: 5, kind: input, shape index: {}]
  %s6 = inlined_call_operand.vmem [shape: f32[18], index: 6, kind: input, shape index: {}]
  %s7 = inlined_call_operand.<no memory space> [shape: f32[1], index: 7, kind: input, shape index: {}]
  %s8 = inlined_call_operand.vmem [shape: bf16[32,144], index: 8, kind: input, shape index: {}]
  %s9 = inlined_call_operand.vmem [shape: f32[1,286], index: 9, kind: input, shape index: {}]
  %s10 = inlined_call_operand.hbm [shape: f32[2,32,286], index: 10, kind: output, shape index: {0}]
  %s11 = inlined_call_operand.vmem [shape: f32[2,32,1], index: 11, kind: output, shape index: {1}]
  %s12 = inlined_call_operand.vmem [shape: f32[2,32,1], index: 12, kind: output, shape index: {2}]
  %13 = xla_tuple %s10, %s11, %s12
  %s14 = sld [smem:[#allocation0]]
  $region97: #{tpu_custom_call.1} parent=0
    _
  %s16 = ssub.s32 1, %s14
  %s17 = scalar_select 0, %s16, %s14
  %18 = sst [smem:[#allocation5]] %s7
  $region1: #{tpu_custom_call.1} parent=0
    #allocation6 [shape = 'u8[49152]{0}', space=vmem, size = 0xc000, scoped, tag = 'input window, operand 0']
    #allocation7 [shape = 's32[2]{0}', space=sflag, size = 0x8, scoped, tag = 'scoped memory for tpu_custom_call.1']
    #allocation8 [shape = 's32[2]{0}', space=sflag, size = 0x8, scoped, tag = 'scoped memory for tpu_custom_call.1']
    #allocation9 [shape = 's32[2]{0}', space=sflag, size = 0x8, scoped, tag = 'scoped memory for tpu_custom_call.1']
    #allocation10 [shape = 'u8[512]{0}', space=smem, size = 0x200, scoped, tag = 'input window, operand 6, single buffered']
    #allocation11 [shape = 'u8[98304]{0}', space=vmem, size = 0x18000, scoped, tag = 'output window, operand 0']
    %19 = vsyncpa [#allocation7], 0
    %s20 = scalar_lea.sflag [#allocation7], 1
    %21 = vsyncpa %s20, 0
    %22 = vsyncpa [#allocation9], 0
    %23 = vsyncpa [#allocation8], 0
    %s24 = scalar_lea.sflag [#allocation8], 1
    %25 = vsyncpa %s24, 0
    loop: start=0, step=1, limit=4
    $region2: #{tpu_custom_call.1} parent=1 // loop_pre_header
      _
    $region3: #{tpu_custom_call.1} parent=1 // loop_header
      %s27 = sphi 0, %s31
      %p28 = scmp.ge.s32.totalorder %s27, 4
      %s37 = sphi 0, %s39
      %s40 = sphi 0, %s37
      %s41 = sphi 0, %s40
      %s57 = sphi 0, %s41
      %s61 = sphi 0, %s61
      %s63 = sphi 0, %s61
      %s64 = sphi 0, %s63
      %s78 = sphi 0, %s64
      %s82 = sphi 0, %s82
      %s84 = sphi 0, %s82
      %s85 = sphi 0, %s84
      %s99 = sphi 0, %s85
      %s103 = sphi 0, %s103
      %s105 = sphi 0, %s103
      %s106 = sphi 0, %s105
      %s120 = sphi 0, %s106
      %s124 = sphi 0, %s124
      %s126 = sphi 0, %s124
      %s127 = sphi 0, %s126
      %s141 = sphi 0, %s127
      %s145 = sphi 0, %s145
      %s147 = sphi 0, %s145
      %s148 = sphi 0, %s147
      %s162 = sphi 0, %s148
      %s166 = sphi 0, %s166
      %s168 = sphi 0, %s166
      %s169 = sphi 0, %s168
      %s183 = sphi 0, %s169
      %s187 = sphi 0, %s187
      %s189 = sphi 0, %s187
      %s190 = sphi 0, %s189
      %s204 = sphi 0, %s190
      %s208 = sphi 0, %s208
      %s210 = sphi 0, %s208
      %s211 = sphi 0, %s210
      %s225 = sphi 0, %s211
      %s229 = sphi 0, %s229
      %s231 = sphi 0, %s229
      %s232 = sphi 0, %s231
      %s246 = sphi 0, %s232
      %s252 = sphi 0, %s254
      %s255 = sphi 0, %s252
      %s256 = sphi 0, %s255
      %s272 = sphi 0, %s256
      %s278 = sphi 0, %s280
      %s281 = sphi 0, %s278
      %s282 = sphi 0, %s281
      %s298 = sphi 0, %s282
      %s304 = sphi 0, %s306
      %s307 = sphi 0, %s304
      %s308 = sphi 0, %s307
      %s324 = sphi 0, %s308
    $region4: #{tpu_custom_call.1} parent=1 // loop_header_branch
      %30 = sbr.rel (%p28) target = $region8
    $region5: #{tpu_custom_call.1} parent=1 // loop_body
      %s32 = ssub.s32 %s27, 1
      %s33 = ssub.s32 %s27, 2
      %s34 = sadd.s32 %s27, 1
      %s35 = ssub.s32 %s27, %s34
      %p36 = scmp.eq.s32.totalorder %s35, 0
      %s38 = sadd.s32 %s37, 1
      %s39 = scalar_select %p36, %s37, %s38
      %p42 = pneg %p36
      %p43 = scmp.eq.s32.totalorder %s27, 1
      %p44 = por %p42, %p43
      %p45 = scmp.ne.s32.totalorder %s37, %s40
      %p46 = scmp.eq.s32.totalorder %s27, 0
      %p47 = por %p45, %p46
      %p48 = scmp.ne.s32.totalorder %s37, %s40
      %p49 = scmp.eq.s32.totalorder %s32, 1
      %p50 = por %p48, %p49
      %p51 = scmp.ne.s32.totalorder %s40, %s41
      %p52 = scmp.eq.s32.totalorder %s32, 0
      %p53 = por %p51, %p52
      %p54 = scmp.ne.s32.totalorder %s40, %s41
      %p55 = scmp.eq.s32.totalorder %s33, 1
      %p56 = por %p54, %p55
      %p58 = scmp.ne.s32.totalorder %s41, %s57
      %p59 = scmp.eq.s32.totalorder %s33, 0
      %p60 = por %p58, %p59
      %s62 = sadd.s32 %s61, 1
      %p65 = scmp.eq.s32.totalorder %s27, 1
      %p66 = scmp.ne.s32.totalorder %s61, %s63
      %p67 = scmp.eq.s32.totalorder %s27, 0
      %p68 = por %p66, %p67
      %p69 = scmp.ne.s32.totalorder %s61, %s63
      %p70 = scmp.eq.s32.totalorder %s32, 1
      %p71 = por %p69, %p70
      %p72 = scmp.ne.s32.totalorder %s63, %s64
      %p73 = scmp.eq.s32.totalorder %s32, 0
      %p74 = por %p72, %p73
      %p75 = scmp.ne.s32.totalorder %s63, %s64
      %p76 = scmp.eq.s32.totalorder %s33, 1
      %p77 = por %p75, %p76
      %p79 = scmp.ne.s32.totalorder %s64, %s78
      %p80 = scmp.eq.s32.totalorder %s33, 0
      %p81 = por %p79, %p80
      %s83 = sadd.s32 %s82, 1
      %p86 = scmp.eq.s32.totalorder %s27, 1
      %p87 = scmp.ne.s32.totalorder %s82, %s84
      %p88 = scmp.eq.s32.totalorder %s27, 0
      %p89 = por %p87, %p88
      %p90 = scmp.ne.s32.totalorder %s82, %s84
      %p91 = scmp.eq.s32.totalorder %s32, 1
      %p92 = por %p90, %p91
      %p93 = scmp.ne.s32.totalorder %s84, %s85
      %p94 = scmp.eq.s32.totalorder %s32, 0
      %p95 = por %p93, %p94
      %p96 = scmp.ne.s32.totalorder %s84, %s85
      %p97 = scmp.eq.s32.totalorder %s33, 1
      %p98 = por %p96, %p97
      %p100 = scmp.ne.s32.totalorder %s85, %s99
      %p101 = scmp.eq.s32.totalorder %s33, 0
      %p102 = por %p100, %p101
      %s104 = sadd.s32 %s103, 1
      %p107 = scmp.eq.s32.totalorder %s27, 1
      %p108 = scmp.ne.s32.totalorder %s103, %s105
      %p109 = scmp.eq.s32.totalorder %s27, 0
      %p110 = por %p108, %p109
      %p111 = scmp.ne.s32.totalorder %s103, %s105
      %p112 = scmp.eq.s32.totalorder %s32, 1
      %p113 = por %p111, %p112
      %p114 = scmp.ne.s32.totalorder %s105, %s106
      %p115 = scmp.eq.s32.totalorder %s32, 0
      %p116 = por %p114, %p115
      %p117 = scmp.ne.s32.totalorder %s105, %s106
      %p118 = scmp.eq.s32.totalorder %s33, 1
      %p119 = por %p117, %p118
      %p121 = scmp.ne.s32.totalorder %s106, %s120
      %p122 = scmp.eq.s32.totalorder %s33, 0
      %p123 = por %p121, %p122
      %s125 = sadd.s32 %s124, 1
      %p128 = scmp.eq.s32.totalorder %s27, 1
      %p129 = scmp.ne.s32.totalorder %s124, %s126
      %p130 = scmp.eq.s32.totalorder %s27, 0
      %p131 = por %p129, %p130
      %p132 = scmp.ne.s32.totalorder %s124, %s126
      %p133 = scmp.eq.s32.totalorder %s32, 1
      %p134 = por %p132, %p133
      %p135 = scmp.ne.s32.totalorder %s126, %s127
      %p136 = scmp.eq.s32.totalorder %s32, 0
      %p137 = por %p135, %p136
      %p138 = scmp.ne.s32.totalorder %s126, %s127
      %p139 = scmp.eq.s32.totalorder %s33, 1
      %p140 = por %p138, %p139
      %p142 = scmp.ne.s32.totalorder %s127, %s141
      %p143 = scmp.eq.s32.totalorder %s33, 0
      %p144 = por %p142, %p143
      %s146 = sadd.s32 %s145, 1
      %p149 = scmp.eq.s32.totalorder %s27, 1
      %p150 = scmp.ne.s32.totalorder %s145, %s147
      %p151 = scmp.eq.s32.totalorder %s27, 0
      %p152 = por %p150, %p151
      %p153 = scmp.ne.s32.totalorder %s145, %s147
      %p154 = scmp.eq.s32.totalorder %s32, 1
      %p155 = por %p153, %p154
      %p156 = scmp.ne.s32.totalorder %s147, %s148
      %p157 = scmp.eq.s32.totalorder %s32, 0
      %p158 = por %p156, %p157
      %p159 = scmp.ne.s32.totalorder %s147, %s148
      %p160 = scmp.eq.s32.totalorder %s33, 1
      %p161 = por %p159, %p160
      %p163 = scmp.ne.s32.totalorder %s148, %s162
      %p164 = scmp.eq.s32.totalorder %s33, 0
      %p165 = por %p163, %p164
      %s167 = sadd.s32 %s166, 1
      %p170 = scmp.eq.s32.totalorder %s27, 1
      %p171 = scmp.ne.s32.totalorder %s166, %s168
      %p172 = scmp.eq.s32.totalorder %s27, 0
      %p173 = por %p171, %p172
      %p174 = scmp.ne.s32.totalorder %s166, %s168
      %p175 = scmp.eq.s32.totalorder %s32, 1
      %p176 = por %p174, %p175
      %p177 = scmp.ne.s32.totalorder %s168, %s169
      %p178 = scmp.eq.s32.totalorder %s32, 0
      %p179 = por %p177, %p178
      %p180 = scmp.ne.s32.totalorder %s168, %s169
      %p181 = scmp.eq.s32.totalorder %s33, 1
      %p182 = por %p180, %p181
      %p184 = scmp.ne.s32.totalorder %s169, %s183
      %p185 = scmp.eq.s32.totalorder %s33, 0
      %p186 = por %p184, %p185
      %s188 = sadd.s32 %s187, 1
      %p191 = scmp.eq.s32.totalorder %s27, 1
      %p192 = scmp.ne.s32.totalorder %s187, %s189
      %p193 = scmp.eq.s32.totalorder %s27, 0
      %p194 = por %p192, %p193
      %p195 = scmp.ne.s32.totalorder %s187, %s189
      %p196 = scmp.eq.s32.totalorder %s32, 1
      %p197 = por %p195, %p196
      %p198 = scmp.ne.s32.totalorder %s189, %s190
      %p199 = scmp.eq.s32.totalorder %s32, 0
      %p200 = por %p198, %p199
      %p201 = scmp.ne.s32.totalorder %s189, %s190
      %p202 = scmp.eq.s32.totalorder %s33, 1
      %p203 = por %p201, %p202
      %p205 = scmp.ne.s32.totalorder %s190, %s204
      %p206 = scmp.eq.s32.totalorder %s33, 0
      %p207 = por %p205, %p206
      %s209 = sadd.s32 %s208, 1
      %p212 = scmp.eq.s32.totalorder %s27, 1
      %p213 = scmp.ne.s32.totalorder %s208, %s210
      %p214 = scmp.eq.s32.totalorder %s27, 0
      %p215 = por %p213, %p214
      %p216 = scmp.ne.s32.totalorder %s208, %s210
      %p217 = scmp.eq.s32.totalorder %s32, 1
      %p218 = por %p216, %p217
      %p219 = scmp.ne.s32.totalorder %s210, %s211
      %p220 = scmp.eq.s32.totalorder %s32, 0
      %p221 = por %p219, %p220
      %p222 = scmp.ne.s32.totalorder %s210, %s211
      %p223 = scmp.eq.s32.totalorder %s33, 1
      %p224 = por %p222, %p223
      %p226 = scmp.ne.s32.totalorder %s211, %s225
      %p227 = scmp.eq.s32.totalorder %s33, 0
      %p228 = por %p226, %p227
      %s230 = sadd.s32 %s229, 1
      %p233 = scmp.eq.s32.totalorder %s27, 1
      %p234 = scmp.ne.s32.totalorder %s229, %s231
      %p235 = scmp.eq.s32.totalorder %s27, 0
      %p236 = por %p234, %p235
      %p237 = scmp.ne.s32.totalorder %s229, %s231
      %p238 = scmp.eq.s32.totalorder %s32, 1
      %p239 = por %p237, %p238
      %p240 = scmp.ne.s32.totalorder %s231, %s232
      %p241 = scmp.eq.s32.totalorder %s32, 0
      %p242 = por %p240, %p241
      %p243 = scmp.ne.s32.totalorder %s231, %s232
      %p244 = scmp.eq.s32.totalorder %s33, 1
      %p245 = por %p243, %p244
      %p247 = scmp.ne.s32.totalorder %s232, %s246
      %p248 = scmp.eq.s32.totalorder %s33, 0
      %p249 = por %p247, %p248
      %s250 = ssub.s32 %s27, %s34
      %p251 = scmp.eq.s32.totalorder %s250, 0
      %s253 = sadd.s32 %s252, 1
      %s254 = scalar_select %p251, %s252, %s253
      %p257 = pneg %p251
      %p258 = scmp.eq.s32.totalorder %s27, 1
      %p259 = por %p257, %p258
      %p260 = scmp.ne.s32.totalorder %s252, %s255
      %p261 = scmp.eq.s32.totalorder %s27, 0
      %p262 = por %p260, %p261
      %p263 = scmp.ne.s32.totalorder %s252, %s255
      %p264 = scmp.eq.s32.totalorder %s32, 1
      %p265 = por %p263, %p264
      %p266 = scmp.ne.s32.totalorder %s255, %s256
      %p267 = scmp.eq.s32.totalorder %s32, 0
      %p268 = por %p266, %p267
      %p269 = scmp.ne.s32.totalorder %s255, %s256
      %p270 = scmp.eq.s32.totalorder %s33, 1
      %p271 = por %p269, %p270
      %p273 = scmp.ne.s32.totalorder %s256, %s272
      %p274 = scmp.eq.s32.totalorder %s33, 0
      %p275 = por %p273, %p274
      %s276 = ssub.s32 %s27, %s34
      %p277 = scmp.eq.s32.totalorder %s276, 0
      %s279 = sadd.s32 %s278, 1
      %s280 = scalar_select %p277, %s278, %s279
      %p283 = pneg %p277
      %p284 = scmp.eq.s32.totalorder %s27, 1
      %p285 = por %p283, %p284
      %p286 = scmp.ne.s32.totalorder %s278, %s281
      %p287 = scmp.eq.s32.totalorder %s27, 0
      %p288 = por %p286, %p287
      %p289 = scmp.ne.s32.totalorder %s278, %s281
      %p290 = scmp.eq.s32.totalorder %s32, 1
      %p291 = por %p289, %p290
      %p292 = scmp.ne.s32.totalorder %s281, %s282
      %p293 = scmp.eq.s32.totalorder %s32, 0
      %p294 = por %p292, %p293
      %p295 = scmp.ne.s32.totalorder %s281, %s282
      %p296 = scmp.eq.s32.totalorder %s33, 1
      %p297 = por %p295, %p296
      %p299 = scmp.ne.s32.totalorder %s282, %s298
      %p300 = scmp.eq.s32.totalorder %s33, 0
      %p301 = por %p299, %p300
      %s302 = ssub.s32 %s27, %s34
      %p303 = scmp.eq.s32.totalorder %s302, 0
      %s305 = sadd.s32 %s304, 1
      %s306 = scalar_select %p303, %s304, %s305
      %p309 = pneg %p303
      %p310 = scmp.eq.s32.totalorder %s27, 1
      %p311 = por %p309, %p310
      %p312 = scmp.ne.s32.totalorder %s304, %s307
      %p313 = scmp.eq.s32.totalorder %s27, 0
      %p314 = por %p312, %p313
      %p315 = scmp.ne.s32.totalorder %s304, %s307
      %p316 = scmp.eq.s32.totalorder %s32, 1
      %p317 = por %p315, %p316
      %p318 = scmp.ne.s32.totalorder %s307, %s308
      %p319 = scmp.eq.s32.totalorder %s32, 0
      %p320 = por %p318, %p319
      %p321 = scmp.ne.s32.totalorder %s307, %s308
      %p322 = scmp.eq.s32.totalorder %s33, 1
      %p323 = por %p321, %p322
      %p325 = scmp.ne.s32.totalorder %s308, %s324
      %p326 = scmp.eq.s32.totalorder %s33, 0
      %p327 = por %p325, %p326
      %p328 = scmp.le.s32.totalorder 1, %s27
      %p329 = scmp.lt.s32.totalorder %s27, 3
      %p330 = pnand %p328, %p329
      %p331 = pneg %p330
      // Predicated region
      $region9: #{tpu_custom_call.1} parent=5 // pred_check
        _
      $region10: #{tpu_custom_call.1} parent=5 // pred_check_branch
        %333 = sbr.rel (%p330) target = $region12
      $region11: #{tpu_custom_call.1} parent=5 // pred_region
        %s334 = ssub.s32 %s27, 1
        // Predicated region
        $region13: #{tpu_custom_call.1} parent=11 // pred_check
          %p335 = pneg %p74
        $region14: #{tpu_custom_call.1} parent=11 // pred_check_branch
          %337 = sbr.rel (%p335) target = $region16
        $region15: #{tpu_custom_call.1} parent=11 // pred_region
          _
        $region16: #{tpu_custom_call.1} parent=11 // pred_fallthru
          _
        // Predicated region
        $region17: #{tpu_custom_call.1} parent=11 // pred_check
          %p338 = pneg %p95
        $region18: #{tpu_custom_call.1} parent=11 // pred_check_branch
          %340 = sbr.rel (%p338) target = $region20
        $region19: #{tpu_custom_call.1} parent=11 // pred_region
          _
        $region20: #{tpu_custom_call.1} parent=11 // pred_fallthru
          _
        // Predicated region
        $region21: #{tpu_custom_call.1} parent=11 // pred_check
          %p341 = pneg %p116
        $region22: #{tpu_custom_call.1} parent=11 // pred_check_branch
          %343 = sbr.rel (%p341) target = $region24
        $region23: #{tpu_custom_call.1} parent=11 // pred_region
          _
        $region24: #{tpu_custom_call.1} parent=11 // pred_fallthru
          _
        // Predicated region
        $region25: #{tpu_custom_call.1} parent=11 // pred_check
          %p344 = pneg %p137
        $region26: #{tpu_custom_call.1} parent=11 // pred_check_branch
          %346 = sbr.rel (%p344) target = $region28
        $region27: #{tpu_custom_call.1} parent=11 // pred_region
          _
        $region28: #{tpu_custom_call.1} parent=11 // pred_fallthru
          _
        // Predicated region
        $region29: #{tpu_custom_call.1} parent=11 // pred_check
          %p347 = pneg %p158
        $region30: #{tpu_custom_call.1} parent=11 // pred_check_branch
          %349 = sbr.rel (%p347) target = $region32
        $region31: #{tpu_custom_call.1} parent=11 // pred_region
          _
        $region32: #{tpu_custom_call.1} parent=11 // pred_fallthru
          _
        // Predicated region
        $region33: #{tpu_custom_call.1} parent=11 // pred_check
          %p350 = pneg %p179
        $region34: #{tpu_custom_call.1} parent=11 // pred_check_branch
          %352 = sbr.rel (%p350) target = $region36
        $region35: #{tpu_custom_call.1} parent=11 // pred_region
          %s354 = ssub.s32 16, 16
          %355 = vsyncadd [#allocation9], %s354
          %s357 = sshll.u32 %s6, 4
          %s358 = int_to_ptr.vmem [resolvable:$true] %s357
          %360 = dma.vmem_to_smem %s358, 16, [#allocation10], [#allocation9]
        $region36: #{tpu_custom_call.1} parent=11 // pred_fallthru
          _
        // Predicated region
        $region37: #{tpu_custom_call.1} parent=11 // pred_check
          %p361 = pneg %p200
        $region38: #{tpu_custom_call.1} parent=11 // pred_check_branch
          %363 = sbr.rel (%p361) target = $region40
        $region39: #{tpu_custom_call.1} parent=11 // pred_region
          _
        $region40: #{tpu_custom_call.1} parent=11 // pred_fallthru
          _
        // Predicated region
        $region41: #{tpu_custom_call.1} parent=11 // pred_check
          %p364 = pneg %p221
        $region42: #{tpu_custom_call.1} parent=11 // pred_check_branch
          %366 = sbr.rel (%p364) target = $region44
        $region43: #{tpu_custom_call.1} parent=11 // pred_region
          _
        $region44: #{tpu_custom_call.1} parent=11 // pred_fallthru
          _
        // Predicated region
        $region45: #{tpu_custom_call.1} parent=11 // pred_check
          %p367 = pneg %p242
        $region46: #{tpu_custom_call.1} parent=11 // pred_check_branch
          %369 = sbr.rel (%p367) target = $region48
        $region47: #{tpu_custom_call.1} parent=11 // pred_region
          _
        $region48: #{tpu_custom_call.1} parent=11 // pred_fallthru
          _
      $region12: #{tpu_custom_call.1} parent=5 // pred_fallthru
        _
      %p370 = scmp.lt.s32.totalorder %s27, 2
      // Predicated region
      $region49: #{tpu_custom_call.1} parent=5 // pred_check
        %p371 = pneg %p370
      $region50: #{tpu_custom_call.1} parent=5 // pred_check_branch
        %373 = sbr.rel (%p371) target = $region52
      $region51: #{tpu_custom_call.1} parent=5 // pred_region
        // Predicated region
        $region53: #{tpu_custom_call.1} parent=51 // pred_check
          %p374 = pneg %p47
        $region54: #{tpu_custom_call.1} parent=51 // pred_check_branch
          %376 = sbr.rel (%p374) target = $region56
        $region55: #{tpu_custom_call.1} parent=51 // pred_region
          %s377 = sand.u32 %s37, 1
          %s378 = scalar_lea.sflag [#allocation7], %s377
          %s379 = sand.u32 %s37, 1
          %s380 = smul.addr %s379, 48
          %s381 = scalar_lea.vmem [#allocation6], %s380
          %s383 = ssub.s32 768, 768
          %384 = vsyncadd %s378, %s383
          %s385 = smul.addr %s27, 6
          %s386 = smul.addr %s385, 128
          %s387 = scalar_lea.hbm %s0, %s386
          %s388 = sshll.u32 %s381, 4
          %s389 = int_to_ptr.vmem [resolvable:$true] %s388
          %394 = dma.hbm_to_vmem [thread:$0]  %s387, 768, %s389, %s378, 384, 384, 24
        $region56: #{tpu_custom_call.1} parent=51 // pred_fallthru
          _
      $region52: #{tpu_custom_call.1} parent=5 // pred_fallthru
        _
      %p395 = scmp.le.s32.totalorder 1, %s27
      %p396 = scmp.lt.s32.totalorder %s27, 3
      %p397 = pnand %p395, %p396
      %p398 = pneg %p397
      // Predicated region
      $region57: #{tpu_custom_call.1} parent=5 // pred_check
        _
      $region58: #{tpu_custom_call.1} parent=5 // pred_check_branch
        %400 = sbr.rel (%p397) target = $region60
      $region59: #{tpu_custom_call.1} parent=5 // pred_region
        %s401 = ssub.s32 %s27, 1
        %s402 = sand.u32 %s40, 1
        %s403 = scalar_lea.sflag [#allocation7], %s402
        %s404 = sand.u32 %s40, 1
        %s405 = smul.addr %s404, 48
        %s406 = scalar_lea.vmem [#allocation6], %s405
        // Predicated region
        $region61: #{tpu_custom_call.1} parent=59 // pred_check
          %p407 = pneg %p53
        $region62: #{tpu_custom_call.1} parent=59 // pred_check_branch
          %409 = sbr.rel (%p407) target = $region64
        $region63: #{tpu_custom_call.1} parent=59 // pred_region
          %410 = dma.done %s403, 768
        $region64: #{tpu_custom_call.1} parent=59 // pred_fallthru
          _
        // Predicated region
        $region65: #{tpu_custom_call.1} parent=59 // pred_check
          %p411 = pneg %p179
        $region66: #{tpu_custom_call.1} parent=59 // pred_check_branch
          %413 = sbr.rel (%p411) target = $region68
        $region67: #{tpu_custom_call.1} parent=59 // pred_region
          %414 = dma.done [#allocation9], 16
        $region68: #{tpu_custom_call.1} parent=59 // pred_fallthru
          _
        %415 = sfence
        %s416 = sand.u32 %s40, 1
        %s417 = scalar_lea.sflag [#allocation7], %s416
        %s418 = sand.u32 %s40, 1
        %s419 = smul.addr %s418, 48
        %s420 = scalar_lea.vmem [#allocation6], %s419
        %p421 = pneg %p53
        %p422 = pneg %p50
        %p423 = pneg %p74
        %p424 = pneg %p71
        %p425 = pneg %p95
        %p426 = pneg %p92
        %p427 = pneg %p116
        %p428 = pneg %p113
        %p429 = pneg %p137
        %p430 = pneg %p134
        %p431 = pneg %p158
        %p432 = pneg %p155
        %p433 = pneg %p179
        %p434 = pneg %p176
        %p435 = pneg %p200
        %p436 = pneg %p197
        %p437 = pneg %p221
        %p438 = pneg %p218
        %p439 = pneg %p242
        %p440 = pneg %p239
        %p441 = pneg %p268
        %p442 = pneg %p265
        %s443 = sand.u32 %s255, 1
        %s444 = scalar_lea.sflag [#allocation8], %s443
        %s445 = sand.u32 %s255, 1
        %s446 = smul.addr %s445, 96
        %s447 = scalar_lea.vmem [#allocation11], %s446
        %p448 = pneg %p294
        %p449 = pneg %p291
        %p450 = scmp.lt.s32.totalorder %s32, 1
        %s451 = scalar_select %p450, %s32, 1
        %s452 = smul.addr %s451, 4
        %s453 = smul.addr %s452, 8
        %s454 = scalar_lea.vmem %s11, %s453
        %p455 = pneg %p320
        %p456 = pneg %p317
        %p457 = scmp.lt.s32.totalorder %s32, 1
        %s458 = scalar_select %p457, %s32, 1
        %s459 = smul.addr %s458, 4
        %s460 = smul.addr %s459, 8
        %s461 = scalar_lea.vmem %s12, %s460
        %p462 = scmp.lt.s32.totalorder %s32, 1
        %s463 = scalar_select %p462, %s32, 1
        %s464 = smul.addr %s463, 4
        %s465 = smul.addr %s464, 8
        %s466 = scalar_lea.vmem %s11, %s465
        %p467 = scmp.lt.s32.totalorder %s32, 1
        %s468 = scalar_select %p467, %s32, 1
        %s469 = smul.addr %s468, 4
        %s470 = smul.addr %s469, 8
        %s471 = scalar_lea.vmem %s12, %s470
        %v473 = vld [vmem:[%s406] sm:$0xff]
        %v474 = vld [vmem:[%s406 + $0x8] sm:$0xff]
        %v475 = vld [vmem:[%s406 + $0x10] sm:$0xff]
        %v476 = vld [vmem:[%s406 + $0x18] sm:$0xff]
        %v477 = vld [vmem:[%s406 + $0x20] sm:$0xff]
        %v478 = vld [vmem:[%s406 + $0x28] sm:$0xff]
        %v479 = vadd.f32 %v473, %v474
        %vm480 = vcmask 556032
        %v481 = vsel %vm480, %v475, 0.0
        %v482 = vadd.f32 %v479, %v481
        %483 = vadd.xlane.f32.xlu0 %v482
        %v484 = vpop.xlane.xlu0 %483
        %v485 = vadd.f32 %v476, %v477
        %v486 = vsel %vm480, %v478, 0.0
        %v487 = vadd.f32 %v485, %v486
        %488 = vadd.xlane.f32.xlu0 %v487
        %v489 = vpop.xlane.xlu0 %488
        %v490 = vmul.f32 %v484, 0.00390625
        %v491 = vmul.f32 %v489, 0.00390625
        %vm492 = vcmask 7168
        %493 = vst.msk [vmem:[#allocation2] sm:$0xff] %vm492, %v490
        %494 = vst.msk [vmem:[#allocation2 + $0x8] sm:$0xff] %vm492, %v491
        %v495 = vld [vmem:[%s1] sm:$0x7]
        %v497 = vlaneseq
        %v498 = vshrl.u32 %v497, 7
        %v499 = vsub.s32 0, %v498
        %v500 = vrot.slane %v495, %v499
        %v501 = vlaneseq
        %v502 = vshrl.u32 %v501, 7
        %v503 = vsub.s32 1, %v502
        %v504 = vrot.slane %v495, %v503
        %v505 = vlaneseq
        %v506 = vshrl.u32 %v505, 7
        %v507 = vsub.s32 2, %v506
        %v508 = vrot.slane %v495, %v507
        %v512 = vadd.f32 %v473, %v500
        %v513 = vadd.f32 %v474, %v504
        %v514 = vadd.f32 %v475, %v508
        %v515 = vadd.f32 %v476, %v500
        %v516 = vadd.f32 %v477, %v504
        %v517 = vadd.f32 %v478, %v508
        %v518 = vsel %vm480, %v514, -inf
        %v519 = vmax.f32 %v512, %v518
        %v520 = vmax.f32 %v519, %v513
        %521 = vmax.xlane.f32.xlu0 %v520
        %v522 = vpop.xlane.xlu0 %521
        %v523 = vsel %vm480, %v517, -inf
        %v524 = vmax.f32 %v515, %v523
        %v525 = vmax.f32 %v524, %v516
        %526 = vmax.xlane.f32.xlu0 %v525
        %v527 = vpop.xlane.xlu0 %526
        %vm528 = vcmask 15368
        %529 = vst.msk [vmem:[#allocation2] sm:$0xff] %vm528, %v522
        %530 = vst.msk [vmem:[#allocation2 + $0x8] sm:$0xff] %vm528, %v527
        %v531 = vld [vmem:[%s2] sm:$0xf]
        %v532 = vld [vmem:[#allocation2] sm:$0xff]
        %v533 = vld [vmem:[#allocation2 + $0x8] sm:$0xff]
        %v534 = vld [vmem:[%s3] sm:$0xf]
        %536 = vset.pattern.permute.xlu0 0
        %537 = vperm.xlu0 %536, %v534
        %v538 = vpop.permute.xlu0 %537
        %vm540 = vcmask 130048
        %v542 = vsel %vm540, %v531, 0
        %544 = vmatprep.subr.mxu0 0.0
        %545 = vmatpush1.msra.mxu0 0.0
        %546 = vmatprep.subr.mxu0 0.0
        %547 = vmatpush1.msra.mxu0 0.0
        %548 = vmatprep.subr.mxu0 0.0
        %549 = vmatpush1.msra.mxu0 0.0
        %550 = vmatprep.subr.mxu0 0.0
        %551 = vmatpush1.msra.mxu0 0.0
        %552 = vmatprep.subr.mxu0 0.0
        %553 = vmatpush1.msra.mxu0 0.0
        %554 = vmatprep.subr.mxu0 0.0
        %555 = vmatpush1.msra.mxu0 0.0
        %556 = vmatprep.subr.mxu0 0.0
        %557 = vmatpush1.msra.mxu0 0.0
        %558 = vmatprep.subr.mxu0 0.0
        %559 = vmatpush1.msra.mxu0 0.0
        %560 = vmatprep.subr.mxu0 0.0
        %561 = vmatpush1.msra.mxu0 0.0
        %562 = vmatprep.subr.mxu0 0.0
        %563 = vmatpush1.msra.mxu0 0.0
        %564 = vmatprep.subr.mxu0 0.0
        %565 = vmatpush1.msra.mxu0 0.0
        %566 = vmatprep.subr.mxu0 0.0
        %567 = vmatpush1.msra.mxu0 0.0
        %568 = vmatprep.subr.mxu0 0.0
        %569 = vmatpush1.msra.mxu0 0.0
        %570 = vmatprep.subr.mxu0 0.0
        %571 = vmatpush1.msra.mxu0 0.0
        %572 = vmatprep.subr.mxu0 0.0
        %v573 = vand.u32 %v533, 4294901760
        %574 = vmatpush1.msra.mxu0 %v573
        %575 = vmatprep.subr.mxu0 0.0
        %v576 = vand.u32 %v532, 4294901760
        %577 = vmatpush1.msra.mxu0 %v576
        %578 = vmatprep.subr.mxu0 0.0
        %579 = vmatpush2.msra.mxu0 0.0
        %580 = vmatprep.subr.mxu0 0.0
        %581 = vmatpush2.msra.mxu0 0.0
        %582 = vmatprep.subr.mxu0 0.0
        %583 = vmatpush2.msra.mxu0 0.0
        %584 = vmatprep.subr.mxu0 0.0
        %585 = vmatpush2.msra.mxu0 0.0
        %586 = vmatprep.subr.mxu0 0.0
        %587 = vmatpush2.msra.mxu0 0.0
        %588 = vmatprep.subr.mxu0 0.0
        %589 = vmatpush2.msra.mxu0 0.0
        %590 = vmatprep.subr.mxu0 0.0
        %591 = vmatpush2.msra.mxu0 0.0
        %592 = vmatprep.subr.mxu0 0.0
        %593 = vmatpush2.msra.mxu0 0.0
        %594 = vmatprep.subr.mxu0 0.0
        %595 = vmatpush2.msra.mxu0 0.0
        %596 = vmatprep.subr.mxu0 0.0
        %597 = vmatpush2.msra.mxu0 0.0
        %598 = vmatprep.subr.mxu0 0.0
        %599 = vmatpush2.msra.mxu0 0.0
        %600 = vmatprep.subr.mxu0 0.0
        %601 = vmatpush2.msra.mxu0 0.0
        %602 = vmatprep.subr.mxu0 0.0
        %603 = vmatpush2.msra.mxu0 0.0
        %604 = vmatprep.subr.mxu0 0.0
        %605 = vmatpush2.msra.mxu0 0.0
        %606 = vmatprep.subr.mxu0 0.0
        %607 = vmatpush2.msra.mxu0 0.0
        %608 = vmatprep.subr.mxu0 0.0
        %609 = vmatpush2.msra.mxu0 0.0
        %610 = vmatprep.mubr.f32.mxu0 0.0
        %v611 = vand.u32 %v542, 4294901760
        %v612 = vsub.f32 %v542, %v611
        %v613 = vand.u32 %v612, 4294901760
        %v614 = vsub.f32 %v612, %v613
        %v615 = vand.u32 %v614, 4294901760
        %616 = vmatmul.mubr.f32.gmra.mxu0 %v615
        %v617 = vpop.f32.mrf.mxu0
        %v618 = vadd.f32 %v538, %v617
        %v619 = vpop.f32.mrf.mxu0
        %620 = vdwg.mxu0
        %621 = vmatprep.subr.mxu0 0.0
        %622 = vmatpush1.msra.mxu0 0.0
        %623 = vmatprep.subr.mxu0 0.0
        %624 = vmatpush1.msra.mxu0 0.0
        %625 = vmatprep.subr.mxu0 0.0
        %626 = vmatpush1.msra.mxu0 0.0
        %627 = vmatprep.subr.mxu0 0.0
        %628 = vmatpush1.msra.mxu0 0.0
        %629 = vmatprep.subr.mxu0 0.0
        %630 = vmatpush1.msra.mxu0 0.0
        %631 = vmatprep.subr.mxu0 0.0
        %632 = vmatpush1.msra.mxu0 0.0
        %633 = vmatprep.subr.mxu0 0.0
        %634 = vmatpush1.msra.mxu0 0.0
        %635 = vmatprep.subr.mxu0 0.0
        %636 = vmatpush1.msra.mxu0 0.0
        %637 = vmatprep.subr.mxu0 0.0
        %638 = vmatpush1.msra.mxu0 0.0
        %639 = vmatprep.subr.mxu0 0.0
        %640 = vmatpush1.msra.mxu0 0.0
        %641 = vmatprep.subr.mxu0 0.0
        %642 = vmatpush1.msra.mxu0 0.0
        %643 = vmatprep.subr.mxu0 0.0
        %644 = vmatpush1.msra.mxu0 0.0
        %645 = vmatprep.subr.mxu0 0.0
        %646 = vmatpush1.msra.mxu0 0.0
        %647 = vmatprep.subr.mxu0 0.0
        %648 = vmatpush1.msra.mxu0 0.0
        %649 = vmatprep.subr.mxu0 0.0
        %v650 = vand.u32 %v533, 4294901760
        %v651 = vsub.f32 %v533, %v650
        %v652 = vand.u32 %v651, 4294901760
        %v653 = vsub.f32 %v651, %v652
        %v654 = vand.u32 %v653, 4294901760
        %655 = vmatpush1.msra.mxu0 %v654
        %656 = vmatprep.subr.mxu0 0.0
        %v657 = vand.u32 %v532, 4294901760
        %v658 = vsub.f32 %v532, %v657
        %v659 = vand.u32 %v658, 4294901760
        %v660 = vsub.f32 %v658, %v659
        %v661 = vand.u32 %v660, 4294901760
        %662 = vmatpush1.msra.mxu0 %v661
        %663 = vmatprep.subr.mxu0 0.0
        %664 = vmatpush2.msra.mxu0 0.0
        %665 = vmatprep.subr.mxu0 0.0
        %666 = vmatpush2.msra.mxu0 0.0
        %667 = vmatprep.subr.mxu0 0.0
        %668 = vmatpush2.msra.mxu0 0.0
        %669 = vmatprep.subr.mxu0 0.0
        %670 = vmatpush2.msra.mxu0 0.0
        %671 = vmatprep.subr.mxu0 0.0
        %672 = vmatpush2.msra.mxu0 0.0
        %673 = vmatprep.subr.mxu0 0.0
        %674 = vmatpush2.msra.mxu0 0.0
        %675 = vmatprep.subr.mxu0 0.0
        %676 = vmatpush2.msra.mxu0 0.0
        %677 = vmatprep.subr.mxu0 0.0
        %678 = vmatpush2.msra.mxu0 0.0
        %679 = vmatprep.subr.mxu0 0.0
        %680 = vmatpush2.msra.mxu0 0.0
        %681 = vmatprep.subr.mxu0 0.0
        %682 = vmatpush2.msra.mxu0 0.0
        %683 = vmatprep.subr.mxu0 0.0
        %684 = vmatpush2.msra.mxu0 0.0
        %685 = vmatprep.subr.mxu0 0.0
        %686 = vmatpush2.msra.mxu0 0.0
        %687 = vmatprep.subr.mxu0 0.0
        %688 = vmatpush2.msra.mxu0 0.0
        %689 = vmatprep.subr.mxu0 0.0
        %690 = vmatpush2.msra.mxu0 0.0
        %691 = vmatprep.subr.mxu0 0.0
        %692 = vmatpush2.msra.mxu0 0.0
        %693 = vmatprep.subr.mxu0 0.0
        %694 = vmatpush2.msra.mxu0 0.0
        %695 = vmatprep.mubr.f32.mxu0 0.0
        %v696 = vand.u32 %v542, 4294901760
        %697 = vmatmul.mubr.f32.gmra.mxu0 %v696
        %v698 = vpop.f32.mrf.mxu0
        %v699 = vadd.f32 %v618, %v698
        %v700 = vpop.f32.mrf.mxu0
        %701 = vdwg.mxu0
        %702 = vmatprep.subr.mxu0 0.0
        %703 = vmatpush1.msra.mxu0 0.0
        %704 = vmatprep.subr.mxu0 0.0
        %705 = vmatpush1.msra.mxu0 0.0
        %706 = vmatprep.subr.mxu0 0.0
        %707 = vmatpush1.msra.mxu0 0.0
        %708 = vmatprep.subr.mxu0 0.0
        %709 = vmatpush1.msra.mxu0 0.0
        %710 = vmatprep.subr.mxu0 0.0
        %711 = vmatpush1.msra.mxu0 0.0
        %712 = vmatprep.subr.mxu0 0.0
        %713 = vmatpush1.msra.mxu0 0.0
        %714 = vmatprep.subr.mxu0 0.0
        %715 = vmatpush1.msra.mxu0 0.0
        %716 = vmatprep.subr.mxu0 0.0
        %717 = vmatpush1.msra.mxu0 0.0
        %718 = vmatprep.subr.mxu0 0.0
        %719 = vmatpush1.msra.mxu0 0.0
        %720 = vmatprep.subr.mxu0 0.0
        %721 = vmatpush1.msra.mxu0 0.0
        %722 = vmatprep.subr.mxu0 0.0
        %723 = vmatpush1.msra.mxu0 0.0
        %724 = vmatprep.subr.mxu0 0.0
        %725 = vmatpush1.msra.mxu0 0.0
        %726 = vmatprep.subr.mxu0 0.0
        %727 = vmatpush1.msra.mxu0 0.0
        %728 = vmatprep.subr.mxu0 0.0
        %729 = vmatpush1.msra.mxu0 0.0
        %730 = vmatprep.subr.mxu0 0.0
        %v731 = vand.u32 %v533, 4294901760
        %v732 = vsub.f32 %v533, %v731
        %733 = vmatpush1.msra.mxu0 %v732
        %734 = vmatprep.subr.mxu0 0.0
        %v735 = vand.u32 %v532, 4294901760
        %v736 = vsub.f32 %v532, %v735
        %737 = vmatpush1.msra.mxu0 %v736
        %738 = vmatprep.subr.mxu0 0.0
        %739 = vmatpush2.msra.mxu0 0.0
        %740 = vmatprep.subr.mxu0 0.0
        %741 = vmatpush2.msra.mxu0 0.0
        %742 = vmatprep.subr.mxu0 0.0
        %743 = vmatpush2.msra.mxu0 0.0
        %744 = vmatprep.subr.mxu0 0.0
        %745 = vmatpush2.msra.mxu0 0.0
        %746 = vmatprep.subr.mxu0 0.0
        %747 = vmatpush2.msra.mxu0 0.0
        %748 = vmatprep.subr.mxu0 0.0
        %749 = vmatpush2.msra.mxu0 0.0
        %750 = vmatprep.subr.mxu0 0.0
        %751 = vmatpush2.msra.mxu0 0.0
        %752 = vmatprep.subr.mxu0 0.0
        %753 = vmatpush2.msra.mxu0 0.0
        %754 = vmatprep.subr.mxu0 0.0
        %755 = vmatpush2.msra.mxu0 0.0
        %756 = vmatprep.subr.mxu0 0.0
        %757 = vmatpush2.msra.mxu0 0.0
        %758 = vmatprep.subr.mxu0 0.0
        %759 = vmatpush2.msra.mxu0 0.0
        %760 = vmatprep.subr.mxu0 0.0
        %761 = vmatpush2.msra.mxu0 0.0
        %762 = vmatprep.subr.mxu0 0.0
        %763 = vmatpush2.msra.mxu0 0.0
        %764 = vmatprep.subr.mxu0 0.0
        %765 = vmatpush2.msra.mxu0 0.0
        %766 = vmatprep.subr.mxu0 0.0
        %767 = vmatpush2.msra.mxu0 0.0
        %768 = vmatprep.subr.mxu0 0.0
        %769 = vmatpush2.msra.mxu0 0.0
        %770 = vmatprep.mubr.f32.mxu0 0.0
        %v771 = vand.u32 %v542, 4294901760
        %v772 = vsub.f32 %v542, %v771
        %773 = vmatmul.mubr.f32.gmra.mxu0 %v772
        %v774 = vpop.f32.mrf.mxu0
        %v775 = vadd.f32 %v699, %v774
        %v776 = vpop.f32.mrf.mxu0
        %777 = vdwg.mxu0
        %778 = vmatprep.subr.mxu0 0.0
        %779 = vmatpush1.msra.mxu0 0.0
        %780 = vmatprep.subr.mxu0 0.0
        %781 = vmatpush1.msra.mxu0 0.0
        %782 = vmatprep.subr.mxu0 0.0
        %783 = vmatpush1.msra.mxu0 0.0
        %784 = vmatprep.subr.mxu0 0.0
        %785 = vmatpush1.msra.mxu0 0.0
        %786 = vmatprep.subr.mxu0 0.0
        %787 = vmatpush1.msra.mxu0 0.0
        %788 = vmatprep.subr.mxu0 0.0
        %789 = vmatpush1.msra.mxu0 0.0
        %790 = vmatprep.subr.mxu0 0.0
        %791 = vmatpush1.msra.mxu0 0.0
        %792 = vmatprep.subr.mxu0 0.0
        %793 = vmatpush1.msra.mxu0 0.0
        %794 = vmatprep.subr.mxu0 0.0
        %795 = vmatpush1.msra.mxu0 0.0
        %796 = vmatprep.subr.mxu0 0.0
        %797 = vmatpush1.msra.mxu0 0.0
        %798 = vmatprep.subr.mxu0 0.0
        %799 = vmatpush1.msra.mxu0 0.0
        %800 = vmatprep.subr.mxu0 0.0
        %801 = vmatpush1.msra.mxu0 0.0
        %802 = vmatprep.subr.mxu0 0.0
        %803 = vmatpush1.msra.mxu0 0.0
        %804 = vmatprep.subr.mxu0 0.0
        %805 = vmatpush1.msra.mxu0 0.0
        %806 = vmatprep.subr.mxu0 0.0
        %v807 = vand.u32 %v533, 4294901760
        %808 = vmatpush1.msra.mxu0 %v807
        %809 = vmatprep.subr.mxu0 0.0
        %v810 = vand.u32 %v532, 4294901760
        %811 = vmatpush1.msra.mxu0 %v810
        %812 = vmatprep.subr.mxu0 0.0
        %813 = vmatpush2.msra.mxu0 0.0
        %814 = vmatprep.subr.mxu0 0.0
        %815 = vmatpush2.msra.mxu0 0.0
        %816 = vmatprep.subr.mxu0 0.0
        %817 = vmatpush2.msra.mxu0 0.0
        %818 = vmatprep.subr.mxu0 0.0
        %819 = vmatpush2.msra.mxu0 0.0
        %820 = vmatprep.subr.mxu0 0.0
        %821 = vmatpush2.msra.mxu0 0.0
        %822 = vmatprep.subr.mxu0 0.0
        %823 = vmatpush2.msra.mxu0 0.0
        %824 = vmatprep.subr.mxu0 0.0
        %825 = vmatpush2.msra.mxu0 0.0
        %826 = vmatprep.subr.mxu0 0.0
        %827 = vmatpush2.msra.mxu0 0.0
        %828 = vmatprep.subr.mxu0 0.0
        %829 = vmatpush2.msra.mxu0 0.0
        %830 = vmatprep.subr.mxu0 0.0
        %831 = vmatpush2.msra.mxu0 0.0
        %832 = vmatprep.subr.mxu0 0.0
        %833 = vmatpush2.msra.mxu0 0.0
        %834 = vmatprep.subr.mxu0 0.0
        %835 = vmatpush2.msra.mxu0 0.0
        %836 = vmatprep.subr.mxu0 0.0
        %837 = vmatpush2.msra.mxu0 0.0
        %838 = vmatprep.subr.mxu0 0.0
        %839 = vmatpush2.msra.mxu0 0.0
        %840 = vmatprep.subr.mxu0 0.0
        %841 = vmatpush2.msra.mxu0 0.0
        %842 = vmatprep.subr.mxu0 0.0
        %843 = vmatpush2.msra.mxu0 0.0
        %844 = vmatprep.mubr.f32.mxu0 0.0
        %v845 = vand.u32 %v542, 4294901760
        %v846 = vsub.f32 %v542, %v845
        %v847 = vand.u32 %v846, 4294901760
        %848 = vmatmul.mubr.f32.gmra.mxu0 %v847
        %v849 = vpop.f32.mrf.mxu0
        %v850 = vadd.f32 %v775, %v849
        %v851 = vpop.f32.mrf.mxu0
        %852 = vdwg.mxu0
        %853 = vmatprep.subr.mxu0 0.0
        %854 = vmatpush1.msra.mxu0 0.0
        %855 = vmatprep.subr.mxu0 0.0
        %856 = vmatpush1.msra.mxu0 0.0
        %857 = vmatprep.subr.mxu0 0.0
        %858 = vmatpush1.msra.mxu0 0.0
        %859 = vmatprep.subr.mxu0 0.0
        %860 = vmatpush1.msra.mxu0 0.0
        %861 = vmatprep.subr.mxu0 0.0
        %862 = vmatpush1.msra.mxu0 0.0
        %863 = vmatprep.subr.mxu0 0.0
        %864 = vmatpush1.msra.mxu0 0.0
        %865 = vmatprep.subr.mxu0 0.0
        %866 = vmatpush1.msra.mxu0 0.0
        %867 = vmatprep.subr.mxu0 0.0
        %868 = vmatpush1.msra.mxu0 0.0
        %869 = vmatprep.subr.mxu0 0.0
        %870 = vmatpush1.msra.mxu0 0.0
        %871 = vmatprep.subr.mxu0 0.0
        %872 = vmatpush1.msra.mxu0 0.0
        %873 = vmatprep.subr.mxu0 0.0
        %874 = vmatpush1.msra.mxu0 0.0
        %875 = vmatprep.subr.mxu0 0.0
        %876 = vmatpush1.msra.mxu0 0.0
        %877 = vmatprep.subr.mxu0 0.0
        %878 = vmatpush1.msra.mxu0 0.0
        %879 = vmatprep.subr.mxu0 0.0
        %880 = vmatpush1.msra.mxu0 0.0
        %881 = vmatprep.subr.mxu0 0.0
        %v882 = vand.u32 %v533, 4294901760
        %v883 = vsub.f32 %v533, %v882
        %v884 = vand.u32 %v883, 4294901760
        %885 = vmatpush1.msra.mxu0 %v884
        %886 = vmatprep.subr.mxu0 0.0
        %v887 = vand.u32 %v532, 4294901760
        %v888 = vsub.f32 %v532, %v887
        %v889 = vand.u32 %v888, 4294901760
        %890 = vmatpush1.msra.mxu0 %v889
        %891 = vmatprep.subr.mxu0 0.0
        %892 = vmatpush2.msra.mxu0 0.0
        %893 = vmatprep.subr.mxu0 0.0
        %894 = vmatpush2.msra.mxu0 0.0
        %895 = vmatprep.subr.mxu0 0.0
        %896 = vmatpush2.msra.mxu0 0.0
        %897 = vmatprep.subr.mxu0 0.0
        %898 = vmatpush2.msra.mxu0 0.0
        %899 = vmatprep.subr.mxu0 0.0
        %900 = vmatpush2.msra.mxu0 0.0
        %901 = vmatprep.subr.mxu0 0.0
        %902 = vmatpush2.msra.mxu0 0.0
        %903 = vmatprep.subr.mxu0 0.0
        %904 = vmatpush2.msra.mxu0 0.0
        %905 = vmatprep.subr.mxu0 0.0
        %906 = vmatpush2.msra.mxu0 0.0
        %907 = vmatprep.subr.mxu0 0.0
        %908 = vmatpush2.msra.mxu0 0.0
        %909 = vmatprep.subr.mxu0 0.0
        %910 = vmatpush2.msra.mxu0 0.0
        %911 = vmatprep.subr.mxu0 0.0
        %912 = vmatpush2.msra.mxu0 0.0
        %913 = vmatprep.subr.mxu0 0.0
        %914 = vmatpush2.msra.mxu0 0.0
        %915 = vmatprep.subr.mxu0 0.0
        %916 = vmatpush2.msra.mxu0 0.0
        %917 = vmatprep.subr.mxu0 0.0
        %918 = vmatpush2.msra.mxu0 0.0
        %919 = vmatprep.subr.mxu0 0.0
        %920 = vmatpush2.msra.mxu0 0.0
        %921 = vmatprep.subr.mxu0 0.0
        %922 = vmatpush2.msra.mxu0 0.0
        %923 = vmatprep.mubr.f32.mxu0 0.0
        %v924 = vand.u32 %v542, 4294901760
        %925 = vmatmul.mubr.f32.gmra.mxu0 %v924
        %v926 = vpop.f32.mrf.mxu0
        %v927 = vadd.f32 %v850, %v926
        %v928 = vpop.f32.mrf.mxu0
        %929 = vdwg.mxu0
        %930 = vmatprep.subr.mxu0 0.0
        %931 = vmatpush1.msra.mxu0 0.0
        %932 = vmatprep.subr.mxu0 0.0
        %933 = vmatpush1.msra.mxu0 0.0
        %934 = vmatprep.subr.mxu0 0.0
        %935 = vmatpush1.msra.mxu0 0.0
        %936 = vmatprep.subr.mxu0 0.0
        %937 = vmatpush1.msra.mxu0 0.0
        %938 = vmatprep.subr.mxu0 0.0
        %939 = vmatpush1.msra.mxu0 0.0
        %940 = vmatprep.subr.mxu0 0.0
        %941 = vmatpush1.msra.mxu0 0.0
        %942 = vmatprep.subr.mxu0 0.0
        %943 = vmatpush1.msra.mxu0 0.0
        %944 = vmatprep.subr.mxu0 0.0
        %945 = vmatpush1.msra.mxu0 0.0
        %946 = vmatprep.subr.mxu0 0.0
        %947 = vmatpush1.msra.mxu0 0.0
        %948 = vmatprep.subr.mxu0 0.0
        %949 = vmatpush1.msra.mxu0 0.0
        %950 = vmatprep.subr.mxu0 0.0
        %951 = vmatpush1.msra.mxu0 0.0
        %952 = vmatprep.subr.mxu0 0.0
        %953 = vmatpush1.msra.mxu0 0.0
        %954 = vmatprep.subr.mxu0 0.0
        %955 = vmatpush1.msra.mxu0 0.0
        %956 = vmatprep.subr.mxu0 0.0
        %957 = vmatpush1.msra.mxu0 0.0
        %958 = vmatprep.subr.mxu0 0.0
        %v959 = vand.u32 %v533, 4294901760
        %960 = vmatpush1.msra.mxu0 %v959
        %961 = vmatprep.subr.mxu0 0.0
        %v962 = vand.u32 %v532, 4294901760
        %963 = vmatpush1.msra.mxu0 %v962
        %964 = vmatprep.subr.mxu0 0.0
        %965 = vmatpush2.msra.mxu0 0.0
        %966 = vmatprep.subr.mxu0 0.0
        %967 = vmatpush2.msra.mxu0 0.0
        %968 = vmatprep.subr.mxu0 0.0
        %969 = vmatpush2.msra.mxu0 0.0
        %970 = vmatprep.subr.mxu0 0.0
        %971 = vmatpush2.msra.mxu0 0.0
        %972 = vmatprep.subr.mxu0 0.0
        %973 = vmatpush2.msra.mxu0 0.0
        %974 = vmatprep.subr.mxu0 0.0
        %975 = vmatpush2.msra.mxu0 0.0
        %976 = vmatprep.subr.mxu0 0.0
        %977 = vmatpush2.msra.mxu0 0.0
        %978 = vmatprep.subr.mxu0 0.0
        %979 = vmatpush2.msra.mxu0 0.0
        %980 = vmatprep.subr.mxu0 0.0
        %981 = vmatpush2.msra.mxu0 0.0
        %982 = vmatprep.subr.mxu0 0.0
        %983 = vmatpush2.msra.mxu0 0.0
        %984 = vmatprep.subr.mxu0 0.0
        %985 = vmatpush2.msra.mxu0 0.0
        %986 = vmatprep.subr.mxu0 0.0
        %987 = vmatpush2.msra.mxu0 0.0
        %988 = vmatprep.subr.mxu0 0.0
        %989 = vmatpush2.msra.mxu0 0.0
        %990 = vmatprep.subr.mxu0 0.0
        %991 = vmatpush2.msra.mxu0 0.0
        %992 = vmatprep.subr.mxu0 0.0
        %993 = vmatpush2.msra.mxu0 0.0
        %994 = vmatprep.subr.mxu0 0.0
        %995 = vmatpush2.msra.mxu0 0.0
        %996 = vmatprep.mubr.f32.mxu0 0.0
        %v997 = vand.u32 %v542, 4294901760
        %998 = vmatmul.mubr.f32.gmra.mxu0 %v997
        %v999 = vpop.f32.mrf.mxu0
        %v1000 = vadd.f32 %v927, %v999
        %v1001 = vpop.f32.mrf.mxu0
        %1002 = vdwg.mxu0
        %v1003 = vmax.f32 %v1000, 0.0
        %v1004 = vld [vmem:[%s4] sm:$0xff]
        %v1005 = vld [vmem:[%s4 + $0x8] sm:$0xff]
        %v1006 = vld [vmem:[%s5] sm:$0xff]
        %v1007 = vld [vmem:[%s5 + $0x8] sm:$0xff]
        %1009 = vset.pattern.permute.xlu0 0
        %1010 = vperm.xlu0 %1009, %v1006
        %v1011 = vpop.permute.xlu0 %1010
        %1014 = vset.pattern.permute.xlu0 0
        %1015 = vperm.xlu0 %1014, %v1007
        %v1016 = vpop.permute.xlu0 %1015
        %vm1018 = vcmask 31744
        %v1020 = vsel %vm1018, %v1004, 0
        %v1023 = vsel %vm1018, %v1005, 0
        %vm1025 = vcmask 1043456
        %v1027 = vsel %vm1025, %v1003, 0
        %1029 = vmatprep.subr.mxu0 0.0
        %1030 = vmatpush1.msra.mxu0 0.0
        %1031 = vmatprep.subr.mxu0 0.0
        %1032 = vmatpush1.msra.mxu0 0.0
        %1033 = vmatprep.subr.mxu0 0.0
        %1034 = vmatpush1.msra.mxu0 0.0
        %1035 = vmatprep.subr.mxu0 0.0
        %1036 = vmatpush1.msra.mxu0 0.0
        %1037 = vmatprep.subr.mxu0 0.0
        %1038 = vmatpush1.msra.mxu0 0.0
        %1039 = vmatprep.subr.mxu0 0.0
        %1040 = vmatpush1.msra.mxu0 0.0
        %1041 = vmatprep.subr.mxu0 0.0
        %1042 = vmatpush1.msra.mxu0 0.0
        %1043 = vmatprep.subr.mxu0 0.0
        %1044 = vmatpush1.msra.mxu0 0.0
        %1045 = vmatprep.subr.mxu0 0.0
        %1046 = vmatpush1.msra.mxu0 0.0
        %1047 = vmatprep.subr.mxu0 0.0
        %1048 = vmatpush1.msra.mxu0 0.0
        %1049 = vmatprep.subr.mxu0 0.0
        %1050 = vmatpush1.msra.mxu0 0.0
        %1051 = vmatprep.subr.mxu0 0.0
        %1052 = vmatpush1.msra.mxu0 0.0
        %1053 = vmatprep.subr.mxu0 0.0
        %1054 = vmatpush1.msra.mxu0 0.0
        %1055 = vmatprep.subr.mxu0 0.0
        %1056 = vmatpush1.msra.mxu0 0.0
        %1057 = vmatprep.subr.mxu0 0.0
        %1058 = vmatpush1.msra.mxu0 0.0
        %1059 = vmatprep.subr.mxu0 0.0
        %v1060 = vand.u32 %v1027, 4294901760
        %1061 = vmatpush1.msra.mxu0 %v1060
        %1062 = vmatprep.subr.mxu0 0.0
        %1063 = vmatpush2.msra.mxu0 0.0
        %1064 = vmatprep.subr.mxu0 0.0
        %1065 = vmatpush2.msra.mxu0 0.0
        %1066 = vmatprep.subr.mxu0 0.0
        %1067 = vmatpush2.msra.mxu0 0.0
        %1068 = vmatprep.subr.mxu0 0.0
        %1069 = vmatpush2.msra.mxu0 0.0
        %1070 = vmatprep.subr.mxu0 0.0
        %1071 = vmatpush2.msra.mxu0 0.0
        %1072 = vmatprep.subr.mxu0 0.0
        %1073 = vmatpush2.msra.mxu0 0.0
        %1074 = vmatprep.subr.mxu0 0.0
        %1075 = vmatpush2.msra.mxu0 0.0
        %1076 = vmatprep.subr.mxu0 0.0
        %1077 = vmatpush2.msra.mxu0 0.0
        %1078 = vmatprep.subr.mxu0 0.0
        %1079 = vmatpush2.msra.mxu0 0.0
        %1080 = vmatprep.subr.mxu0 0.0
        %1081 = vmatpush2.msra.mxu0 0.0
        %1082 = vmatprep.subr.mxu0 0.0
        %1083 = vmatpush2.msra.mxu0 0.0
        %1084 = vmatprep.subr.mxu0 0.0
        %1085 = vmatpush2.msra.mxu0 0.0
        %1086 = vmatprep.subr.mxu0 0.0
        %1087 = vmatpush2.msra.mxu0 0.0
        %1088 = vmatprep.subr.mxu0 0.0
        %1089 = vmatpush2.msra.mxu0 0.0
        %1090 = vmatprep.subr.mxu0 0.0
        %1091 = vmatpush2.msra.mxu0 0.0
        %1092 = vmatprep.subr.mxu0 0.0
        %1093 = vmatpush2.msra.mxu0 0.0
        %1094 = vmatprep.mubr.f32.mxu0 0.0
        %v1095 = vand.u32 %v1020, 4294901760
        %v1096 = vsub.f32 %v1020, %v1095
        %v1097 = vand.u32 %v1096, 4294901760
        %v1098 = vsub.f32 %v1096, %v1097
        %v1099 = vand.u32 %v1098, 4294901760
        %1100 = vmatmul.mubr.f32.gmra.mxu0 %v1099
        %v1101 = vpop.f32.mrf.mxu0
        %v1102 = vadd.f32 %v1011, %v1101
        %v1103 = vpop.f32.mrf.mxu0
        %1104 = vmatprep.mubr.f32.mxu0 0.0
        %v1105 = vand.u32 %v1023, 4294901760
        %v1106 = vsub.f32 %v1023, %v1105
        %v1107 = vand.u32 %v1106, 4294901760
        %v1108 = vsub.f32 %v1106, %v1107
        %v1109 = vand.u32 %v1108, 4294901760
        %1110 = vmatmul.mubr.f32.gmra.mxu0 %v1109
        %v1111 = vpop.f32.mrf.mxu0
        %v1112 = vadd.f32 %v1016, %v1111
        %v1113 = vpop.f32.mrf.mxu0
        %1114 = vdwg.mxu0
        %1115 = vmatprep.subr.mxu0 0.0
        %1116 = vmatpush1.msra.mxu0 0.0
        %1117 = vmatprep.subr.mxu0 0.0
        %1118 = vmatpush1.msra.mxu0 0.0
        %1119 = vmatprep.subr.mxu0 0.0
        %1120 = vmatpush1.msra.mxu0 0.0
        %1121 = vmatprep.subr.mxu0 0.0
        %1122 = vmatpush1.msra.mxu0 0.0
        %1123 = vmatprep.subr.mxu0 0.0
        %1124 = vmatpush1.msra.mxu0 0.0
        %1125 = vmatprep.subr.mxu0 0.0
        %1126 = vmatpush1.msra.mxu0 0.0
        %1127 = vmatprep.subr.mxu0 0.0
        %1128 = vmatpush1.msra.mxu0 0.0
        %1129 = vmatprep.subr.mxu0 0.0
        %1130 = vmatpush1.msra.mxu0 0.0
        %1131 = vmatprep.subr.mxu0 0.0
        %1132 = vmatpush1.msra.mxu0 0.0
        %1133 = vmatprep.subr.mxu0 0.0
        %1134 = vmatpush1.msra.mxu0 0.0
        %1135 = vmatprep.subr.mxu0 0.0
        %1136 = vmatpush1.msra.mxu0 0.0
        %1137 = vmatprep.subr.mxu0 0.0
        %1138 = vmatpush1.msra.mxu0 0.0
        %1139 = vmatprep.subr.mxu0 0.0
        %1140 = vmatpush1.msra.mxu0 0.0
        %1141 = vmatprep.subr.mxu0 0.0
        %1142 = vmatpush1.msra.mxu0 0.0
        %1143 = vmatprep.subr.mxu0 0.0
        %1144 = vmatpush1.msra.mxu0 0.0
        %1145 = vmatprep.subr.mxu0 0.0
        %v1146 = vand.u32 %v1027, 4294901760
        %v1147 = vsub.f32 %v1027, %v1146
        %v1148 = vand.u32 %v1147, 4294901760
        %v1149 = vsub.f32 %v1147, %v1148
        %v1150 = vand.u32 %v1149, 4294901760
        %1151 = vmatpush1.msra.mxu0 %v1150
        %1152 = vmatprep.subr.mxu0 0.0
        %1153 = vmatpush2.msra.mxu0 0.0
        %1154 = vmatprep.subr.mxu0 0.0
        %1155 = vmatpush2.msra.mxu0 0.0
        %1156 = vmatprep.subr.mxu0 0.0
        %1157 = vmatpush2.msra.mxu0 0.0
        %1158 = vmatprep.subr.mxu0 0.0
        %1159 = vmatpush2.msra.mxu0 0.0
        %1160 = vmatprep.subr.mxu0 0.0
        %1161 = vmatpush2.msra.mxu0 0.0
        %1162 = vmatprep.subr.mxu0 0.0
        %1163 = vmatpush2.msra.mxu0 0.0
        %1164 = vmatprep.subr.mxu0 0.0
        %1165 = vmatpush2.msra.mxu0 0.0
        %1166 = vmatprep.subr.mxu0 0.0
        %1167 = vmatpush2.msra.mxu0 0.0
        %1168 = vmatprep.subr.mxu0 0.0
        %1169 = vmatpush2.msra.mxu0 0.0
        %1170 = vmatprep.subr.mxu0 0.0
        %1171 = vmatpush2.msra.mxu0 0.0
        %1172 = vmatprep.subr.mxu0 0.0
        %1173 = vmatpush2.msra.mxu0 0.0
        %1174 = vmatprep.subr.mxu0 0.0
        %1175 = vmatpush2.msra.mxu0 0.0
        %1176 = vmatprep.subr.mxu0 0.0
        %1177 = vmatpush2.msra.mxu0 0.0
        %1178 = vmatprep.subr.mxu0 0.0
        %1179 = vmatpush2.msra.mxu0 0.0
        %1180 = vmatprep.subr.mxu0 0.0
        %1181 = vmatpush2.msra.mxu0 0.0
        %1182 = vmatprep.subr.mxu0 0.0
        %1183 = vmatpush2.msra.mxu0 0.0
        %1184 = vmatprep.mubr.f32.mxu0 0.0
        %v1185 = vand.u32 %v1020, 4294901760
        %1186 = vmatmul.mubr.f32.gmra.mxu0 %v1185
        %v1187 = vpop.f32.mrf.mxu0
        %v1188 = vadd.f32 %v1102, %v1187
        %v1189 = vpop.f32.mrf.mxu0
        %1190 = vmatprep.mubr.f32.mxu0 0.0
        %v1191 = vand.u32 %v1023, 4294901760
        %1192 = vmatmul.mubr.f32.gmra.mxu0 %v1191
        %v1193 = vpop.f32.mrf.mxu0
        %v1194 = vadd.f32 %v1112, %v1193
        %v1195 = vpop.f32.mrf.mxu0
        %1196 = vdwg.mxu0
        %1197 = vmatprep.subr.mxu0 0.0
        %1198 = vmatpush1.msra.mxu0 0.0
        %1199 = vmatprep.subr.mxu0 0.0
        %1200 = vmatpush1.msra.mxu0 0.0
        %1201 = vmatprep.subr.mxu0 0.0
        %1202 = vmatpush1.msra.mxu0 0.0
        %1203 = vmatprep.subr.mxu0 0.0
        %1204 = vmatpush1.msra.mxu0 0.0
        %1205 = vmatprep.subr.mxu0 0.0
        %1206 = vmatpush1.msra.mxu0 0.0
        %1207 = vmatprep.subr.mxu0 0.0
        %1208 = vmatpush1.msra.mxu0 0.0
        %1209 = vmatprep.subr.mxu0 0.0
        %1210 = vmatpush1.msra.mxu0 0.0
        %1211 = vmatprep.subr.mxu0 0.0
        %1212 = vmatpush1.msra.mxu0 0.0
        %1213 = vmatprep.subr.mxu0 0.0
        %1214 = vmatpush1.msra.mxu0 0.0
        %1215 = vmatprep.subr.mxu0 0.0
        %1216 = vmatpush1.msra.mxu0 0.0
        %1217 = vmatprep.subr.mxu0 0.0
        %1218 = vmatpush1.msra.mxu0 0.0
        %1219 = vmatprep.subr.mxu0 0.0
        %1220 = vmatpush1.msra.mxu0 0.0
        %1221 = vmatprep.subr.mxu0 0.0
        %1222 = vmatpush1.msra.mxu0 0.0
        %1223 = vmatprep.subr.mxu0 0.0
        %1224 = vmatpush1.msra.mxu0 0.0
        %1225 = vmatprep.subr.mxu0 0.0
        %1226 = vmatpush1.msra.mxu0 0.0
        %1227 = vmatprep.subr.mxu0 0.0
        %v1228 = vand.u32 %v1027, 4294901760
        %v1229 = vsub.f32 %v1027, %v1228
        %1230 = vmatpush1.msra.mxu0 %v1229
        %1231 = vmatprep.subr.mxu0 0.0
        %1232 = vmatpush2.msra.mxu0 0.0
        %1233 = vmatprep.subr.mxu0 0.0
        %1234 = vmatpush2.msra.mxu0 0.0
        %1235 = vmatprep.subr.mxu0 0.0
        %1236 = vmatpush2.msra.mxu0 0.0
        %1237 = vmatprep.subr.mxu0 0.0
        %1238 = vmatpush2.msra.mxu0 0.0
        %1239 = vmatprep.subr.mxu0 0.0
        %1240 = vmatpush2.msra.mxu0 0.0
        %1241 = vmatprep.subr.mxu0 0.0
        %1242 = vmatpush2.msra.mxu0 0.0
        %1243 = vmatprep.subr.mxu0 0.0
        %1244 = vmatpush2.msra.mxu0 0.0
        %1245 = vmatprep.subr.mxu0 0.0
        %1246 = vmatpush2.msra.mxu0 0.0
        %1247 = vmatprep.subr.mxu0 0.0
        %1248 = vmatpush2.msra.mxu0 0.0
        %1249 = vmatprep.subr.mxu0 0.0
        %1250 = vmatpush2.msra.mxu0 0.0
        %1251 = vmatprep.subr.mxu0 0.0
        %1252 = vmatpush2.msra.mxu0 0.0
        %1253 = vmatprep.subr.mxu0 0.0
        %1254 = vmatpush2.msra.mxu0 0.0
        %1255 = vmatprep.subr.mxu0 0.0
        %1256 = vmatpush2.msra.mxu0 0.0
        %1257 = vmatprep.subr.mxu0 0.0
        %1258 = vmatpush2.msra.mxu0 0.0
        %1259 = vmatprep.subr.mxu0 0.0
        %1260 = vmatpush2.msra.mxu0 0.0
        %1261 = vmatprep.subr.mxu0 0.0
        %1262 = vmatpush2.msra.mxu0 0.0
        %1263 = vmatprep.mubr.f32.mxu0 0.0
        %v1264 = vand.u32 %v1020, 4294901760
        %v1265 = vsub.f32 %v1020, %v1264
        %1266 = vmatmul.mubr.f32.gmra.mxu0 %v1265
        %v1267 = vpop.f32.mrf.mxu0
        %v1268 = vadd.f32 %v1188, %v1267
        %v1269 = vpop.f32.mrf.mxu0
        %1270 = vmatprep.mubr.f32.mxu0 0.0
        %v1271 = vand.u32 %v1023, 4294901760
        %v1272 = vsub.f32 %v1023, %v1271
        %1273 = vmatmul.mubr.f32.gmra.mxu0 %v1272
        %v1274 = vpop.f32.mrf.mxu0
        %v1275 = vadd.f32 %v1194, %v1274
        %v1276 = vpop.f32.mrf.mxu0
        %1277 = vdwg.mxu0
        %1278 = vmatprep.subr.mxu0 0.0
        %1279 = vmatpush1.msra.mxu0 0.0
        %1280 = vmatprep.subr.mxu0 0.0
        %1281 = vmatpush1.msra.mxu0 0.0
        %1282 = vmatprep.subr.mxu0 0.0
        %1283 = vmatpush1.msra.mxu0 0.0
        %1284 = vmatprep.subr.mxu0 0.0
        %1285 = vmatpush1.msra.mxu0 0.0
        %1286 = vmatprep.subr.mxu0 0.0
        %1287 = vmatpush1.msra.mxu0 0.0
        %1288 = vmatprep.subr.mxu0 0.0
        %1289 = vmatpush1.msra.mxu0 0.0
        %1290 = vmatprep.subr.mxu0 0.0
        %1291 = vmatpush1.msra.mxu0 0.0
        %1292 = vmatprep.subr.mxu0 0.0
        %1293 = vmatpush1.msra.mxu0 0.0
        %1294 = vmatprep.subr.mxu0 0.0
        %1295 = vmatpush1.msra.mxu0 0.0
        %1296 = vmatprep.subr.mxu0 0.0
        %1297 = vmatpush1.msra.mxu0 0.0
        %1298 = vmatprep.subr.mxu0 0.0
        %1299 = vmatpush1.msra.mxu0 0.0
        %1300 = vmatprep.subr.mxu0 0.0
        %1301 = vmatpush1.msra.mxu0 0.0
        %1302 = vmatprep.subr.mxu0 0.0
        %1303 = vmatpush1.msra.mxu0 0.0
        %1304 = vmatprep.subr.mxu0 0.0
        %1305 = vmatpush1.msra.mxu0 0.0
        %1306 = vmatprep.subr.mxu0 0.0
        %1307 = vmatpush1.msra.mxu0 0.0
        %1308 = vmatprep.subr.mxu0 0.0
        %v1309 = vand.u32 %v1027, 4294901760
        %1310 = vmatpush1.msra.mxu0 %v1309
        %1311 = vmatprep.subr.mxu0 0.0
        %1312 = vmatpush2.msra.mxu0 0.0
        %1313 = vmatprep.subr.mxu0 0.0
        %1314 = vmatpush2.msra.mxu0 0.0
        %1315 = vmatprep.subr.mxu0 0.0
        %1316 = vmatpush2.msra.mxu0 0.0
        %1317 = vmatprep.subr.mxu0 0.0
        %1318 = vmatpush2.msra.mxu0 0.0
        %1319 = vmatprep.subr.mxu0 0.0
        %1320 = vmatpush2.msra.mxu0 0.0
        %1321 = vmatprep.subr.mxu0 0.0
        %1322 = vmatpush2.msra.mxu0 0.0
        %1323 = vmatprep.subr.mxu0 0.0
        %1324 = vmatpush2.msra.mxu0 0.0
        %1325 = vmatprep.subr.mxu0 0.0
        %1326 = vmatpush2.msra.mxu0 0.0
        %1327 = vmatprep.subr.mxu0 0.0
        %1328 = vmatpush2.msra.mxu0 0.0
        %1329 = vmatprep.subr.mxu0 0.0
        %1330 = vmatpush2.msra.mxu0 0.0
        %1331 = vmatprep.subr.mxu0 0.0
        %1332 = vmatpush2.msra.mxu0 0.0
        %1333 = vmatprep.subr.mxu0 0.0
        %1334 = vmatpush2.msra.mxu0 0.0
        %1335 = vmatprep.subr.mxu0 0.0
        %1336 = vmatpush2.msra.mxu0 0.0
        %1337 = vmatprep.subr.mxu0 0.0
        %1338 = vmatpush2.msra.mxu0 0.0
        %1339 = vmatprep.subr.mxu0 0.0
        %1340 = vmatpush2.msra.mxu0 0.0
        %1341 = vmatprep.subr.mxu0 0.0
        %1342 = vmatpush2.msra.mxu0 0.0
        %1343 = vmatprep.mubr.f32.mxu0 0.0
        %v1344 = vand.u32 %v1020, 4294901760
        %v1345 = vsub.f32 %v1020, %v1344
        %v1346 = vand.u32 %v1345, 4294901760
        %1347 = vmatmul.mubr.f32.gmra.mxu0 %v1346
        %v1348 = vpop.f32.mrf.mxu0
        %v1349 = vadd.f32 %v1268, %v1348
        %v1350 = vpop.f32.mrf.mxu0
        %1351 = vmatprep.mubr.f32.mxu0 0.0
        %v1352 = vand.u32 %v1023, 4294901760
        %v1353 = vsub.f32 %v1023, %v1352
        %v1354 = vand.u32 %v1353, 4294901760
        %1355 = vmatmul.mubr.f32.gmra.mxu0 %v1354
        %v1356 = vpop.f32.mrf.mxu0
        %v1357 = vadd.f32 %v1275, %v1356
        %v1358 = vpop.f32.mrf.mxu0
        %1359 = vdwg.mxu0
        %1360 = vmatprep.subr.mxu0 0.0
        %1361 = vmatpush1.msra.mxu0 0.0
        %1362 = vmatprep.subr.mxu0 0.0
        %1363 = vmatpush1.msra.mxu0 0.0
        %1364 = vmatprep.subr.mxu0 0.0
        %1365 = vmatpush1.msra.mxu0 0.0
        %1366 = vmatprep.subr.mxu0 0.0
        %1367 = vmatpush1.msra.mxu0 0.0
        %1368 = vmatprep.subr.mxu0 0.0
        %1369 = vmatpush1.msra.mxu0 0.0
        %1370 = vmatprep.subr.mxu0 0.0
        %1371 = vmatpush1.msra.mxu0 0.0
        %1372 = vmatprep.subr.mxu0 0.0
        %1373 = vmatpush1.msra.mxu0 0.0
        %1374 = vmatprep.subr.mxu0 0.0
        %1375 = vmatpush1.msra.mxu0 0.0
        %1376 = vmatprep.subr.mxu0 0.0
        %1377 = vmatpush1.msra.mxu0 0.0
        %1378 = vmatprep.subr.mxu0 0.0
        %1379 = vmatpush1.msra.mxu0 0.0
        %1380 = vmatprep.subr.mxu0 0.0
        %1381 = vmatpush1.msra.mxu0 0.0
        %1382 = vmatprep.subr.mxu0 0.0
        %1383 = vmatpush1.msra.mxu0 0.0
        %1384 = vmatprep.subr.mxu0 0.0
        %1385 = vmatpush1.msra.mxu0 0.0
        %1386 = vmatprep.subr.mxu0 0.0
        %1387 = vmatpush1.msra.mxu0 0.0
        %1388 = vmatprep.subr.mxu0 0.0
        %1389 = vmatpush1.msra.mxu0 0.0
        %1390 = vmatprep.subr.mxu0 0.0
        %v1391 = vand.u32 %v1027, 4294901760
        %v1392 = vsub.f32 %v1027, %v1391
        %v1393 = vand.u32 %v1392, 4294901760
        %1394 = vmatpush1.msra.mxu0 %v1393
        %1395 = vmatprep.subr.mxu0 0.0
        %1396 = vmatpush2.msra.mxu0 0.0
        %1397 = vmatprep.subr.mxu0 0.0
        %1398 = vmatpush2.msra.mxu0 0.0
        %1399 = vmatprep.subr.mxu0 0.0
        %1400 = vmatpush2.msra.mxu0 0.0
        %1401 = vmatprep.subr.mxu0 0.0
        %1402 = vmatpush2.msra.mxu0 0.0
        %1403 = vmatprep.subr.mxu0 0.0
        %1404 = vmatpush2.msra.mxu0 0.0
        %1405 = vmatprep.subr.mxu0 0.0
        %1406 = vmatpush2.msra.mxu0 0.0
        %1407 = vmatprep.subr.mxu0 0.0
        %1408 = vmatpush2.msra.mxu0 0.0
        %1409 = vmatprep.subr.mxu0 0.0
        %1410 = vmatpush2.msra.mxu0 0.0
        %1411 = vmatprep.subr.mxu0 0.0
        %1412 = vmatpush2.msra.mxu0 0.0
        %1413 = vmatprep.subr.mxu0 0.0
        %1414 = vmatpush2.msra.mxu0 0.0
        %1415 = vmatprep.subr.mxu0 0.0
        %1416 = vmatpush2.msra.mxu0 0.0
        %1417 = vmatprep.subr.mxu0 0.0
        %1418 = vmatpush2.msra.mxu0 0.0
        %1419 = vmatprep.subr.mxu0 0.0
        %1420 = vmatpush2.msra.mxu0 0.0
        %1421 = vmatprep.subr.mxu0 0.0
        %1422 = vmatpush2.msra.mxu0 0.0
        %1423 = vmatprep.subr.mxu0 0.0
        %1424 = vmatpush2.msra.mxu0 0.0
        %1425 = vmatprep.subr.mxu0 0.0
        %1426 = vmatpush2.msra.mxu0 0.0
        %1427 = vmatprep.mubr.f32.mxu0 0.0
        %v1428 = vand.u32 %v1020, 4294901760
        %1429 = vmatmul.mubr.f32.gmra.mxu0 %v1428
        %v1430 = vpop.f32.mrf.mxu0
        %v1431 = vadd.f32 %v1349, %v1430
        %v1432 = vpop.f32.mrf.mxu0
        %1433 = vmatprep.mubr.f32.mxu0 0.0
        %v1434 = vand.u32 %v1023, 4294901760
        %1435 = vmatmul.mubr.f32.gmra.mxu0 %v1434
        %v1436 = vpop.f32.mrf.mxu0
        %v1437 = vadd.f32 %v1357, %v1436
        %v1438 = vpop.f32.mrf.mxu0
        %1439 = vdwg.mxu0
        %1440 = vmatprep.subr.mxu0 0.0
        %1441 = vmatpush1.msra.mxu0 0.0
        %1442 = vmatprep.subr.mxu0 0.0
        %1443 = vmatpush1.msra.mxu0 0.0
        %1444 = vmatprep.subr.mxu0 0.0
        %1445 = vmatpush1.msra.mxu0 0.0
        %1446 = vmatprep.subr.mxu0 0.0
        %1447 = vmatpush1.msra.mxu0 0.0
        %1448 = vmatprep.subr.mxu0 0.0
        %1449 = vmatpush1.msra.mxu0 0.0
        %1450 = vmatprep.subr.mxu0 0.0
        %1451 = vmatpush1.msra.mxu0 0.0
        %1452 = vmatprep.subr.mxu0 0.0
        %1453 = vmatpush1.msra.mxu0 0.0
        %1454 = vmatprep.subr.mxu0 0.0
        %1455 = vmatpush1.msra.mxu0 0.0
        %1456 = vmatprep.subr.mxu0 0.0
        %1457 = vmatpush1.msra.mxu0 0.0
        %1458 = vmatprep.subr.mxu0 0.0
        %1459 = vmatpush1.msra.mxu0 0.0
        %1460 = vmatprep.subr.mxu0 0.0
        %1461 = vmatpush1.msra.mxu0 0.0
        %1462 = vmatprep.subr.mxu0 0.0
        %1463 = vmatpush1.msra.mxu0 0.0
        %1464 = vmatprep.subr.mxu0 0.0
        %1465 = vmatpush1.msra.mxu0 0.0
        %1466 = vmatprep.subr.mxu0 0.0
        %1467 = vmatpush1.msra.mxu0 0.0
        %1468 = vmatprep.subr.mxu0 0.0
        %1469 = vmatpush1.msra.mxu0 0.0
        %1470 = vmatprep.subr.mxu0 0.0
        %v1471 = vand.u32 %v1027, 4294901760
        %1472 = vmatpush1.msra.mxu0 %v1471
        %1473 = vmatprep.subr.mxu0 0.0
        %1474 = vmatpush2.msra.mxu0 0.0
        %1475 = vmatprep.subr.mxu0 0.0
        %1476 = vmatpush2.msra.mxu0 0.0
        %1477 = vmatprep.subr.mxu0 0.0
        %1478 = vmatpush2.msra.mxu0 0.0
        %1479 = vmatprep.subr.mxu0 0.0
        %1480 = vmatpush2.msra.mxu0 0.0
        %1481 = vmatprep.subr.mxu0 0.0
        %1482 = vmatpush2.msra.mxu0 0.0
        %1483 = vmatprep.subr.mxu0 0.0
        %1484 = vmatpush2.msra.mxu0 0.0
        %1485 = vmatprep.subr.mxu0 0.0
        %1486 = vmatpush2.msra.mxu0 0.0
        %1487 = vmatprep.subr.mxu0 0.0
        %1488 = vmatpush2.msra.mxu0 0.0
        %1489 = vmatprep.subr.mxu0 0.0
        %1490 = vmatpush2.msra.mxu0 0.0
        %1491 = vmatprep.subr.mxu0 0.0
        %1492 = vmatpush2.msra.mxu0 0.0
        %1493 = vmatprep.subr.mxu0 0.0
        %1494 = vmatpush2.msra.mxu0 0.0
        %1495 = vmatprep.subr.mxu0 0.0
        %1496 = vmatpush2.msra.mxu0 0.0
        %1497 = vmatprep.subr.mxu0 0.0
        %1498 = vmatpush2.msra.mxu0 0.0
        %1499 = vmatprep.subr.mxu0 0.0
        %1500 = vmatpush2.msra.mxu0 0.0
        %1501 = vmatprep.subr.mxu0 0.0
        %1502 = vmatpush2.msra.mxu0 0.0
        %1503 = vmatprep.subr.mxu0 0.0
        %1504 = vmatpush2.msra.mxu0 0.0
        %1505 = vmatprep.mubr.f32.mxu0 0.0
        %v1506 = vand.u32 %v1020, 4294901760
        %1507 = vmatmul.mubr.f32.gmra.mxu0 %v1506
        %v1508 = vpop.f32.mrf.mxu0
        %v1509 = vadd.f32 %v1431, %v1508
        %v1510 = vpop.f32.mrf.mxu0
        %1511 = vmatprep.mubr.f32.mxu0 0.0
        %v1512 = vand.u32 %v1023, 4294901760
        %1513 = vmatmul.mubr.f32.gmra.mxu0 %v1512
        %v1514 = vpop.f32.mrf.mxu0
        %v1515 = vadd.f32 %v1437, %v1514
        %v1516 = vpop.f32.mrf.mxu0
        %1517 = vdwg.mxu0
        %1520 = vrot.lane.b32.xlu0 %v1509, 127
        %v1521 = vpop.permute.xlu0 %1520
        %1522 = vrot.lane.b32.xlu0 %v1515, 127
        %v1523 = vpop.permute.xlu0 %1522
        %v1526 = vadd.f32 %v1509, %v1521
        %v1527 = vadd.f32 %v1515, %v1523
        %v1528 = vsub.f32 0.0, %v1526
        %v1529 = vsub.f32 0.0, %v1527
        %v1530 = vmul.f32 %v1528, 1.442695
        %v1531 = vpow.pop %v1530
        %v1532 = vmul.f32 %v1529, 1.442695
        %v1533 = vpow.pop %v1532
        %v1534 = vadd.f32 %v1531, 1.0
        %v1535 = vadd.f32 %v1533, 1.0
        %v1536 = vrcp.pop %v1534
        %v1537 = vmul.f32 1.0, %v1536
        %v1538 = vrcp.pop %v1535
        %v1539 = vmul.f32 1.0, %v1538
        %1541 = vset.pattern.permute.xlu0 0
        %1542 = vperm.xlu0 %1541, %v1537
        %v1543 = vpop.permute.xlu0 %1542
        %1546 = vset.pattern.permute.xlu0 0
        %1547 = vperm.xlu0 %1546, %v1539
        %v1548 = vpop.permute.xlu0 %1547
        %v1550 = vmul.f32 %v473, %v1543
        %v1551 = vmul.f32 %v474, %v1543
        %v1552 = vmul.f32 %v475, %v1543
        %v1553 = vmul.f32 %v476, %v1548
        %v1554 = vmul.f32 %v477, %v1548
        %v1555 = vmul.f32 %v478, %v1548
        %v1556 = vadd.f32 %v1550, %v1553
        %v1557 = vrot.slane %v1556, 4
        %v1558 = vadd.f32 %v1556, %v1557
        %v1559 = vrot.slane %v1558, 2
        %v1560 = vadd.f32 %v1558, %v1559
        %v1561 = vrot.slane %v1560, 1
        %v1562 = vadd.f32 %v1560, %v1561
        %v1563 = vadd.f32 %v1551, %v1554
        %v1564 = vrot.slane %v1563, 4
        %v1565 = vadd.f32 %v1563, %v1564
        %v1566 = vrot.slane %v1565, 2
        %v1567 = vadd.f32 %v1565, %v1566
        %v1568 = vrot.slane %v1567, 1
        %v1569 = vadd.f32 %v1567, %v1568
        %v1570 = vsel %vm480, %v1552, 0.0
        %v1571 = vsel %vm480, %v1555, 0.0
        %v1572 = vadd.f32 %v1570, %v1571
        %v1573 = vrot.slane %v1572, 4
        %v1574 = vadd.f32 %v1572, %v1573
        %v1575 = vrot.slane %v1574, 2
        %v1576 = vadd.f32 %v1574, %v1575
        %v1577 = vrot.slane %v1576, 1
        %v1578 = vadd.f32 %v1576, %v1577
        %v1579 = vrcp.pop 16.0
        %v1580 = vmul.f32 %v1562, %v1579
        %v1581 = vmul.f32 %v1569, %v1579
        %v1582 = vmul.f32 %v1578, %v1579
        %v1583 = vmax.f32 %v1550, %v1553
        %v1584 = vrot.slane %v1583, 4
        %v1585 = vmax.f32 %v1583, %v1584
        %v1586 = vrot.slane %v1585, 2
        %v1587 = vmax.f32 %v1585, %v1586
        %v1588 = vrot.slane %v1587, 1
        %v1589 = vmax.f32 %v1587, %v1588
        %v1590 = vmax.f32 %v1551, %v1554
        %v1591 = vrot.slane %v1590, 4
        %v1592 = vmax.f32 %v1590, %v1591
        %v1593 = vrot.slane %v1592, 2
        %v1594 = vmax.f32 %v1592, %v1593
        %v1595 = vrot.slane %v1594, 1
        %v1596 = vmax.f32 %v1594, %v1595
        %v1597 = vsel %vm480, %v1552, -inf
        %v1598 = vsel %vm480, %v1555, -inf
        %v1599 = vmax.f32 %v1597, %v1598
        %v1600 = vrot.slane %v1599, 4
        %v1601 = vmax.f32 %v1599, %v1600
        %v1602 = vrot.slane %v1601, 2
        %v1603 = vmax.f32 %v1601, %v1602
        %v1604 = vrot.slane %v1603, 1
        %v1605 = vmax.f32 %v1603, %v1604
        %s1606 = sld [smem:[#allocation10]]
        %v1607 = vstv %s1606
        %v1608 = vmul.f32 %v1607, %v1580
        %v1609 = vmul.f32 %v1607, %v1581
        %v1610 = vmul.f32 %v1607, %v1582
        %v1611 = vadd.f32 %v1608, 0.0
        %v1612 = vadd.f32 %v1609, 0.0
        %v1613 = vadd.f32 %v1610, 0.0
        %s1614 = sld [smem:[#allocation10 + $0x9]]
        %v1615 = vstv %s1614
        %v1616 = vmul.f32 %v1615, %v1589
        %v1617 = vmul.f32 %v1615, %v1596
        %v1618 = vmul.f32 %v1615, %v1605
        %v1619 = vadd.f32 %v1611, %v1616
        %v1620 = vadd.f32 %v1612, %v1617
        %v1621 = vadd.f32 %v1613, %v1618
        %s1622 = sld [smem:[#allocation10 + $0x1]]
        %v1623 = vstv %s1622
        %v1624 = vmul.f32 %v1623, %v1580
        %v1625 = vmul.f32 %v1623, %v1581
        %v1626 = vmul.f32 %v1623, %v1582
        %1630 = vrot.lane.b32.xlu0 %v1624, 127
        %v1631 = vpop.permute.xlu0 %1630
        %1632 = vrot.lane.b32.xlu0 %v1625, 127
        %v1633 = vpop.permute.xlu0 %1632
        %1634 = vrot.lane.b32.xlu0 %v1626, 127
        %v1635 = vpop.permute.xlu0 %1634
        %vm1636 = vcmask 1039360
        %v1637 = vsel %vm1636, %v1631, %v1633
        %v1638 = vsel %vm1636, %v1633, %v1635
        %v1642 = vadd.f32 %v1619, %v1637
        %v1643 = vadd.f32 %v1620, %v1638
        %v1644 = vadd.f32 %v1621, %v1635
        %s1645 = sld [smem:[#allocation10 + $0xa]]
        %v1646 = vstv %s1645
        %v1647 = vmul.f32 %v1646, %v1589
        %v1648 = vmul.f32 %v1646, %v1596
        %v1649 = vmul.f32 %v1646, %v1605
        %1653 = vrot.lane.b32.xlu0 %v1647, 127
        %v1654 = vpop.permute.xlu0 %1653
        %1655 = vrot.lane.b32.xlu0 %v1648, 127
        %v1656 = vpop.permute.xlu0 %1655
        %1657 = vrot.lane.b32.xlu0 %v1649, 127
        %v1658 = vpop.permute.xlu0 %1657
        %v1659 = vsel %vm1636, %v1654, %v1656
        %v1660 = vsel %vm1636, %v1656, %v1658
        %v1664 = vadd.f32 %v1642, %v1659
        %v1665 = vadd.f32 %v1643, %v1660
        %v1666 = vadd.f32 %v1644, %v1658
        %s1667 = sld [smem:[#allocation10 + $0x2]]
        %v1668 = vstv %s1667
        %v1669 = vmul.f32 %v1668, %v1580
        %v1670 = vmul.f32 %v1668, %v1581
        %v1671 = vmul.f32 %v1668, %v1582
        %1675 = vrot.lane.b32.xlu0 %v1669, 126
        %v1676 = vpop.permute.xlu0 %1675
        %1677 = vrot.lane.b32.xlu0 %v1670, 126
        %v1678 = vpop.permute.xlu0 %1677
        %1679 = vrot.lane.b32.xlu0 %v1671, 126
        %v1680 = vpop.permute.xlu0 %1679
        %vm1681 = vcmask 1031168
        %v1682 = vsel %vm1681, %v1676, %v1678
        %v1683 = vsel %vm1681, %v1678, %v1680
        %v1687 = vadd.f32 %v1664, %v1682
        %v1688 = vadd.f32 %v1665, %v1683
        %v1689 = vadd.f32 %v1666, %v1680
        %s1690 = sld [smem:[#allocation10 + $0xb]]
        %v1691 = vstv %s1690
        %v1692 = vmul.f32 %v1691, %v1589
        %v1693 = vmul.f32 %v1691, %v1596
        %v1694 = vmul.f32 %v1691, %v1605
        %1698 = vrot.lane.b32.xlu0 %v1692, 126
        %v1699 = vpop.permute.xlu0 %1698
        %1700 = vrot.lane.b32.xlu0 %v1693, 126
        %v1701 = vpop.permute.xlu0 %1700
        %1702 = vrot.lane.b32.xlu0 %v1694, 126
        %v1703 = vpop.permute.xlu0 %1702
        %v1704 = vsel %vm1681, %v1699, %v1701
        %v1705 = vsel %vm1681, %v1701, %v1703
        %v1709 = vadd.f32 %v1687, %v1704
        %v1710 = vadd.f32 %v1688, %v1705
        %v1711 = vadd.f32 %v1689, %v1703
        %s1712 = sld [smem:[#allocation10 + $0x3]]
        %v1713 = vstv %s1712
        %v1714 = vmul.f32 %v1713, %v1580
        %v1715 = vmul.f32 %v1713, %v1581
        %v1716 = vmul.f32 %v1713, %v1582
        %1720 = vrot.lane.b32.xlu0 %v1714, 110
        %v1721 = vpop.permute.xlu0 %1720
        %1722 = vrot.lane.b32.xlu0 %v1715, 110
        %v1723 = vpop.permute.xlu0 %1722
        %1724 = vrot.lane.b32.xlu0 %v1716, 110
        %v1725 = vpop.permute.xlu0 %1724
        %vm1726 = vcmask 900096
        %v1727 = vsel %vm1726, %v1721, %v1723
        %v1728 = vsel %vm1726, %v1723, %v1725
        %v1732 = vadd.f32 %v1709, %v1727
        %v1733 = vadd.f32 %v1710, %v1728
        %v1734 = vadd.f32 %v1711, %v1725
        %s1735 = sld [smem:[#allocation10 + $0xc]]
        %v1736 = vstv %s1735
        %v1737 = vmul.f32 %v1736, %v1589
        %v1738 = vmul.f32 %v1736, %v1596
        %v1739 = vmul.f32 %v1736, %v1605
        %1743 = vrot.lane.b32.xlu0 %v1737, 110
        %v1744 = vpop.permute.xlu0 %1743
        %1745 = vrot.lane.b32.xlu0 %v1738, 110
        %v1746 = vpop.permute.xlu0 %1745
        %1747 = vrot.lane.b32.xlu0 %v1739, 110
        %v1748 = vpop.permute.xlu0 %1747
        %v1749 = vsel %vm1726, %v1744, %v1746
        %v1750 = vsel %vm1726, %v1746, %v1748
        %v1754 = vadd.f32 %v1732, %v1749
        %v1755 = vadd.f32 %v1733, %v1750
        %v1756 = vadd.f32 %v1734, %v1748
        %s1757 = sld [smem:[#allocation10 + $0x4]]
        %v1758 = vstv %s1757
        %v1759 = vmul.f32 %v1758, %v1580
        %v1760 = vmul.f32 %v1758, %v1581
        %v1761 = vmul.f32 %v1758, %v1582
        %1765 = vrot.lane.b32.xlu0 %v1759, 109
        %v1766 = vpop.permute.xlu0 %1765
        %1767 = vrot.lane.b32.xlu0 %v1760, 109
        %v1768 = vpop.permute.xlu0 %1767
        %1769 = vrot.lane.b32.xlu0 %v1761, 109
        %v1770 = vpop.permute.xlu0 %1769
        %vm1771 = vcmask 891904
        %v1772 = vsel %vm1771, %v1766, %v1768
        %v1773 = vsel %vm1771, %v1768, %v1770
        %v1777 = vadd.f32 %v1754, %v1772
        %v1778 = vadd.f32 %v1755, %v1773
        %v1779 = vadd.f32 %v1756, %v1770
        %s1780 = sld [smem:[#allocation10 + $0xd]]
        %v1781 = vstv %s1780
        %v1782 = vmul.f32 %v1781, %v1589
        %v1783 = vmul.f32 %v1781, %v1596
        %v1784 = vmul.f32 %v1781, %v1605
        %1788 = vrot.lane.b32.xlu0 %v1782, 109
        %v1789 = vpop.permute.xlu0 %1788
        %1790 = vrot.lane.b32.xlu0 %v1783, 109
        %v1791 = vpop.permute.xlu0 %1790
        %1792 = vrot.lane.b32.xlu0 %v1784, 109
        %v1793 = vpop.permute.xlu0 %1792
        %v1794 = vsel %vm1771, %v1789, %v1791
        %v1795 = vsel %vm1771, %v1791, %v1793
        %v1799 = vadd.f32 %v1777, %v1794
        %v1800 = vadd.f32 %v1778, %v1795
        %v1801 = vadd.f32 %v1779, %v1793
        %s1802 = sld [smem:[#allocation10 + $0x5]]
        %v1803 = vstv %s1802
        %v1804 = vmul.f32 %v1803, %v1580
        %v1805 = vmul.f32 %v1803, %v1581
        %v1806 = vmul.f32 %v1803, %v1582
        %1810 = vrot.lane.b32.xlu0 %v1804, 108
        %v1811 = vpop.permute.xlu0 %1810
        %1812 = vrot.lane.b32.xlu0 %v1805, 108
        %v1813 = vpop.permute.xlu0 %1812
        %1814 = vrot.lane.b32.xlu0 %v1806, 108
        %v1815 = vpop.permute.xlu0 %1814
        %vm1816 = vcmask 883712
        %v1817 = vsel %vm1816, %v1811, %v1813
        %v1818 = vsel %vm1816, %v1813, %v1815
        %v1822 = vadd.f32 %v1799, %v1817
        %v1823 = vadd.f32 %v1800, %v1818
        %v1824 = vadd.f32 %v1801, %v1815
        %s1825 = sld [smem:[#allocation10 + $0xe]]
        %v1826 = vstv %s1825
        %v1827 = vmul.f32 %v1826, %v1589
        %v1828 = vmul.f32 %v1826, %v1596
        %v1829 = vmul.f32 %v1826, %v1605
        %1833 = vrot.lane.b32.xlu0 %v1827, 108
        %v1834 = vpop.permute.xlu0 %1833
        %1835 = vrot.lane.b32.xlu0 %v1828, 108
        %v1836 = vpop.permute.xlu0 %1835
        %1837 = vrot.lane.b32.xlu0 %v1829, 108
        %v1838 = vpop.permute.xlu0 %1837
        %v1839 = vsel %vm1816, %v1834, %v1836
        %v1840 = vsel %vm1816, %v1836, %v1838
        %v1844 = vadd.f32 %v1822, %v1839
        %v1845 = vadd.f32 %v1823, %v1840
        %v1846 = vadd.f32 %v1824, %v1838
        %s1847 = sld [smem:[#allocation10 + $0x6]]
        %v1848 = vstv %s1847
        %v1849 = vmul.f32 %v1848, %v1580
        %v1850 = vmul.f32 %v1848, %v1581
        %v1851 = vmul.f32 %v1848, %v1582
        %1855 = vrot.lane.b32.xlu0 %v1849, 92
        %v1856 = vpop.permute.xlu0 %1855
        %1857 = vrot.lane.b32.xlu0 %v1850, 92
        %v1858 = vpop.permute.xlu0 %1857
        %1859 = vrot.lane.b32.xlu0 %v1851, 92
        %v1860 = vpop.permute.xlu0 %1859
        %vm1861 = vcmask 752640
        %v1862 = vsel %vm1861, %v1856, %v1858
        %v1863 = vsel %vm1861, %v1858, %v1860
        %v1867 = vadd.f32 %v1844, %v1862
        %v1868 = vadd.f32 %v1845, %v1863
        %v1869 = vadd.f32 %v1846, %v1860
        %s1870 = sld [smem:[#allocation10 + $0xf]]
        %v1871 = vstv %s1870
        %v1872 = vmul.f32 %v1871, %v1589
        %v1873 = vmul.f32 %v1871, %v1596
        %v1874 = vmul.f32 %v1871, %v1605
        %1878 = vrot.lane.b32.xlu0 %v1872, 92
        %v1879 = vpop.permute.xlu0 %1878
        %1880 = vrot.lane.b32.xlu0 %v1873, 92
        %v1881 = vpop.permute.xlu0 %1880
        %1882 = vrot.lane.b32.xlu0 %v1874, 92
        %v1883 = vpop.permute.xlu0 %1882
        %v1884 = vsel %vm1861, %v1879, %v1881
        %v1885 = vsel %vm1861, %v1881, %v1883
        %v1889 = vadd.f32 %v1867, %v1884
        %v1890 = vadd.f32 %v1868, %v1885
        %v1891 = vadd.f32 %v1869, %v1883
        %s1892 = sld [smem:[#allocation10 + $0x7]]
        %v1893 = vstv %s1892
        %v1894 = vmul.f32 %v1893, %v1580
        %v1895 = vmul.f32 %v1893, %v1581
        %v1896 = vmul.f32 %v1893, %v1582
        %1900 = vrot.lane.b32.xlu0 %v1894, 91
        %v1901 = vpop.permute.xlu0 %1900
        %1902 = vrot.lane.b32.xlu0 %v1895, 91
        %v1903 = vpop.permute.xlu0 %1902
        %1904 = vrot.lane.b32.xlu0 %v1896, 91
        %v1905 = vpop.permute.xlu0 %1904
        %vm1906 = vcmask 744448
        %v1907 = vsel %vm1906, %v1901, %v1903
        %v1908 = vsel %vm1906, %v1903, %v1905
        %v1912 = vadd.f32 %v1889, %v1907
        %v1913 = vadd.f32 %v1890, %v1908
        %v1914 = vadd.f32 %v1891, %v1905
        %s1915 = sld [smem:[#allocation10 + $0x10]]
        %v1916 = vstv %s1915
        %v1917 = vmul.f32 %v1916, %v1589
        %v1918 = vmul.f32 %v1916, %v1596
        %v1919 = vmul.f32 %v1916, %v1605
        %1923 = vrot.lane.b32.xlu0 %v1917, 91
        %v1924 = vpop.permute.xlu0 %1923
        %1925 = vrot.lane.b32.xlu0 %v1918, 91
        %v1926 = vpop.permute.xlu0 %1925
        %1927 = vrot.lane.b32.xlu0 %v1919, 91
        %v1928 = vpop.permute.xlu0 %1927
        %v1929 = vsel %vm1906, %v1924, %v1926
        %v1930 = vsel %vm1906, %v1926, %v1928
        %v1934 = vadd.f32 %v1912, %v1929
        %v1935 = vadd.f32 %v1913, %v1930
        %v1936 = vadd.f32 %v1914, %v1928
        %s1937 = sld [smem:[#allocation10 + $0x8]]
        %v1938 = vstv %s1937
        %v1939 = vmul.f32 %v1938, %v1580
        %v1940 = vmul.f32 %v1938, %v1581
        %v1941 = vmul.f32 %v1938, %v1582
        %1945 = vrot.lane.b32.xlu0 %v1939, 90
        %v1946 = vpop.permute.xlu0 %1945
        %1947 = vrot.lane.b32.xlu0 %v1940, 90
        %v1948 = vpop.permute.xlu0 %1947
        %1949 = vrot.lane.b32.xlu0 %v1941, 90
        %v1950 = vpop.permute.xlu0 %1949
        %vm1951 = vcmask 736256
        %v1952 = vsel %vm1951, %v1946, %v1948
        %v1953 = vsel %vm1951, %v1948, %v1950
        %v1957 = vadd.f32 %v1934, %v1952
        %v1958 = vadd.f32 %v1935, %v1953
        %v1959 = vadd.f32 %v1936, %v1950
        %s1960 = sld [smem:[#allocation10 + $0x11]]
        %v1961 = vstv %s1960
        %v1962 = vmul.f32 %v1961, %v1589
        %v1963 = vmul.f32 %v1961, %v1596
        %v1964 = vmul.f32 %v1961, %v1605
        %1968 = vrot.lane.b32.xlu0 %v1962, 90
        %v1969 = vpop.permute.xlu0 %1968
        %1970 = vrot.lane.b32.xlu0 %v1963, 90
        %v1971 = vpop.permute.xlu0 %1970
        %1972 = vrot.lane.b32.xlu0 %v1964, 90
        %v1973 = vpop.permute.xlu0 %1972
        %v1974 = vsel %vm1951, %v1969, %v1971
        %v1975 = vsel %vm1951, %v1971, %v1973
        %v1979 = vadd.f32 %v1957, %v1974
        %v1980 = vadd.f32 %v1958, %v1975
        %v1981 = vadd.f32 %v1959, %v1973
        %s1982 = sld [smem:[#allocation5]]
        %v1983 = vstv %s1982
        %v1984 = vadd.f32 %v1979, %v1983
        %v1985 = vadd.f32 %v1980, %v1983
        %v1986 = vadd.f32 %v1981, %v1983
        %v1987 = vsub.f32 0.0, %v1984
        %v1988 = vsub.f32 0.0, %v1985
        %v1989 = vsub.f32 0.0, %v1986
        %v1990 = vmul.f32 %v1987, 1.442695
        %v1991 = vpow.pop %v1990
        %v1992 = vmul.f32 %v1988, 1.442695
        %v1993 = vpow.pop %v1992
        %v1994 = vmul.f32 %v1989, 1.442695
        %v1995 = vpow.pop %v1994
        %v1996 = vadd.f32 %v1991, 1.0
        %v1997 = vadd.f32 %v1993, 1.0
        %v1998 = vadd.f32 %v1995, 1.0
        %v1999 = vrcp.pop %v1996
        %v2000 = vmul.f32 1.0, %v1999
        %v2001 = vrcp.pop %v1997
        %v2002 = vmul.f32 1.0, %v2001
        %v2003 = vrcp.pop %v1998
        %v2004 = vmul.f32 1.0, %v2003
        %vm2005 = vcmask 154624
        %2006 = vst.msk [vmem:[#allocation3] sm:$0xff] %vm2005, 0.0
        %2007 = vst.msk [vmem:[#allocation3 + $0x18] sm:$0xff] %vm2005, 0.0
        %vm2008 = vcmask 556424
        %2009 = vst.msk [vmem:[#allocation3 + $0x10] sm:$0xff] %vm2008, 0.0
        %2010 = vst.msk [vmem:[#allocation3 + $0x28] sm:$0xff] %vm2008, 0.0
        %v2011 = vlaneseq
        %v2012 = vshrl.u32 %v2011, 7
        %v2013 = vsub.s32 0, %v2012
        %v2014 = vrot.slane %v2000, %v2013
        %v2015 = vlaneseq
        %v2016 = vshrl.u32 %v2015, 7
        %v2017 = vsub.s32 0, %v2016
        %v2018 = vrot.slane %v2002, %v2017
        %v2019 = vlaneseq
        %v2020 = vshrl.u32 %v2019, 7
        %v2021 = vsub.s32 0, %v2020
        %v2022 = vrot.slane %v2004, %v2021
        %2026 = vrot.lane.b32.xlu0 %v2014, 19
        %v2027 = vpop.permute.xlu0 %2026
        %2028 = vrot.lane.b32.xlu0 %v2018, 19
        %v2029 = vpop.permute.xlu0 %2028
        %2030 = vrot.lane.b32.xlu0 %v2022, 19
        %v2031 = vpop.permute.xlu0 %2030
        %v2032 = vsel %vm2005, %v2027, %v2029
        %v2033 = vsel %vm2005, %v2029, %v2031
        %v2037 = vmul.f32 %v1550, %v2027
        %v2038 = vmul.f32 %v1551, %v2032
        %v2039 = vmul.f32 %v1552, %v2033
        %v2040 = vmul.f32 %v1553, %v2027
        %v2041 = vmul.f32 %v1554, %v2032
        %v2042 = vmul.f32 %v1555, %v2033
        %vm2043 = vcmask 1047704
        %2044 = vst.msk [vmem:[#allocation3] sm:$0xff] %vm2043, %v2037
        %2045 = vst [vmem:[#allocation3 + $0x8] sm:$0xff] %v2038
        %vm2046 = vcmask 400384
        %2047 = vst.msk [vmem:[#allocation3 + $0x10] sm:$0xff] %vm2046, %v2039
        %2048 = vst.msk [vmem:[#allocation3 + $0x18] sm:$0xff] %vm2043, %v2040
        %2049 = vst [vmem:[#allocation3 + $0x20] sm:$0xff] %v2041
        %2050 = vst.msk [vmem:[#allocation3 + $0x28] sm:$0xff] %vm2046, %v2042
        %v2051 = vld [vmem:[#allocation3] sm:$0xff]
        %v2052 = vld [vmem:[#allocation3 + $0x8] sm:$0xff]
        %v2053 = vld [vmem:[#allocation3 + $0x10] sm:$0xff]
        %v2054 = vld [vmem:[#allocation3 + $0x18] sm:$0xff]
        %v2055 = vld [vmem:[#allocation3 + $0x20] sm:$0xff]
        %v2056 = vld [vmem:[#allocation3 + $0x28] sm:$0xff]
        %v2057 = vpack.c.bf16 %v2054, %v2051
        %v2058 = vpack.c.bf16 %v2055, %v2052
        %v2059 = vpack.c.bf16 %v2056, %v2053
        %v2063 = vunpack.c.l.b16 %v2057
        %v2064 = vunpack.c.l.b16 %v2058
        %v2065 = vunpack.c.l.b16 %v2059
        %v2066 = vunpack.c.h.b16 %v2057
        %v2067 = vunpack.c.h.b16 %v2058
        %v2068 = vunpack.c.h.b16 %v2059
        %v2069 = vpack.c.b16 %v2064, %v2063
        %v2070 = vpack.c.b16 %v2065, %v2065
        %v2071 = vpack.c.b16 %v2067, %v2066
        %v2072 = vpack.c.b16 %v2068, %v2068
        %2077 = vst [vmem:[#allocation4] sm:$0xff] %v2069
        %vm2078 = vcmask 240640
        %2079 = vst.msk [vmem:[#allocation4 + $0x8] sm:$0xf] %vm2078, %v2070
        %2080 = vst [vmem:[#allocation4 + $0xc] sm:$0xff] %v2071
        %2081 = vst.msk [vmem:[#allocation4 + $0x14] sm:$0xf] %vm2078, %v2072
        %v2082 = vld [vmem:[#allocation3] sm:$0xff]
        %v2083 = vld [vmem:[#allocation3 + $0x8] sm:$0xff]
        %v2084 = vld [vmem:[#allocation3 + $0x10] sm:$0xff]
        %v2085 = vld [vmem:[#allocation3 + $0x18] sm:$0xff]
        %v2086 = vld [vmem:[#allocation3 + $0x20] sm:$0xff]
        %v2087 = vld [vmem:[#allocation3 + $0x28] sm:$0xff]
        %v2088 = vpack.c.bf16 %v2085, %v2082
        %v2089 = vpack.c.bf16 %v2086, %v2083
        %v2090 = vpack.c.bf16 %v2087, %v2084
        %v2094 = vunpack.c.l.b16 %v2088
        %v2095 = vunpack.c.l.b16 %v2089
        %v2096 = vunpack.c.l.b16 %v2090
        %v2097 = vunpack.c.h.b16 %v2088
        %v2098 = vunpack.c.h.b16 %v2089
        %v2099 = vunpack.c.h.b16 %v2090
        %v2100 = vpack.c.b16 %v2095, %v2094
        %v2101 = vpack.c.b16 %v2096, %v2096
        %v2102 = vpack.c.b16 %v2098, %v2097
        %v2103 = vpack.c.b16 %v2099, %v2099
        %2104 = vrot.lane.b32.xlu0 %v2100, 127
        %v2105 = vpop.permute.xlu0 %2104
        %2106 = vrot.lane.b32.xlu0 %v2101, 127
        %v2107 = vpop.permute.xlu0 %2106
        %2108 = vrot.lane.b32.xlu0 %v2102, 127
        %v2109 = vpop.permute.xlu0 %2108
        %2110 = vrot.lane.b32.xlu0 %v2103, 127
        %v2111 = vpop.permute.xlu0 %2110
        %v2112 = vrot.slane %v2105, 4
        %v2113 = vrot.slane %v2107, 4
        %v2114 = vrot.slane %v2109, 4
        %v2115 = vrot.slane %v2111, 4
        %vm2116 = vcmask 1043456
        %v2117 = vsel %vm2116, %v2112, %v2113
        %vm2118 = vcmask 1039360
        %v2119 = vsel %vm2118, %v2105, %v2117
        %v2120 = vsel %vm2116, %v2114, %v2115
        %v2121 = vsel %vm2118, %v2109, %v2120
        %2126 = vst [vmem:[#allocation4 + $0x18] sm:$0xff] %v2119
        %2127 = vst.msk [vmem:[#allocation4 + $0x20] sm:$0xf] %vm2078, %v2107
        %2128 = vst [vmem:[#allocation4 + $0x24] sm:$0xff] %v2121
        %2129 = vst.msk [vmem:[#allocation4 + $0x2c] sm:$0xf] %vm2078, %v2111
        %v2130 = vld [vmem:[#allocation3] sm:$0xff]
        %v2131 = vld [vmem:[#allocation3 + $0x8] sm:$0xff]
        %v2132 = vld [vmem:[#allocation3 + $0x10] sm:$0xff]
        %v2133 = vld [vmem:[#allocation3 + $0x18] sm:$0xff]
        %v2134 = vld [vmem:[#allocation3 + $0x20] sm:$0xff]
        %v2135 = vld [vmem:[#allocation3 + $0x28] sm:$0xff]
        %v2136 = vpack.c.bf16 %v2133, %v2130
        %v2137 = vpack.c.bf16 %v2134, %v2131
        %v2138 = vpack.c.bf16 %v2135, %v2132
        %v2142 = vunpack.c.l.b16 %v2136
        %v2143 = vunpack.c.l.b16 %v2137
        %v2144 = vunpack.c.l.b16 %v2138
        %v2145 = vunpack.c.h.b16 %v2136
        %v2146 = vunpack.c.h.b16 %v2137
        %v2147 = vunpack.c.h.b16 %v2138
        %v2148 = vpack.c.b16 %v2143, %v2142
        %v2149 = vpack.c.b16 %v2144, %v2144
        %v2150 = vpack.c.b16 %v2146, %v2145
        %v2151 = vpack.c.b16 %v2147, %v2147
        %2152 = vrot.lane.b32.xlu0 %v2148, 126
        %v2153 = vpop.permute.xlu0 %2152
        %2154 = vrot.lane.b32.xlu0 %v2149, 126
        %v2155 = vpop.permute.xlu0 %2154
        %2156 = vrot.lane.b32.xlu0 %v2150, 126
        %v2157 = vpop.permute.xlu0 %2156
        %2158 = vrot.lane.b32.xlu0 %v2151, 126
        %v2159 = vpop.permute.xlu0 %2158
        %v2160 = vrot.slane %v2153, 4
        %v2161 = vrot.slane %v2155, 4
        %v2162 = vrot.slane %v2157, 4
        %v2163 = vrot.slane %v2159, 4
        %v2164 = vsel %vm2116, %v2160, %v2161
        %vm2165 = vcmask 1031168
        %v2166 = vsel %vm2165, %v2153, %v2164
        %v2167 = vsel %vm2116, %v2162, %v2163
        %v2168 = vsel %vm2165, %v2157, %v2167
        %2173 = vst [vmem:[#allocation4 + $0x30] sm:$0xff] %v2166
        %2174 = vst.msk [vmem:[#allocation4 + $0x38] sm:$0xf] %vm2078, %v2155
        %2175 = vst [vmem:[#allocation4 + $0x3c] sm:$0xff] %v2168
        %2176 = vst.msk [vmem:[#allocation4 + $0x44] sm:$0xf] %vm2078, %v2159
        %v2177 = vld [vmem:[#allocation3] sm:$0xff]
        %v2178 = vld [vmem:[#allocation3 + $0x8] sm:$0xff]
        %v2179 = vld [vmem:[#allocation3 + $0x10] sm:$0xff]
        %v2180 = vld [vmem:[#allocation3 + $0x18] sm:$0xff]
        %v2181 = vld [vmem:[#allocation3 + $0x20] sm:$0xff]
        %v2182 = vld [vmem:[#allocation3 + $0x28] sm:$0xff]
        %v2183 = vpack.c.bf16 %v2180, %v2177
        %v2184 = vpack.c.bf16 %v2181, %v2178
        %v2185 = vpack.c.bf16 %v2182, %v2179
        %v2189 = vunpack.c.l.b16 %v2183
        %v2190 = vunpack.c.l.b16 %v2184
        %v2191 = vunpack.c.l.b16 %v2185
        %v2192 = vunpack.c.h.b16 %v2183
        %v2193 = vunpack.c.h.b16 %v2184
        %v2194 = vunpack.c.h.b16 %v2185
        %v2195 = vpack.c.b16 %v2190, %v2189
        %v2196 = vpack.c.b16 %v2191, %v2191
        %v2197 = vpack.c.b16 %v2193, %v2192
        %v2198 = vpack.c.b16 %v2194, %v2194
        %2199 = vrot.lane.b32.xlu0 %v2195, 110
        %v2200 = vpop.permute.xlu0 %2199
        %2201 = vrot.lane.b32.xlu0 %v2196, 110
        %v2202 = vpop.permute.xlu0 %2201
        %2203 = vrot.lane.b32.xlu0 %v2197, 110
        %v2204 = vpop.permute.xlu0 %2203
        %2205 = vrot.lane.b32.xlu0 %v2198, 110
        %v2206 = vpop.permute.xlu0 %2205
        %v2207 = vrot.slane %v2200, 4
        %v2208 = vrot.slane %v2202, 4
        %v2209 = vrot.slane %v2204, 4
        %v2210 = vrot.slane %v2206, 4
        %v2211 = vsel %vm2116, %v2207, %v2208
        %vm2212 = vcmask 900096
        %v2213 = vsel %vm2212, %v2200, %v2211
        %v2214 = vsel %vm2116, %v2209, %v2210
        %v2215 = vsel %vm2212, %v2204, %v2214
        %2220 = vst [vmem:[#allocation4 + $0x48] sm:$0xff] %v2213
        %2221 = vst.msk [vmem:[#allocation4 + $0x50] sm:$0xf] %vm2078, %v2202
        %2222 = vst [vmem:[#allocation4 + $0x54] sm:$0xff] %v2215
        %2223 = vst.msk [vmem:[#allocation4 + $0x5c] sm:$0xf] %vm2078, %v2206
        %v2224 = vld [vmem:[#allocation3] sm:$0xff]
        %v2225 = vld [vmem:[#allocation3 + $0x8] sm:$0xff]
        %v2226 = vld [vmem:[#allocation3 + $0x10] sm:$0xff]
        %v2227 = vld [vmem:[#allocation3 + $0x18] sm:$0xff]
        %v2228 = vld [vmem:[#allocation3 + $0x20] sm:$0xff]
        %v2229 = vld [vmem:[#allocation3 + $0x28] sm:$0xff]
        %v2230 = vpack.c.bf16 %v2227, %v2224
        %v2231 = vpack.c.bf16 %v2228, %v2225
        %v2232 = vpack.c.bf16 %v2229, %v2226
        %v2236 = vunpack.c.l.b16 %v2230
        %v2237 = vunpack.c.l.b16 %v2231
        %v2238 = vunpack.c.l.b16 %v2232
        %v2239 = vunpack.c.h.b16 %v2230
        %v2240 = vunpack.c.h.b16 %v2231
        %v2241 = vunpack.c.h.b16 %v2232
        %v2242 = vpack.c.b16 %v2237, %v2236
        %v2243 = vpack.c.b16 %v2238, %v2238
        %v2244 = vpack.c.b16 %v2240, %v2239
        %v2245 = vpack.c.b16 %v2241, %v2241
        %2246 = vrot.lane.b32.xlu0 %v2242, 109
        %v2247 = vpop.permute.xlu0 %2246
        %2248 = vrot.lane.b32.xlu0 %v2243, 109
        %v2249 = vpop.permute.xlu0 %2248
        %2250 = vrot.lane.b32.xlu0 %v2244, 109
        %v2251 = vpop.permute.xlu0 %2250
        %2252 = vrot.lane.b32.xlu0 %v2245, 109
        %v2253 = vpop.permute.xlu0 %2252
        %v2254 = vrot.slane %v2247, 4
        %v2255 = vrot.slane %v2249, 4
        %v2256 = vrot.slane %v2251, 4
        %v2257 = vrot.slane %v2253, 4
        %v2258 = vsel %vm2116, %v2254, %v2255
        %vm2259 = vcmask 891904
        %v2260 = vsel %vm2259, %v2247, %v2258
        %v2261 = vsel %vm2116, %v2256, %v2257
        %v2262 = vsel %vm2259, %v2251, %v2261
        %2267 = vst [vmem:[#allocation4 + $0x60] sm:$0xff] %v2260
        %2268 = vst.msk [vmem:[#allocation4 + $0x68] sm:$0xf] %vm2078, %v2249
        %2269 = vst [vmem:[#allocation4 + $0x6c] sm:$0xff] %v2262
        %2270 = vst.msk [vmem:[#allocation4 + $0x74] sm:$0xf] %vm2078, %v2253
        %v2271 = vld [vmem:[#allocation3] sm:$0xff]
        %v2272 = vld [vmem:[#allocation3 + $0x8] sm:$0xff]
        %v2273 = vld [vmem:[#allocation3 + $0x10] sm:$0xff]
        %v2274 = vld [vmem:[#allocation3 + $0x18] sm:$0xff]
        %v2275 = vld [vmem:[#allocation3 + $0x20] sm:$0xff]
        %v2276 = vld [vmem:[#allocation3 + $0x28] sm:$0xff]
        %v2277 = vpack.c.bf16 %v2274, %v2271
        %v2278 = vpack.c.bf16 %v2275, %v2272
        %v2279 = vpack.c.bf16 %v2276, %v2273
        %v2283 = vunpack.c.l.b16 %v2277
        %v2284 = vunpack.c.l.b16 %v2278
        %v2285 = vunpack.c.l.b16 %v2279
        %v2286 = vunpack.c.h.b16 %v2277
        %v2287 = vunpack.c.h.b16 %v2278
        %v2288 = vunpack.c.h.b16 %v2279
        %v2289 = vpack.c.b16 %v2284, %v2283
        %v2290 = vpack.c.b16 %v2285, %v2285
        %v2291 = vpack.c.b16 %v2287, %v2286
        %v2292 = vpack.c.b16 %v2288, %v2288
        %2293 = vrot.lane.b32.xlu0 %v2289, 108
        %v2294 = vpop.permute.xlu0 %2293
        %2295 = vrot.lane.b32.xlu0 %v2290, 108
        %v2296 = vpop.permute.xlu0 %2295
        %2297 = vrot.lane.b32.xlu0 %v2291, 108
        %v2298 = vpop.permute.xlu0 %2297
        %2299 = vrot.lane.b32.xlu0 %v2292, 108
        %v2300 = vpop.permute.xlu0 %2299
        %v2301 = vrot.slane %v2294, 4
        %v2302 = vrot.slane %v2296, 4
        %v2303 = vrot.slane %v2298, 4
        %v2304 = vrot.slane %v2300, 4
        %v2305 = vsel %vm2116, %v2301, %v2302
        %vm2306 = vcmask 883712
        %v2307 = vsel %vm2306, %v2294, %v2305
        %v2308 = vsel %vm2116, %v2303, %v2304
        %v2309 = vsel %vm2306, %v2298, %v2308
        %2314 = vst [vmem:[#allocation4 + $0x78] sm:$0xff] %v2307
        %2315 = vst.msk [vmem:[#allocation4 + $0x80] sm:$0xf] %vm2078, %v2296
        %2316 = vst [vmem:[#allocation4 + $0x84] sm:$0xff] %v2309
        %2317 = vst.msk [vmem:[#allocation4 + $0x8c] sm:$0xf] %vm2078, %v2300
        %v2318 = vld [vmem:[#allocation3] sm:$0xff]
        %v2319 = vld [vmem:[#allocation3 + $0x8] sm:$0xff]
        %v2320 = vld [vmem:[#allocation3 + $0x10] sm:$0xff]
        %v2321 = vld [vmem:[#allocation3 + $0x18] sm:$0xff]
        %v2322 = vld [vmem:[#allocation3 + $0x20] sm:$0xff]
        %v2323 = vld [vmem:[#allocation3 + $0x28] sm:$0xff]
        %v2324 = vpack.c.bf16 %v2321, %v2318
        %v2325 = vpack.c.bf16 %v2322, %v2319
        %v2326 = vpack.c.bf16 %v2323, %v2320
        %v2330 = vunpack.c.l.b16 %v2324
        %v2331 = vunpack.c.l.b16 %v2325
        %v2332 = vunpack.c.l.b16 %v2326
        %v2333 = vunpack.c.h.b16 %v2324
        %v2334 = vunpack.c.h.b16 %v2325
        %v2335 = vunpack.c.h.b16 %v2326
        %v2336 = vpack.c.b16 %v2331, %v2330
        %v2337 = vpack.c.b16 %v2332, %v2332
        %v2338 = vpack.c.b16 %v2334, %v2333
        %v2339 = vpack.c.b16 %v2335, %v2335
        %2340 = vrot.lane.b32.xlu0 %v2336, 92
        %v2341 = vpop.permute.xlu0 %2340
        %2342 = vrot.lane.b32.xlu0 %v2337, 92
        %v2343 = vpop.permute.xlu0 %2342
        %2344 = vrot.lane.b32.xlu0 %v2338, 92
        %v2345 = vpop.permute.xlu0 %2344
        %2346 = vrot.lane.b32.xlu0 %v2339, 92
        %v2347 = vpop.permute.xlu0 %2346
        %v2348 = vrot.slane %v2341, 4
        %v2349 = vrot.slane %v2343, 4
        %v2350 = vrot.slane %v2345, 4
        %v2351 = vrot.slane %v2347, 4
        %v2352 = vsel %vm2116, %v2348, %v2349
        %vm2353 = vcmask 752640
        %v2354 = vsel %vm2353, %v2341, %v2352
        %v2355 = vsel %vm2116, %v2350, %v2351
        %v2356 = vsel %vm2353, %v2345, %v2355
        %2361 = vst [vmem:[#allocation4 + $0x90] sm:$0xff] %v2354
        %2362 = vst.msk [vmem:[#allocation4 + $0x98] sm:$0xf] %vm2078, %v2343
        %2363 = vst [vmem:[#allocation4 + $0x9c] sm:$0xff] %v2356
        %2364 = vst.msk [vmem:[#allocation4 + $0xa4] sm:$0xf] %vm2078, %v2347
        %v2365 = vld [vmem:[#allocation3] sm:$0xff]
        %v2366 = vld [vmem:[#allocation3 + $0x8] sm:$0xff]
        %v2367 = vld [vmem:[#allocation3 + $0x10] sm:$0xff]
        %v2368 = vld [vmem:[#allocation3 + $0x18] sm:$0xff]
        %v2369 = vld [vmem:[#allocation3 + $0x20] sm:$0xff]
        %v2370 = vld [vmem:[#allocation3 + $0x28] sm:$0xff]
        %v2371 = vpack.c.bf16 %v2368, %v2365
        %v2372 = vpack.c.bf16 %v2369, %v2366
        %v2373 = vpack.c.bf16 %v2370, %v2367
        %v2377 = vunpack.c.l.b16 %v2371
        %v2378 = vunpack.c.l.b16 %v2372
        %v2379 = vunpack.c.l.b16 %v2373
        %v2380 = vunpack.c.h.b16 %v2371
        %v2381 = vunpack.c.h.b16 %v2372
        %v2382 = vunpack.c.h.b16 %v2373
        %v2383 = vpack.c.b16 %v2378, %v2377
        %v2384 = vpack.c.b16 %v2379, %v2379
        %v2385 = vpack.c.b16 %v2381, %v2380
        %v2386 = vpack.c.b16 %v2382, %v2382
        %2387 = vrot.lane.b32.xlu0 %v2383, 91
        %v2388 = vpop.permute.xlu0 %2387
        %2389 = vrot.lane.b32.xlu0 %v2384, 91
        %v2390 = vpop.permute.xlu0 %2389
        %2391 = vrot.lane.b32.xlu0 %v2385, 91
        %v2392 = vpop.permute.xlu0 %2391
        %2393 = vrot.lane.b32.xlu0 %v2386, 91
        %v2394 = vpop.permute.xlu0 %2393
        %v2395 = vrot.slane %v2388, 4
        %v2396 = vrot.slane %v2390, 4
        %v2397 = vrot.slane %v2392, 4
        %v2398 = vrot.slane %v2394, 4
        %v2399 = vsel %vm2116, %v2395, %v2396
        %vm2400 = vcmask 744448
        %v2401 = vsel %vm2400, %v2388, %v2399
        %v2402 = vsel %vm2116, %v2397, %v2398
        %v2403 = vsel %vm2400, %v2392, %v2402
        %2408 = vst [vmem:[#allocation4 + $0xa8] sm:$0xff] %v2401
        %2409 = vst.msk [vmem:[#allocation4 + $0xb0] sm:$0xf] %vm2078, %v2390
        %2410 = vst [vmem:[#allocation4 + $0xb4] sm:$0xff] %v2403
        %2411 = vst.msk [vmem:[#allocation4 + $0xbc] sm:$0xf] %vm2078, %v2394
        %v2412 = vld [vmem:[#allocation3] sm:$0xff]
        %v2413 = vld [vmem:[#allocation3 + $0x8] sm:$0xff]
        %v2414 = vld [vmem:[#allocation3 + $0x10] sm:$0xff]
        %v2415 = vld [vmem:[#allocation3 + $0x18] sm:$0xff]
        %v2416 = vld [vmem:[#allocation3 + $0x20] sm:$0xff]
        %v2417 = vld [vmem:[#allocation3 + $0x28] sm:$0xff]
        %v2418 = vpack.c.bf16 %v2415, %v2412
        %v2419 = vpack.c.bf16 %v2416, %v2413
        %v2420 = vpack.c.bf16 %v2417, %v2414
        %v2424 = vunpack.c.l.b16 %v2418
        %v2425 = vunpack.c.l.b16 %v2419
        %v2426 = vunpack.c.l.b16 %v2420
        %v2427 = vunpack.c.h.b16 %v2418
        %v2428 = vunpack.c.h.b16 %v2419
        %v2429 = vunpack.c.h.b16 %v2420
        %v2430 = vpack.c.b16 %v2425, %v2424
        %v2431 = vpack.c.b16 %v2426, %v2426
        %v2432 = vpack.c.b16 %v2428, %v2427
        %v2433 = vpack.c.b16 %v2429, %v2429
        %2434 = vrot.lane.b32.xlu0 %v2430, 90
        %v2435 = vpop.permute.xlu0 %2434
        %2436 = vrot.lane.b32.xlu0 %v2431, 90
        %v2437 = vpop.permute.xlu0 %2436
        %2438 = vrot.lane.b32.xlu0 %v2432, 90
        %v2439 = vpop.permute.xlu0 %2438
        %2440 = vrot.lane.b32.xlu0 %v2433, 90
        %v2441 = vpop.permute.xlu0 %2440
        %v2442 = vrot.slane %v2435, 4
        %v2443 = vrot.slane %v2437, 4
        %v2444 = vrot.slane %v2439, 4
        %v2445 = vrot.slane %v2441, 4
        %v2446 = vsel %vm2116, %v2442, %v2443
        %vm2447 = vcmask 736256
        %v2448 = vsel %vm2447, %v2435, %v2446
        %v2449 = vsel %vm2116, %v2444, %v2445
        %v2450 = vsel %vm2447, %v2439, %v2449
        %2455 = vst [vmem:[#allocation4 + $0xc0] sm:$0xff] %v2448
        %2456 = vst.msk [vmem:[#allocation4 + $0xc8] sm:$0xf] %vm2078, %v2437
        %2457 = vst [vmem:[#allocation4 + $0xcc] sm:$0xff] %v2450
        %2458 = vst.msk [vmem:[#allocation4 + $0xd4] sm:$0xf] %vm2078, %v2441
        %v2459 = vld [vmem:[%s8] sm:$0xff]
        %v2460 = vld [vmem:[%s8 + $0x8] sm:$0xff]
        %v2461 = vld [vmem:[%s8 + $0x10] sm:$0xff]
        %v2462 = vld [vmem:[%s8 + $0x18] sm:$0xff]
        %v2463 = vld [vmem:[#allocation4] sm:$0xff]
        %v2464 = vld [vmem:[#allocation4 + $0x8] sm:$0xf]
        %v2465 = vld [vmem:[#allocation4 + $0xc] sm:$0xff]
        %v2466 = vld [vmem:[#allocation4 + $0x14] sm:$0xf]
        %v2467 = vld [vmem:[#allocation4 + $0x18] sm:$0xff]
        %v2468 = vld [vmem:[#allocation4 + $0x20] sm:$0xf]
        %v2469 = vld [vmem:[#allocation4 + $0x24] sm:$0xff]
        %v2470 = vld [vmem:[#allocation4 + $0x2c] sm:$0xf]
        %v2471 = vld [vmem:[#allocation4 + $0x30] sm:$0xff]
        %v2472 = vld [vmem:[#allocation4 + $0x38] sm:$0xf]
        %v2473 = vld [vmem:[#allocation4 + $0x3c] sm:$0xff]
        %v2474 = vld [vmem:[#allocation4 + $0x44] sm:$0xf]
        %v2475 = vld [vmem:[#allocation4 + $0x48] sm:$0xff]
        %v2476 = vld [vmem:[#allocation4 + $0x50] sm:$0xf]
        %v2477 = vld [vmem:[#allocation4 + $0x54] sm:$0xff]
        %v2478 = vld [vmem:[#allocation4 + $0x5c] sm:$0xf]
        %v2479 = vld [vmem:[#allocation4 + $0x60] sm:$0xff]
        %v2480 = vld [vmem:[#allocation4 + $0x68] sm:$0xf]
        %v2481 = vld [vmem:[#allocation4 + $0x6c] sm:$0xff]
        %v2482 = vld [vmem:[#allocation4 + $0x74] sm:$0xf]
        %v2483 = vld [vmem:[#allocation4 + $0x78] sm:$0xff]
        %v2484 = vld [vmem:[#allocation4 + $0x80] sm:$0xf]
        %v2485 = vld [vmem:[#allocation4 + $0x84] sm:$0xff]
        %v2486 = vld [vmem:[#allocation4 + $0x8c] sm:$0xf]
        %v2487 = vld [vmem:[#allocation4 + $0x90] sm:$0xff]
        %v2488 = vld [vmem:[#allocation4 + $0x98] sm:$0xf]
        %v2489 = vld [vmem:[#allocation4 + $0x9c] sm:$0xff]
        %v2490 = vld [vmem:[#allocation4 + $0xa4] sm:$0xf]
        %v2491 = vld [vmem:[#allocation4 + $0xa8] sm:$0xff]
        %v2492 = vld [vmem:[#allocation4 + $0xb0] sm:$0xf]
        %v2493 = vld [vmem:[#allocation4 + $0xb4] sm:$0xff]
        %v2494 = vld [vmem:[#allocation4 + $0xbc] sm:$0xf]
        %v2495 = vld [vmem:[#allocation4 + $0xc0] sm:$0xff]
        %v2496 = vld [vmem:[#allocation4 + $0xc8] sm:$0xf]
        %v2497 = vld [vmem:[#allocation4 + $0xcc] sm:$0xff]
        %v2498 = vld [vmem:[#allocation4 + $0xd4] sm:$0xf]
        %v2503 = vunpack.c.l.b16 %v2459
        %v2504 = vunpack.c.h.b16 %v2459
        %v2505 = vunpack.c.l.b16 %v2460
        %v2506 = vunpack.c.h.b16 %v2460
        %v2507 = vunpack.c.l.b16 %v2461
        %v2508 = vunpack.c.h.b16 %v2461
        %v2509 = vunpack.c.l.b16 %v2462
        %v2510 = vunpack.c.h.b16 %v2462
        %v2511 = vpack.c.b16 %v2505, %v2503
        %v2512 = vpack.c.b16 %v2506, %v2504
        %v2513 = vpack.c.b16 %v2509, %v2507
        %v2514 = vpack.c.b16 %v2510, %v2508
        %v2553 = vunpack.c.l.b16 %v2463
        %v2554 = vunpack.c.h.b16 %v2463
        %v2555 = vunpack.c.l.b16 %v2464
        %v2556 = vunpack.c.l.b16 %v2465
        %v2557 = vunpack.c.h.b16 %v2465
        %v2558 = vunpack.c.l.b16 %v2466
        %v2559 = vunpack.c.l.b16 %v2467
        %v2560 = vunpack.c.h.b16 %v2467
        %v2561 = vunpack.c.l.b16 %v2468
        %v2562 = vunpack.c.l.b16 %v2469
        %v2563 = vunpack.c.h.b16 %v2469
        %v2564 = vunpack.c.l.b16 %v2470
        %v2565 = vunpack.c.l.b16 %v2471
        %v2566 = vunpack.c.h.b16 %v2471
        %v2567 = vunpack.c.l.b16 %v2472
        %v2568 = vunpack.c.l.b16 %v2473
        %v2569 = vunpack.c.h.b16 %v2473
        %v2570 = vunpack.c.l.b16 %v2474
        %v2571 = vunpack.c.l.b16 %v2475
        %v2572 = vunpack.c.h.b16 %v2475
        %v2573 = vunpack.c.l.b16 %v2476
        %v2574 = vunpack.c.l.b16 %v2477
        %v2575 = vunpack.c.h.b16 %v2477
        %v2576 = vunpack.c.l.b16 %v2478
        %v2577 = vunpack.c.l.b16 %v2479
        %v2578 = vunpack.c.h.b16 %v2479
        %v2579 = vunpack.c.l.b16 %v2480
        %v2580 = vunpack.c.l.b16 %v2481
        %v2581 = vunpack.c.h.b16 %v2481
        %v2582 = vunpack.c.l.b16 %v2482
        %v2583 = vunpack.c.l.b16 %v2483
        %v2584 = vunpack.c.h.b16 %v2483
        %v2585 = vunpack.c.l.b16 %v2484
        %v2586 = vunpack.c.l.b16 %v2485
        %v2587 = vunpack.c.h.b16 %v2485
        %v2588 = vunpack.c.l.b16 %v2486
        %v2589 = vunpack.c.l.b16 %v2487
        %v2590 = vunpack.c.h.b16 %v2487
        %v2591 = vunpack.c.l.b16 %v2488
        %v2592 = vunpack.c.l.b16 %v2489
        %v2593 = vunpack.c.h.b16 %v2489
        %v2594 = vunpack.c.l.b16 %v2490
        %v2595 = vunpack.c.l.b16 %v2491
        %v2596 = vunpack.c.h.b16 %v2491
        %v2597 = vunpack.c.l.b16 %v2492
        %v2598 = vunpack.c.l.b16 %v2493
        %v2599 = vunpack.c.h.b16 %v2493
        %v2600 = vunpack.c.l.b16 %v2494
        %v2601 = vunpack.c.l.b16 %v2495
        %v2602 = vunpack.c.h.b16 %v2495
        %v2603 = vunpack.c.l.b16 %v2496
        %v2604 = vunpack.c.l.b16 %v2497
        %v2605 = vunpack.c.h.b16 %v2497
        %v2606 = vunpack.c.l.b16 %v2498
        %v2607 = vpack.c.b16 %v2556, %v2553
        %v2608 = vpack.c.b16 %v2557, %v2554
        %v2609 = vpack.c.b16 %v2558, %v2555
        %v2610 = vpack.c.b16 %v2562, %v2559
        %v2611 = vpack.c.b16 %v2563, %v2560
        %v2612 = vpack.c.b16 %v2564, %v2561
        %v2613 = vpack.c.b16 %v2568, %v2565
        %v2614 = vpack.c.b16 %v2569, %v2566
        %v2615 = vpack.c.b16 %v2570, %v2567
        %v2616 = vpack.c.b16 %v2574, %v2571
        %v2617 = vpack.c.b16 %v2575, %v2572
        %v2618 = vpack.c.b16 %v2576, %v2573
        %v2619 = vpack.c.b16 %v2580, %v2577
        %v2620 = vpack.c.b16 %v2581, %v2578
        %v2621 = vpack.c.b16 %v2582, %v2579
        %v2622 = vpack.c.b16 %v2586, %v2583
        %v2623 = vpack.c.b16 %v2587, %v2584
        %v2624 = vpack.c.b16 %v2588, %v2585
        %v2625 = vpack.c.b16 %v2592, %v2589
        %v2626 = vpack.c.b16 %v2593, %v2590
        %v2627 = vpack.c.b16 %v2594, %v2591
        %v2628 = vpack.c.b16 %v2598, %v2595
        %v2629 = vpack.c.b16 %v2599, %v2596
        %v2630 = vpack.c.b16 %v2600, %v2597
        %v2631 = vpack.c.b16 %v2604, %v2601
        %v2632 = vpack.c.b16 %v2605, %v2602
        %v2633 = vpack.c.b16 %v2606, %v2603
        %v2662 = vsel %vm540, %v2512, 0
        %v2665 = vsel %vm540, %v2514, 0
        %2667 = vmatprep.subr.bf16.mxu0 %v2629
        %2668 = vmatpush1.bf16.msra.mxu0 %v2628
        %2669 = vmatprep.subr.bf16.mxu0 %v2626
        %2670 = vmatpush1.bf16.msra.mxu0 %v2625
        %2671 = vmatprep.subr.bf16.mxu0 %v2623
        %2672 = vmatpush1.bf16.msra.mxu0 %v2622
        %2673 = vmatprep.subr.bf16.mxu0 %v2620
        %2674 = vmatpush1.bf16.msra.mxu0 %v2619
        %2675 = vmatprep.subr.bf16.mxu0 %v2617
        %2676 = vmatpush1.bf16.msra.mxu0 %v2616
        %2677 = vmatprep.subr.bf16.mxu0 %v2614
        %2678 = vmatpush1.bf16.msra.mxu0 %v2613
        %2679 = vmatprep.subr.bf16.mxu0 %v2611
        %2680 = vmatpush1.bf16.msra.mxu0 %v2610
        %2681 = vmatprep.subr.bf16.mxu0 %v2608
        %2682 = vmatpush1.bf16.msra.mxu0 %v2607
        %2683 = vmatprep.subr.bf16.mxu0 0
        %2684 = vmatpush2.bf16.msra.mxu0 0
        %2685 = vmatprep.subr.bf16.mxu0 0
        %2686 = vmatpush2.bf16.msra.mxu0 0
        %2687 = vmatprep.subr.bf16.mxu0 0
        %2688 = vmatpush2.bf16.msra.mxu0 0
        %2689 = vmatprep.subr.bf16.mxu0 0
        %2690 = vmatpush2.bf16.msra.mxu0 0
        %2691 = vmatprep.subr.bf16.mxu0 0
        %2692 = vmatpush2.bf16.msra.mxu0 0
        %2693 = vmatprep.subr.bf16.mxu0 0
        %2694 = vmatpush2.bf16.msra.mxu0 0
        %2695 = vmatprep.subr.bf16.mxu0 0
        %2696 = vmatpush2.bf16.msra.mxu0 0
        %2697 = vmatprep.subr.bf16.mxu0 %v2632
        %2698 = vmatpush2.bf16.msra.mxu0 %v2631
        %2699 = vmatprep.mubr.bf16.mxu0 %v2662
        %2700 = vmatmul.mubr.bf16.gmra.mxu0 %v2511
        %v2701 = vpop.f32.mrf.mxu0
        %v2702 = vadd.f32 0.0, %v2701
        %v2703 = vpop.f32.mrf.mxu0
        %v2704 = vadd.f32 0.0, %v2703
        %v2705 = vpop.f32.mrf.mxu0
        %v2706 = vadd.f32 0.0, %v2705
        %v2707 = vpop.f32.mrf.mxu0
        %v2708 = vadd.f32 0.0, %v2707
        %2709 = vmatprep.mubr.bf16.mxu0 %v2665
        %2710 = vmatmul.mubr.bf16.gmra.mxu0 %v2513
        %v2711 = vpop.f32.mrf.mxu0
        %v2712 = vadd.f32 0.0, %v2711
        %v2713 = vpop.f32.mrf.mxu0
        %v2714 = vadd.f32 0.0, %v2713
        %v2715 = vpop.f32.mrf.mxu0
        %v2716 = vadd.f32 0.0, %v2715
        %v2717 = vpop.f32.mrf.mxu0
        %v2718 = vadd.f32 0.0, %v2717
        %2719 = vdwg.mxu0
        %2720 = vmatprep.subr.bf16.mxu0 0
        %2721 = vmatpush1.bf16.msra.mxu0 %v2630
        %2722 = vmatprep.subr.bf16.mxu0 0
        %2723 = vmatpush1.bf16.msra.mxu0 %v2627
        %2724 = vmatprep.subr.bf16.mxu0 0
        %2725 = vmatpush1.bf16.msra.mxu0 %v2624
        %2726 = vmatprep.subr.bf16.mxu0 0
        %2727 = vmatpush1.bf16.msra.mxu0 %v2621
        %2728 = vmatprep.subr.bf16.mxu0 0
        %2729 = vmatpush1.bf16.msra.mxu0 %v2618
        %2730 = vmatprep.subr.bf16.mxu0 0
        %2731 = vmatpush1.bf16.msra.mxu0 %v2615
        %2732 = vmatprep.subr.bf16.mxu0 0
        %2733 = vmatpush1.bf16.msra.mxu0 %v2612
        %2734 = vmatprep.subr.bf16.mxu0 0
        %2735 = vmatpush1.bf16.msra.mxu0 %v2609
        %2736 = vmatprep.subr.bf16.mxu0 0
        %2737 = vmatpush2.bf16.msra.mxu0 0
        %2738 = vmatprep.subr.bf16.mxu0 0
        %2739 = vmatpush2.bf16.msra.mxu0 0
        %2740 = vmatprep.subr.bf16.mxu0 0
        %2741 = vmatpush2.bf16.msra.mxu0 0
        %2742 = vmatprep.subr.bf16.mxu0 0
        %2743 = vmatpush2.bf16.msra.mxu0 0
        %2744 = vmatprep.subr.bf16.mxu0 0
        %2745 = vmatpush2.bf16.msra.mxu0 0
        %2746 = vmatprep.subr.bf16.mxu0 0
        %2747 = vmatpush2.bf16.msra.mxu0 0
        %2748 = vmatprep.subr.bf16.mxu0 0
        %2749 = vmatpush2.bf16.msra.mxu0 0
        %2750 = vmatprep.subr.bf16.mxu0 0
        %2751 = vmatpush2.bf16.msra.mxu0 %v2633
        %2752 = vmatprep.mubr.bf16.mxu0 %v2662
        %2753 = vmatmul.mubr.bf16.gmra.mxu0 %v2511
        %v2754 = vpop.f32.mrf.mxu0
        %v2755 = vadd.f32 0.0, %v2754
        %v2756 = vpop.f32.mrf.mxu0
        %v2757 = vpop.f32.mrf.mxu0
        %v2758 = vadd.f32 0.0, %v2757
        %v2759 = vpop.f32.mrf.mxu0
        %2760 = vmatprep.mubr.bf16.mxu0 %v2665
        %2761 = vmatmul.mubr.bf16.gmra.mxu0 %v2513
        %v2762 = vpop.f32.mrf.mxu0
        %v2763 = vadd.f32 0.0, %v2762
        %v2764 = vpop.f32.mrf.mxu0
        %v2765 = vpop.f32.mrf.mxu0
        %v2766 = vadd.f32 0.0, %v2765
        %v2767 = vpop.f32.mrf.mxu0
        %2768 = vdwg.mxu0
        %2769 = vst [vmem:[%s447] sm:$0xff] %v2702
        %2770 = vst [vmem:[%s447 + $0x8] sm:$0xff] %v2704
        %vm2771 = vcmask 244736
        %2772 = vst.msk [vmem:[%s447 + $0x10] sm:$0xff] %vm2771, %v2755
        %2773 = vst [vmem:[%s447 + $0x18] sm:$0xff] %v2706
        %2774 = vst [vmem:[%s447 + $0x20] sm:$0xff] %v2708
        %2775 = vst.msk [vmem:[%s447 + $0x28] sm:$0xff] %vm2771, %v2758
        %2776 = vst [vmem:[%s447 + $0x30] sm:$0xff] %v2712
        %2777 = vst [vmem:[%s447 + $0x38] sm:$0xff] %v2714
        %2778 = vst.msk [vmem:[%s447 + $0x40] sm:$0xff] %vm2771, %v2763
        %2779 = vst [vmem:[%s447 + $0x48] sm:$0xff] %v2716
        %2780 = vst [vmem:[%s447 + $0x50] sm:$0xff] %v2718
        %2781 = vst.msk [vmem:[%s447 + $0x58] sm:$0xff] %vm2771, %v2766
        %v2782 = vld [vmem:[%s9] sm:$0x7]
        %v2784 = vlaneseq
        %v2785 = vshrl.u32 %v2784, 7
        %v2786 = vsub.s32 0, %v2785
        %v2787 = vrot.slane %v2782, %v2786
        %v2788 = vlaneseq
        %v2789 = vshrl.u32 %v2788, 7
        %v2790 = vsub.s32 1, %v2789
        %v2791 = vrot.slane %v2782, %v2790
        %v2792 = vlaneseq
        %v2793 = vshrl.u32 %v2792, 7
        %v2794 = vsub.s32 2, %v2793
        %v2795 = vrot.slane %v2782, %v2794
        %v2799 = vmul.f32 %v2702, %v2787
        %v2800 = vmul.f32 %v2704, %v2791
        %v2801 = vmul.f32 %v2755, %v2795
        %v2802 = vmul.f32 %v2706, %v2787
        %v2803 = vmul.f32 %v2708, %v2791
        %v2804 = vmul.f32 %v2758, %v2795
        %v2805 = vmul.f32 %v2712, %v2787
        %v2806 = vmul.f32 %v2714, %v2791
        %v2807 = vmul.f32 %v2763, %v2795
        %v2808 = vmul.f32 %v2716, %v2787
        %v2809 = vmul.f32 %v2718, %v2791
        %v2810 = vmul.f32 %v2766, %v2795
        %v2811 = vadd.f32 %v2799, %v2800
        %v2812 = vsel %vm2771, %v2801, 0.0
        %v2813 = vadd.f32 %v2811, %v2812
        %2814 = vadd.xlane.f32.xlu0 %v2813
        %v2815 = vpop.xlane.xlu0 %2814
        %v2816 = vadd.f32 %v2802, %v2803
        %v2817 = vsel %vm2771, %v2804, 0.0
        %v2818 = vadd.f32 %v2816, %v2817
        %2819 = vadd.xlane.f32.xlu0 %v2818
        %v2820 = vpop.xlane.xlu0 %2819
        %v2821 = vadd.f32 %v2805, %v2806
        %v2822 = vsel %vm2771, %v2807, 0.0
        %v2823 = vadd.f32 %v2821, %v2822
        %2824 = vadd.xlane.f32.xlu0 %v2823
        %v2825 = vpop.xlane.xlu0 %2824
        %v2826 = vadd.f32 %v2808, %v2809
        %v2827 = vsel %vm2771, %v2810, 0.0
        %v2828 = vadd.f32 %v2826, %v2827
        %2829 = vadd.xlane.f32.xlu0 %v2828
        %v2830 = vpop.xlane.xlu0 %2829
        %2831 = vst.msk [vmem:[%s466] sm:$0xff] %vm492, %v2815
        %2832 = vst.msk [vmem:[%s466 + $0x8] sm:$0xff] %vm492, %v2820
        %2833 = vst.msk [vmem:[%s466 + $0x10] sm:$0xff] %vm492, %v2825
        %2834 = vst.msk [vmem:[%s466 + $0x18] sm:$0xff] %vm492, %v2830
        %v2835 = vmul.f32 %v2799, %v2799
        %v2836 = vmul.f32 %v2800, %v2800
        %v2837 = vmul.f32 %v2801, %v2801
        %v2838 = vmul.f32 %v2802, %v2802
        %v2839 = vmul.f32 %v2803, %v2803
        %v2840 = vmul.f32 %v2804, %v2804
        %v2841 = vmul.f32 %v2805, %v2805
        %v2842 = vmul.f32 %v2806, %v2806
        %v2843 = vmul.f32 %v2807, %v2807
        %v2844 = vmul.f32 %v2808, %v2808
        %v2845 = vmul.f32 %v2809, %v2809
        %v2846 = vmul.f32 %v2810, %v2810
        %v2847 = vadd.f32 %v2835, %v2836
        %v2848 = vsel %vm2771, %v2837, 0.0
        %v2849 = vadd.f32 %v2847, %v2848
        %2850 = vadd.xlane.f32.xlu0 %v2849
        %v2851 = vpop.xlane.xlu0 %2850
        %v2852 = vadd.f32 %v2838, %v2839
        %v2853 = vsel %vm2771, %v2840, 0.0
        %v2854 = vadd.f32 %v2852, %v2853
        %2855 = vadd.xlane.f32.xlu0 %v2854
        %v2856 = vpop.xlane.xlu0 %2855
        %v2857 = vadd.f32 %v2841, %v2842
        %v2858 = vsel %vm2771, %v2843, 0.0
        %v2859 = vadd.f32 %v2857, %v2858
        %2860 = vadd.xlane.f32.xlu0 %v2859
        %v2861 = vpop.xlane.xlu0 %2860
        %v2862 = vadd.f32 %v2844, %v2845
        %v2863 = vsel %vm2771, %v2846, 0.0
        %v2864 = vadd.f32 %v2862, %v2863
        %2865 = vadd.xlane.f32.xlu0 %v2864
        %v2866 = vpop.xlane.xlu0 %2865
        %2867 = vst.msk [vmem:[%s471] sm:$0xff] %vm492, %v2851
        %2868 = vst.msk [vmem:[%s471 + $0x8] sm:$0xff] %vm492, %v2856
        %2869 = vst.msk [vmem:[%s471 + $0x10] sm:$0xff] %vm492, %v2861
        %2870 = vst.msk [vmem:[%s471 + $0x18] sm:$0xff] %vm492, %v2866
        %s2871 = sand.u32 %s255, 1
        %s2872 = scalar_lea.sflag [#allocation8], %s2871
        %s2873 = sand.u32 %s255, 1
        %s2874 = smul.addr %s2873, 96
        %s2875 = scalar_lea.vmem [#allocation11], %s2874
        %p2876 = scmp.lt.s32.totalorder %s32, 1
        %s2877 = scalar_select %p2876, %s32, 1
        %s2878 = smul.addr %s2877, 4
        %s2879 = smul.addr %s2878, 8
        %s2880 = scalar_lea.vmem %s11, %s2879
        %p2881 = scmp.lt.s32.totalorder %s32, 1
        %s2882 = scalar_select %p2881, %s32, 1
        %s2883 = smul.addr %s2882, 4
        %s2884 = smul.addr %s2883, 8
        %s2885 = scalar_lea.vmem %s12, %s2884
        // Predicated region
        $region69: #{tpu_custom_call.1} parent=59 // pred_check
          %p2886 = pneg %p265
        $region70: #{tpu_custom_call.1} parent=59 // pred_check_branch
          %2888 = sbr.rel (%p2886) target = $region72
        $region71: #{tpu_custom_call.1} parent=59 // pred_region
          %s2890 = ssub.s32 1536, 1536
          %2891 = vsyncadd %s2872, %s2890
          %s2892 = smul.addr %s32, 12
          %s2893 = smul.addr %s2892, 128
          %s2894 = scalar_lea.hbm %s10, %s2893
          %s2895 = sshll.u32 %s2875, 4
          %s2896 = int_to_ptr.vmem [resolvable:$true] %s2895
          %2901 = dma.vmem_to_hbm [thread:$0]  %s2896, 1536, %s2894, %s2872, 384, 384, 24
        $region72: #{tpu_custom_call.1} parent=59 // pred_fallthru
          _
        // Predicated region
        $region73: #{tpu_custom_call.1} parent=59 // pred_check
          %p2902 = pneg %p291
        $region74: #{tpu_custom_call.1} parent=59 // pred_check_branch
          %2904 = sbr.rel (%p2902) target = $region76
        $region75: #{tpu_custom_call.1} parent=59 // pred_region
          _
        $region76: #{tpu_custom_call.1} parent=59 // pred_fallthru
          _
        // Predicated region
        $region77: #{tpu_custom_call.1} parent=59 // pred_check
          %p2905 = pneg %p317
        $region78: #{tpu_custom_call.1} parent=59 // pred_check_branch
          %2907 = sbr.rel (%p2905) target = $region80
        $region79: #{tpu_custom_call.1} parent=59 // pred_region
          _
        $region80: #{tpu_custom_call.1} parent=59 // pred_fallthru
          _
      $region60: #{tpu_custom_call.1} parent=5 // pred_fallthru
        _
      %p2908 = scmp.le.s32.totalorder 2, %s27
      // Predicated region
      $region81: #{tpu_custom_call.1} parent=5 // pred_check
        %p2909 = pneg %p2908
      $region82: #{tpu_custom_call.1} parent=5 // pred_check_branch
        %2911 = sbr.rel (%p2909) target = $region84
      $region83: #{tpu_custom_call.1} parent=5 // pred_region
        %s2912 = ssub.s32 %s27, 2
        // Predicated region
        $region85: #{tpu_custom_call.1} parent=83 // pred_check
          %p2913 = pneg %p271
        $region86: #{tpu_custom_call.1} parent=83 // pred_check_branch
          %2915 = sbr.rel (%p2913) target = $region88
        $region87: #{tpu_custom_call.1} parent=83 // pred_region
          %s2916 = sand.u32 %s256, 1
          %s2917 = scalar_lea.sflag [#allocation8], %s2916
          %s2918 = sand.u32 %s256, 1
          %s2919 = smul.addr %s2918, 96
          %s2920 = scalar_lea.vmem [#allocation11], %s2919
          %2921 = dma.done %s2917, 1536
        $region88: #{tpu_custom_call.1} parent=83 // pred_fallthru
          _
        // Predicated region
        $region89: #{tpu_custom_call.1} parent=83 // pred_check
          %p2922 = pneg %p297
        $region90: #{tpu_custom_call.1} parent=83 // pred_check_branch
          %2924 = sbr.rel (%p2922) target = $region92
        $region91: #{tpu_custom_call.1} parent=83 // pred_region
          %p2925 = scmp.lt.s32.totalorder %s33, 1
          %s2926 = scalar_select %p2925, %s33, 1
          %s2927 = smul.addr %s2926, 4
          %s2928 = smul.addr %s2927, 8
          %s2929 = scalar_lea.vmem %s11, %s2928
        $region92: #{tpu_custom_call.1} parent=83 // pred_fallthru
          _
        // Predicated region
        $region93: #{tpu_custom_call.1} parent=83 // pred_check
          %p2930 = pneg %p323
        $region94: #{tpu_custom_call.1} parent=83 // pred_check_branch
          %2932 = sbr.rel (%p2930) target = $region96
        $region95: #{tpu_custom_call.1} parent=83 // pred_region
          %p2933 = scmp.lt.s32.totalorder %s33, 1
          %s2934 = scalar_select %p2933, %s33, 1
          %s2935 = smul.addr %s2934, 4
          %s2936 = smul.addr %s2935, 8
          %s2937 = scalar_lea.vmem %s12, %s2936
        $region96: #{tpu_custom_call.1} parent=83 // pred_fallthru
          _
      $region84: #{tpu_custom_call.1} parent=5 // pred_fallthru
        _
    $region6: #{tpu_custom_call.1} parent=1 // loop_footer
      %s31 = sadd.s32 1, %s27
    $region7: #{tpu_custom_call.1} parent=1 // loop_footer_branch
      %26 = sbr.rel target = $region3
    $region8: #{tpu_custom_call.1} parent=1 // loop_exit
      _
    %2938 = vsyncpa [#allocation7], 1
    %s2939 = scalar_lea.sflag [#allocation7], 1
    %2940 = vsyncpa %s2939, 1
    %2941 = vsyncpa [#allocation8], 1
    %s2942 = scalar_lea.sflag [#allocation8], 1
    %2943 = vsyncpa %s2942, 1
    %2944 = vsyncpa [#allocation9], 1
    %s2945 = scalar_lea.sflag [#allocation9], 1
    %2946 = vsyncpa %s2945, 1

</llo_original>
